<compile_context>
chip_gen: v7x
topology: tpu7x:2x2x1
jax: 0.10.0
libtpu: 0.0.40
codegen_flags: <defaults>
</compile_context>

<pallas_src>
import numpy as np

import jax
import jax.numpy as jnp
from jax.experimental import pallas as pl
from jax.experimental.pallas import tpu as pltpu


# ----------------------------------------------------------------------------
# The fused kernel
# ----------------------------------------------------------------------------
def _convnet_kernel(x_ref, b1b_ref, b1t_ref, b2b_ref, b2t_ref,
                    w3_ref, b3_ref, w4_ref, b4_ref, out_ref):
    f32 = jnp.float32
    tb = x_ref.shape[1]                       # batch-tile size (multiple of 8)

    x = x_ref[...].astype(f32)                # (28, tb, 28)  rows h-major
    x2 = x.reshape(28 * tb, 28)               # free reshape (tb % 8 == 0)

    # ---- conv1 (1->10, 5x5) as 5 banded matmuls ------------------------------
    # rows = h_out*tb + n ; lanes = [even-w (120) | pad | odd-w (120) | pad]
    acc = jnp.dot(x2[0:24 * tb, :], b1b_ref[0], preferred_element_type=f32)
    for i in range(1, 5):
        acc = acc + jnp.dot(x2[i * tb:i * tb + 24 * tb, :], b1b_ref[i],
                            preferred_element_type=f32)
    acc = jnp.maximum(acc + b1t_ref[...], 0.0)            # bias + ReLU, (24*tb, 256)

    # ---- fused 2x2/2 max-pool, all on the VPU --------------------------------
    wmax = jnp.maximum(acc[:, :128], acc[:, 128:])         # width pool (24*tb, 128)
    wm = wmax.reshape(12, 2, tb, 128)                      # free leading-dim split
    pooled = jnp.maximum(wm[:, 0], wm[:, 1]).reshape(12 * tb, 128)   # height pool

    # ---- conv2 (10->20, 3x3) as 3 banded matmuls ------------------------------
    # rows = h2*tb + n ; lanes = w*20 + oc (200 live, 56 pad)
    acc2 = jnp.dot(pooled[0:10 * tb, :], b2b_ref[0], preferred_element_type=f32)
    for i in range(1, 3):
        acc2 = acc2 + jnp.dot(pooled[i * tb:i * tb + 10 * tb, :], b2b_ref[i],
                              preferred_element_type=f32)
    h2 = jnp.maximum(acc2 + b2t_ref[...], 0.0)             # (10*tb, 256)

    # ---- fc1 (2000 -> 500) + ReLU: 10 dense (tb,256)x(256,500) matmuls --------
    z1 = jnp.dot(h2[0:tb, :], w3_ref[0], preferred_element_type=f32)
    for h in range(1, 10):
        z1 = z1 + jnp.dot(h2[h * tb:(h + 1) * tb, :], w3_ref[h],
                          preferred_element_type=f32)
    z1 = jnp.maximum(z1 + b3_ref[...], 0.0)                # (tb, 500)

    # ---- fc2 (500 -> 10, lane-padded to 128) + log_softmax --------------------
    # pad lanes carry bias -1e30, so they never win the max and exp to 0.
    z2 = jnp.dot(z1, w4_ref[...], preferred_element_type=f32) + b4_ref[...]
    z2 = z2 - jnp.max(z2, axis=-1, keepdims=True)
    out_ref[...] = z2 - jnp.log(jnp.sum(jnp.exp(z2), axis=-1, keepdims=True))


# ----------------------------------------------------------------------------
# Parameters (PyTorch layout) + one-time kernel-ready preprocessing
# ----------------------------------------------------------------------------
def init_params(key):
    # PyTorch-style uniform(-1/sqrt(fan_in), 1/sqrt(fan_in)) init.
    def uni(k, shape, fan_in):
        bound = 1.0 / jnp.sqrt(jnp.float32(fan_in))
        return jax.random.uniform(k, shape, jnp.float32, -bound, bound)

    ks = jax.random.split(key, 8)
    return {
        "conv1_w": uni(ks[0], (10, 1, 5, 5), 1 * 5 * 5),
        "conv1_b": uni(ks[1], (10,), 1 * 5 * 5),
        "conv2_w": uni(ks[2], (20, 10, 3, 3), 10 * 3 * 3),
        "conv2_b": uni(ks[3], (20,), 10 * 3 * 3),
        "fc1_w": uni(ks[4], (500, 2000), 2000),
        "fc1_b": uni(ks[5], (500,), 2000),
        "fc2_w": uni(ks[6], (10, 500), 500),
        "fc2_b": uni(ks[7], (10,), 500),
    }


def prepare_params(params):
    """One-time repack of raw PyTorch-layout parameters into the band / padded /
    pre-transposed operands consumed by the fused kernel."""
    w1 = np.asarray(params["conv1_w"], np.float32)   # (10, 1, 5, 5)
    b1 = np.asarray(params["conv1_b"], np.float32)   # (10,)
    w2 = np.asarray(params["conv2_w"], np.float32)   # (20, 10, 3, 3)
    b2 = np.asarray(params["conv2_b"], np.float32)   # (20,)
    w3 = np.asarray(params["fc1_w"], np.float32)     # (500, 2000)
    b3 = np.asarray(params["fc1_b"], np.float32)     # (500,)
    w4 = np.asarray(params["fc2_w"], np.float32)     # (10, 500)
    b4 = np.asarray(params["fc2_b"], np.float32)     # (10,)

    # conv1 band: output lanes split [even-w | pad8 | odd-w | pad8] (2 x 128).
    #   B1[i, wo + j, half(wo) + (wo//2)*10 + oc] = w1[oc, 0, i, j]
    b1band = np.zeros((5, 28, 256), np.float32)
    b1tile = np.zeros((1, 256), np.float32)
    for wo in range(24):
        base = 128 * (wo % 2) + (wo // 2) * 10
        b1tile[0, base:base + 10] = b1
        for i in range(5):
            for j in range(5):
                b1band[i, wo + j, base:base + 10] = w1[:, 0, i, j]

    # conv2 band: input lanes (wp*10 + c) [120 live], output lanes (wo*20 + oc)
    # [200 live], both padded (pad rows/cols are zero).
    b2band = np.zeros((3, 128, 256), np.float32)
    b2tile = np.zeros((1, 256), np.float32)
    for wo in range(10):
        b2tile[0, wo * 20:wo * 20 + 20] = b2
        for i in range(3):
            for j in range(3):
                b2band[i, (wo + j) * 10:(wo + j) * 10 + 10,
                       wo * 20:wo * 20 + 20] = w2[:, :, i, j].T

    # fc1 regrouped per conv2 output row h, lane order (w, oc), padded to 256:
    #   W3[h, w*20 + oc, m] = fc1_w[m, oc*100 + h*10 + w]
    w3r = w3.reshape(500, 20, 10, 10)                      # (m, oc, h, w)
    w3stack = np.zeros((10, 256, 500), np.float32)
    w3stack[:, :200, :] = np.transpose(w3r, (2, 3, 1, 0)).reshape(10, 200, 500)

    # fc2: pad outputs 10 -> 128 lanes (zero weights, -1e30 bias on pad lanes).
    w4pad = np.zeros((500, 128), np.float32)
    w4pad[:, :10] = w4.T
    b4pad = np.full((1, 128), -1e30, np.float32)
    b4pad[0, :10] = b4

    return {
        "b1band": jnp.asarray(b1band),          # (5, 28, 256)
        "b1tile": jnp.asarray(b1tile),          # (1, 256)
        "b2band": jnp.asarray(b2band),          # (3, 128, 256)
        "b2tile": jnp.asarray(b2tile),          # (1, 256)
        "w3": jnp.asarray(w3stack),             # (10, 256, 500)
        "b3": jnp.asarray(b3[None, :]),         # (1, 500)
        "w4": jnp.asarray(w4pad),               # (500, 128)
        "b4": jnp.asarray(b4pad),               # (1, 128)
    }


# ----------------------------------------------------------------------------
# Forward
# ----------------------------------------------------------------------------
@jax.jit
def convnet_forward(kparams, x):
    """x: (N, 1, 28, 28) float32 -> (N, 10) log-probabilities."""
    n = x.shape[0]
    # Batch tile: multiple of 8, up to 128 (fits v7x's 64 MiB VMEM with margin).
    tb = min(128, max(8, ((n + 7) // 8) * 8))
    n_pad = pl.cdiv(n, tb) * tb

    # h-major layout: xs[h, n, w] = x[n, 0, h, w]
    xs = jnp.transpose(x.astype(jnp.float32).reshape(n, 28, 28), (1, 0, 2))
    if n_pad != n:
        xs = jnp.pad(xs, ((0, 0), (0, n_pad - n), (0, 0)))

    def cspec(a):
        # full-block, grid-invariant operand (stays resident in VMEM)
        return pl.BlockSpec(a.shape, lambda b, nd=a.ndim: (0,) * nd)

    out = pl.pallas_call(
        _convnet_kernel,
        out_shape=jax.ShapeDtypeStruct((n_pad, 128), jnp.float32),
        grid=(n_pad // tb,),
        in_specs=[
            pl.BlockSpec((28, tb, 28), lambda b: (0, b, 0)),     # input image tile
            cspec(kparams["b1band"]), cspec(kparams["b1tile"]),
            cspec(kparams["b2band"]), cspec(kparams["b2tile"]),
            cspec(kparams["w3"]), cspec(kparams["b3"]),
            cspec(kparams["w4"]), cspec(kparams["b4"]),
        ],
        out_specs=pl.BlockSpec((tb, 128), lambda b: (b, 0)),     # lane-dense store
        compiler_params=pltpu.CompilerParams(
            dimension_semantics=("parallel",),
            vmem_limit_bytes=48 * 1024 * 1024,
        ),
    )(xs, kparams["b1band"], kparams["b1tile"], kparams["b2band"],
      kparams["b2tile"], kparams["w3"], kparams["b3"],
      kparams["w4"], kparams["b4"])
    return out[:n, :10]


# ----------------------------------------------------------------------------
# Pure-JAX reference (exact PyTorch forward semantics) for self-check
# ----------------------------------------------------------------------------
def _reference_forward(params, x):
    hi = jax.lax.Precision.HIGHEST
    out = jax.lax.conv(x, params["conv1_w"], (1, 1), "VALID", precision=hi)
    out = jax.nn.relu(out + params["conv1_b"][None, :, None, None])
    out = jax.lax.reduce_window(out, -jnp.inf, jax.lax.max,
                                (1, 1, 2, 2), (1, 1, 2, 2), "VALID")
    out = jax.lax.conv(out, params["conv2_w"], (1, 1), "VALID", precision=hi)
    out = jax.nn.relu(out + params["conv2_b"][None, :, None, None])
    out = out.reshape(x.shape[0], -1)
    out = jax.nn.relu(jnp.dot(out, params["fc1_w"].T, precision=hi) + params["fc1_b"])
    out = jnp.dot(out, params["fc2_w"].T, precision=hi) + params["fc2_b"]
    return jax.nn.log_softmax(out, axis=-1)


if __name__ == "__main__":
    key = jax.random.PRNGKey(0)
    pkey, xkey = jax.random.split(key)
    params = init_params(pkey)
    kparams = prepare_params(params)

    # LeNet geometry requires 28x28 single-channel input (fc1 expects 20*10*10).
    x = jax.random.normal(xkey, (2, 1, 28, 28), jnp.float32)

    logp = convnet_forward(kparams, x)
    jax.block_until_ready(logp)
    assert logp.shape == (2, 10)

    ref = _reference_forward(params, x)
    err = float(jnp.max(jnp.abs(logp - ref)))
    assert err < 3e-2, f"mismatch vs reference: max abs err = {err}"

    print("KERNEL_OK")
</pallas_src>

<mosaic_0001>
module attributes {stable_mosaic.version = 11 : i64} {
  func.func @_convnet_kernel(%arg0: i32, %arg1: memref<28x8x28xf32, #tpu.memory_space<vmem>>, %arg2: memref<5x28x256xf32, #tpu.memory_space<vmem>>, %arg3: memref<1x256xf32, #tpu.memory_space<vmem>>, %arg4: memref<3x128x256xf32, #tpu.memory_space<vmem>>, %arg5: memref<1x256xf32, #tpu.memory_space<vmem>>, %arg6: memref<10x256x500xf32, #tpu.memory_space<vmem>>, %arg7: memref<1x500xf32, #tpu.memory_space<vmem>>, %arg8: memref<500x128xf32, #tpu.memory_space<vmem>>, %arg9: memref<1x128xf32, #tpu.memory_space<vmem>>, %arg10: memref<8x128xf32, #tpu.memory_space<vmem>>) attributes {dimension_semantics = [#tpu.dimension_semantics<parallel>], iteration_bounds = array<i64: 1>, scalar_prefetch = 0 : i64, scratch_operands = 0 : i64, tpu.core_type = #tpu.core_type<tc>, window_params = [{transform_indices = @transform_0, window_bounds = array<i64: 28, 8, 28>}, {pipeline_mode = #tpu.pipeline_mode<synchronous>, transform_indices = @transform_1, window_bounds = array<i64: 5, 28, 256>}, {pipeline_mode = #tpu.pipeline_mode<synchronous>, transform_indices = @transform_2, window_bounds = array<i64: 1, 256>}, {pipeline_mode = #tpu.pipeline_mode<synchronous>, transform_indices = @transform_3, window_bounds = array<i64: 3, 128, 256>}, {pipeline_mode = #tpu.pipeline_mode<synchronous>, transform_indices = @transform_4, window_bounds = array<i64: 1, 256>}, {pipeline_mode = #tpu.pipeline_mode<synchronous>, transform_indices = @transform_5, window_bounds = array<i64: 10, 256, 500>}, {pipeline_mode = #tpu.pipeline_mode<synchronous>, transform_indices = @transform_6, window_bounds = array<i64: 1, 500>}, {pipeline_mode = #tpu.pipeline_mode<synchronous>, transform_indices = @transform_7, window_bounds = array<i64: 500, 128>}, {pipeline_mode = #tpu.pipeline_mode<synchronous>, transform_indices = @transform_8, window_bounds = array<i64: 1, 128>}, {transform_indices = @transform_9, window_bounds = array<i64: 8, 128>}]} {
    %c0 = arith.constant 0 : index
    %c0_0 = arith.constant 0 : index
    %c0_1 = arith.constant 0 : index
    %0 = vector.load %arg1[%c0, %c0_0, %c0_1] : memref<28x8x28xf32, #tpu.memory_space<vmem>>, vector<28x8x28xf32>
    %1 = vector.shape_cast %0 : vector<28x8x28xf32> to vector<224x28xf32>
    %2 = vector.extract_strided_slice %1 {offsets = [0, 0], sizes = [192, 28], strides = [1, 1]} : vector<224x28xf32> to vector<192x28xf32>
    %c0_2 = arith.constant 0 : index
    %c0_3 = arith.constant 0 : index
    %c0_4 = arith.constant 0 : index
    %3 = vector.load %arg2[%c0_2, %c0_3, %c0_4] : memref<5x28x256xf32, #tpu.memory_space<vmem>>, vector<1x28x256xf32>
    %4 = vector.shape_cast %3 : vector<1x28x256xf32> to vector<28x256xf32>
    %cst = arith.constant dense<0.000000e+00> : vector<192x256xf32>
    %5 = tpu.matmul %2, %4, %cst {dimension_numbers = #tpu.dot_dimension_numbers<[1], [0], [0], [1], [0, 0, 1, 1], [], []>} : vector<192x28xf32>, vector<28x256xf32>, vector<192x256xf32> -> vector<192x256xf32>
    %6 = vector.extract_strided_slice %1 {offsets = [8, 0], sizes = [192, 28], strides = [1, 1]} : vector<224x28xf32> to vector<192x28xf32>
    %c1 = arith.constant 1 : index
    %c0_5 = arith.constant 0 : index
    %c0_6 = arith.constant 0 : index
    %7 = vector.load %arg2[%c1, %c0_5, %c0_6] : memref<5x28x256xf32, #tpu.memory_space<vmem>>, vector<1x28x256xf32>
    %8 = vector.shape_cast %7 : vector<1x28x256xf32> to vector<28x256xf32>
    %cst_7 = arith.constant dense<0.000000e+00> : vector<192x256xf32>
    %9 = tpu.matmul %6, %8, %cst_7 {dimension_numbers = #tpu.dot_dimension_numbers<[1], [0], [0], [1], [0, 0, 1, 1], [], []>} : vector<192x28xf32>, vector<28x256xf32>, vector<192x256xf32> -> vector<192x256xf32>
    %10 = arith.addf %5, %9 : vector<192x256xf32>
    %11 = vector.extract_strided_slice %1 {offsets = [16, 0], sizes = [192, 28], strides = [1, 1]} : vector<224x28xf32> to vector<192x28xf32>
    %c2 = arith.constant 2 : index
    %c0_8 = arith.constant 0 : index
    %c0_9 = arith.constant 0 : index
    %12 = vector.load %arg2[%c2, %c0_8, %c0_9] : memref<5x28x256xf32, #tpu.memory_space<vmem>>, vector<1x28x256xf32>
    %13 = vector.shape_cast %12 : vector<1x28x256xf32> to vector<28x256xf32>
    %cst_10 = arith.constant dense<0.000000e+00> : vector<192x256xf32>
    %14 = tpu.matmul %11, %13, %cst_10 {dimension_numbers = #tpu.dot_dimension_numbers<[1], [0], [0], [1], [0, 0, 1, 1], [], []>} : vector<192x28xf32>, vector<28x256xf32>, vector<192x256xf32> -> vector<192x256xf32>
    %15 = arith.addf %10, %14 : vector<192x256xf32>
    %16 = vector.extract_strided_slice %1 {offsets = [24, 0], sizes = [192, 28], strides = [1, 1]} : vector<224x28xf32> to vector<192x28xf32>
    %c3 = arith.constant 3 : index
    %c0_11 = arith.constant 0 : index
    %c0_12 = arith.constant 0 : index
    %17 = vector.load %arg2[%c3, %c0_11, %c0_12] : memref<5x28x256xf32, #tpu.memory_space<vmem>>, vector<1x28x256xf32>
    %18 = vector.shape_cast %17 : vector<1x28x256xf32> to vector<28x256xf32>
    %cst_13 = arith.constant dense<0.000000e+00> : vector<192x256xf32>
    %19 = tpu.matmul %16, %18, %cst_13 {dimension_numbers = #tpu.dot_dimension_numbers<[1], [0], [0], [1], [0, 0, 1, 1], [], []>} : vector<192x28xf32>, vector<28x256xf32>, vector<192x256xf32> -> vector<192x256xf32>
    %20 = arith.addf %15, %19 : vector<192x256xf32>
    %21 = vector.extract_strided_slice %1 {offsets = [32, 0], sizes = [192, 28], strides = [1, 1]} : vector<224x28xf32> to vector<192x28xf32>
    %c4 = arith.constant 4 : index
    %c0_14 = arith.constant 0 : index
    %c0_15 = arith.constant 0 : index
    %22 = vector.load %arg2[%c4, %c0_14, %c0_15] : memref<5x28x256xf32, #tpu.memory_space<vmem>>, vector<1x28x256xf32>
    %23 = vector.shape_cast %22 : vector<1x28x256xf32> to vector<28x256xf32>
    %cst_16 = arith.constant dense<0.000000e+00> : vector<192x256xf32>
    %24 = tpu.matmul %21, %23, %cst_16 {dimension_numbers = #tpu.dot_dimension_numbers<[1], [0], [0], [1], [0, 0, 1, 1], [], []>} : vector<192x28xf32>, vector<28x256xf32>, vector<192x256xf32> -> vector<192x256xf32>
    %25 = arith.addf %20, %24 : vector<192x256xf32>
    %c0_17 = arith.constant 0 : index
    %c0_18 = arith.constant 0 : index
    %26 = vector.load %arg3[%c0_17, %c0_18] : memref<1x256xf32, #tpu.memory_space<vmem>>, vector<1x256xf32>
    %27 = vector.broadcast %26 : vector<1x256xf32> to vector<192x256xf32>
    %28 = arith.addf %25, %27 : vector<192x256xf32>
    %cst_19 = arith.constant 0.000000e+00 : f32
    %29 = vector.broadcast %cst_19 : f32 to vector<192x256xf32>
    %30 = arith.maximumf %28, %29 : vector<192x256xf32>
    %31 = vector.extract_strided_slice %30 {offsets = [0, 0], sizes = [192, 128], strides = [1, 1]} : vector<192x256xf32> to vector<192x128xf32>
    %32 = vector.extract_strided_slice %30 {offsets = [0, 128], sizes = [192, 128], strides = [1, 1]} : vector<192x256xf32> to vector<192x128xf32>
    %33 = arith.maximumf %31, %32 : vector<192x128xf32>
    %34 = vector.shape_cast %33 : vector<192x128xf32> to vector<12x2x8x128xf32>
    %35 = vector.extract_strided_slice %34 {offsets = [0, 0, 0, 0], sizes = [12, 1, 8, 128], strides = [1, 1, 1, 1]} : vector<12x2x8x128xf32> to vector<12x1x8x128xf32>
    %36 = vector.shape_cast %35 : vector<12x1x8x128xf32> to vector<12x8x128xf32>
    %37 = vector.extract_strided_slice %34 {offsets = [0, 1, 0, 0], sizes = [12, 1, 8, 128], strides = [1, 1, 1, 1]} : vector<12x2x8x128xf32> to vector<12x1x8x128xf32>
    %38 = vector.shape_cast %37 : vector<12x1x8x128xf32> to vector<12x8x128xf32>
    %39 = arith.maximumf %36, %38 : vector<12x8x128xf32>
    %40 = vector.shape_cast %39 : vector<12x8x128xf32> to vector<96x128xf32>
    %41 = vector.extract_strided_slice %40 {offsets = [0, 0], sizes = [80, 128], strides = [1, 1]} : vector<96x128xf32> to vector<80x128xf32>
    %c0_20 = arith.constant 0 : index
    %c0_21 = arith.constant 0 : index
    %c0_22 = arith.constant 0 : index
    %42 = vector.load %arg4[%c0_20, %c0_21, %c0_22] : memref<3x128x256xf32, #tpu.memory_space<vmem>>, vector<1x128x256xf32>
    %43 = vector.shape_cast %42 : vector<1x128x256xf32> to vector<128x256xf32>
    %cst_23 = arith.constant dense<0.000000e+00> : vector<80x256xf32>
    %44 = tpu.matmul %41, %43, %cst_23 {dimension_numbers = #tpu.dot_dimension_numbers<[1], [0], [0], [1], [0, 0, 1, 1], [], []>} : vector<80x128xf32>, vector<128x256xf32>, vector<80x256xf32> -> vector<80x256xf32>
    %45 = vector.extract_strided_slice %40 {offsets = [8, 0], sizes = [80, 128], strides = [1, 1]} : vector<96x128xf32> to vector<80x128xf32>
    %c1_24 = arith.constant 1 : index
    %c0_25 = arith.constant 0 : index
    %c0_26 = arith.constant 0 : index
    %46 = vector.load %arg4[%c1_24, %c0_25, %c0_26] : memref<3x128x256xf32, #tpu.memory_space<vmem>>, vector<1x128x256xf32>
    %47 = vector.shape_cast %46 : vector<1x128x256xf32> to vector<128x256xf32>
    %cst_27 = arith.constant dense<0.000000e+00> : vector<80x256xf32>
    %48 = tpu.matmul %45, %47, %cst_27 {dimension_numbers = #tpu.dot_dimension_numbers<[1], [0], [0], [1], [0, 0, 1, 1], [], []>} : vector<80x128xf32>, vector<128x256xf32>, vector<80x256xf32> -> vector<80x256xf32>
    %49 = arith.addf %44, %48 : vector<80x256xf32>
    %50 = vector.extract_strided_slice %40 {offsets = [16, 0], sizes = [80, 128], strides = [1, 1]} : vector<96x128xf32> to vector<80x128xf32>
    %c2_28 = arith.constant 2 : index
    %c0_29 = arith.constant 0 : index
    %c0_30 = arith.constant 0 : index
    %51 = vector.load %arg4[%c2_28, %c0_29, %c0_30] : memref<3x128x256xf32, #tpu.memory_space<vmem>>, vector<1x128x256xf32>
    %52 = vector.shape_cast %51 : vector<1x128x256xf32> to vector<128x256xf32>
    %cst_31 = arith.constant dense<0.000000e+00> : vector<80x256xf32>
    %53 = tpu.matmul %50, %52, %cst_31 {dimension_numbers = #tpu.dot_dimension_numbers<[1], [0], [0], [1], [0, 0, 1, 1], [], []>} : vector<80x128xf32>, vector<128x256xf32>, vector<80x256xf32> -> vector<80x256xf32>
    %54 = arith.addf %49, %53 : vector<80x256xf32>
    %c0_32 = arith.constant 0 : index
    %c0_33 = arith.constant 0 : index
    %55 = vector.load %arg5[%c0_32, %c0_33] : memref<1x256xf32, #tpu.memory_space<vmem>>, vector<1x256xf32>
    %56 = vector.broadcast %55 : vector<1x256xf32> to vector<80x256xf32>
    %57 = arith.addf %54, %56 : vector<80x256xf32>
    %cst_34 = arith.constant 0.000000e+00 : f32
    %58 = vector.broadcast %cst_34 : f32 to vector<80x256xf32>
    %59 = arith.maximumf %57, %58 : vector<80x256xf32>
    %60 = vector.extract_strided_slice %59 {offsets = [0, 0], sizes = [8, 256], strides = [1, 1]} : vector<80x256xf32> to vector<8x256xf32>
    %c0_35 = arith.constant 0 : index
    %c0_36 = arith.constant 0 : index
    %c0_37 = arith.constant 0 : index
    %61 = vector.load %arg6[%c0_35, %c0_36, %c0_37] : memref<10x256x500xf32, #tpu.memory_space<vmem>>, vector<1x256x500xf32>
    %62 = vector.shape_cast %61 : vector<1x256x500xf32> to vector<256x500xf32>
    %cst_38 = arith.constant dense<0.000000e+00> : vector<8x500xf32>
    %63 = tpu.matmul %60, %62, %cst_38 {dimension_numbers = #tpu.dot_dimension_numbers<[1], [0], [0], [1], [0, 0, 1, 1], [], []>} : vector<8x256xf32>, vector<256x500xf32>, vector<8x500xf32> -> vector<8x500xf32>
    %64 = vector.extract_strided_slice %59 {offsets = [8, 0], sizes = [8, 256], strides = [1, 1]} : vector<80x256xf32> to vector<8x256xf32>
    %c1_39 = arith.constant 1 : index
    %c0_40 = arith.constant 0 : index
    %c0_41 = arith.constant 0 : index
    %65 = vector.load %arg6[%c1_39, %c0_40, %c0_41] : memref<10x256x500xf32, #tpu.memory_space<vmem>>, vector<1x256x500xf32>
    %66 = vector.shape_cast %65 : vector<1x256x500xf32> to vector<256x500xf32>
    %cst_42 = arith.constant dense<0.000000e+00> : vector<8x500xf32>
    %67 = tpu.matmul %64, %66, %cst_42 {dimension_numbers = #tpu.dot_dimension_numbers<[1], [0], [0], [1], [0, 0, 1, 1], [], []>} : vector<8x256xf32>, vector<256x500xf32>, vector<8x500xf32> -> vector<8x500xf32>
    %68 = arith.addf %63, %67 : vector<8x500xf32>
    %69 = vector.extract_strided_slice %59 {offsets = [16, 0], sizes = [8, 256], strides = [1, 1]} : vector<80x256xf32> to vector<8x256xf32>
    %c2_43 = arith.constant 2 : index
    %c0_44 = arith.constant 0 : index
    %c0_45 = arith.constant 0 : index
    %70 = vector.load %arg6[%c2_43, %c0_44, %c0_45] : memref<10x256x500xf32, #tpu.memory_space<vmem>>, vector<1x256x500xf32>
    %71 = vector.shape_cast %70 : vector<1x256x500xf32> to vector<256x500xf32>
    %cst_46 = arith.constant dense<0.000000e+00> : vector<8x500xf32>
    %72 = tpu.matmul %69, %71, %cst_46 {dimension_numbers = #tpu.dot_dimension_numbers<[1], [0], [0], [1], [0, 0, 1, 1], [], []>} : vector<8x256xf32>, vector<256x500xf32>, vector<8x500xf32> -> vector<8x500xf32>
    %73 = arith.addf %68, %72 : vector<8x500xf32>
    %74 = vector.extract_strided_slice %59 {offsets = [24, 0], sizes = [8, 256], strides = [1, 1]} : vector<80x256xf32> to vector<8x256xf32>
    %c3_47 = arith.constant 3 : index
    %c0_48 = arith.constant 0 : index
    %c0_49 = arith.constant 0 : index
    %75 = vector.load %arg6[%c3_47, %c0_48, %c0_49] : memref<10x256x500xf32, #tpu.memory_space<vmem>>, vector<1x256x500xf32>
    %76 = vector.shape_cast %75 : vector<1x256x500xf32> to vector<256x500xf32>
    %cst_50 = arith.constant dense<0.000000e+00> : vector<8x500xf32>
    %77 = tpu.matmul %74, %76, %cst_50 {dimension_numbers = #tpu.dot_dimension_numbers<[1], [0], [0], [1], [0, 0, 1, 1], [], []>} : vector<8x256xf32>, vector<256x500xf32>, vector<8x500xf32> -> vector<8x500xf32>
    %78 = arith.addf %73, %77 : vector<8x500xf32>
    %79 = vector.extract_strided_slice %59 {offsets = [32, 0], sizes = [8, 256], strides = [1, 1]} : vector<80x256xf32> to vector<8x256xf32>
    %c4_51 = arith.constant 4 : index
    %c0_52 = arith.constant 0 : index
    %c0_53 = arith.constant 0 : index
    %80 = vector.load %arg6[%c4_51, %c0_52, %c0_53] : memref<10x256x500xf32, #tpu.memory_space<vmem>>, vector<1x256x500xf32>
    %81 = vector.shape_cast %80 : vector<1x256x500xf32> to vector<256x500xf32>
    %cst_54 = arith.constant dense<0.000000e+00> : vector<8x500xf32>
    %82 = tpu.matmul %79, %81, %cst_54 {dimension_numbers = #tpu.dot_dimension_numbers<[1], [0], [0], [1], [0, 0, 1, 1], [], []>} : vector<8x256xf32>, vector<256x500xf32>, vector<8x500xf32> -> vector<8x500xf32>
    %83 = arith.addf %78, %82 : vector<8x500xf32>
    %84 = vector.extract_strided_slice %59 {offsets = [40, 0], sizes = [8, 256], strides = [1, 1]} : vector<80x256xf32> to vector<8x256xf32>
    %c5 = arith.constant 5 : index
    %c0_55 = arith.constant 0 : index
    %c0_56 = arith.constant 0 : index
    %85 = vector.load %arg6[%c5, %c0_55, %c0_56] : memref<10x256x500xf32, #tpu.memory_space<vmem>>, vector<1x256x500xf32>
    %86 = vector.shape_cast %85 : vector<1x256x500xf32> to vector<256x500xf32>
    %cst_57 = arith.constant dense<0.000000e+00> : vector<8x500xf32>
    %87 = tpu.matmul %84, %86, %cst_57 {dimension_numbers = #tpu.dot_dimension_numbers<[1], [0], [0], [1], [0, 0, 1, 1], [], []>} : vector<8x256xf32>, vector<256x500xf32>, vector<8x500xf32> -> vector<8x500xf32>
    %88 = arith.addf %83, %87 : vector<8x500xf32>
    %89 = vector.extract_strided_slice %59 {offsets = [48, 0], sizes = [8, 256], strides = [1, 1]} : vector<80x256xf32> to vector<8x256xf32>
    %c6 = arith.constant 6 : index
    %c0_58 = arith.constant 0 : index
    %c0_59 = arith.constant 0 : index
    %90 = vector.load %arg6[%c6, %c0_58, %c0_59] : memref<10x256x500xf32, #tpu.memory_space<vmem>>, vector<1x256x500xf32>
    %91 = vector.shape_cast %90 : vector<1x256x500xf32> to vector<256x500xf32>
    %cst_60 = arith.constant dense<0.000000e+00> : vector<8x500xf32>
    %92 = tpu.matmul %89, %91, %cst_60 {dimension_numbers = #tpu.dot_dimension_numbers<[1], [0], [0], [1], [0, 0, 1, 1], [], []>} : vector<8x256xf32>, vector<256x500xf32>, vector<8x500xf32> -> vector<8x500xf32>
    %93 = arith.addf %88, %92 : vector<8x500xf32>
    %94 = vector.extract_strided_slice %59 {offsets = [56, 0], sizes = [8, 256], strides = [1, 1]} : vector<80x256xf32> to vector<8x256xf32>
    %c7 = arith.constant 7 : index
    %c0_61 = arith.constant 0 : index
    %c0_62 = arith.constant 0 : index
    %95 = vector.load %arg6[%c7, %c0_61, %c0_62] : memref<10x256x500xf32, #tpu.memory_space<vmem>>, vector<1x256x500xf32>
    %96 = vector.shape_cast %95 : vector<1x256x500xf32> to vector<256x500xf32>
    %cst_63 = arith.constant dense<0.000000e+00> : vector<8x500xf32>
    %97 = tpu.matmul %94, %96, %cst_63 {dimension_numbers = #tpu.dot_dimension_numbers<[1], [0], [0], [1], [0, 0, 1, 1], [], []>} : vector<8x256xf32>, vector<256x500xf32>, vector<8x500xf32> -> vector<8x500xf32>
    %98 = arith.addf %93, %97 : vector<8x500xf32>
    %99 = vector.extract_strided_slice %59 {offsets = [64, 0], sizes = [8, 256], strides = [1, 1]} : vector<80x256xf32> to vector<8x256xf32>
    %c8 = arith.constant 8 : index
    %c0_64 = arith.constant 0 : index
    %c0_65 = arith.constant 0 : index
    %100 = vector.load %arg6[%c8, %c0_64, %c0_65] : memref<10x256x500xf32, #tpu.memory_space<vmem>>, vector<1x256x500xf32>
    %101 = vector.shape_cast %100 : vector<1x256x500xf32> to vector<256x500xf32>
    %cst_66 = arith.constant dense<0.000000e+00> : vector<8x500xf32>
    %102 = tpu.matmul %99, %101, %cst_66 {dimension_numbers = #tpu.dot_dimension_numbers<[1], [0], [0], [1], [0, 0, 1, 1], [], []>} : vector<8x256xf32>, vector<256x500xf32>, vector<8x500xf32> -> vector<8x500xf32>
    %103 = arith.addf %98, %102 : vector<8x500xf32>
    %104 = vector.extract_strided_slice %59 {offsets = [72, 0], sizes = [8, 256], strides = [1, 1]} : vector<80x256xf32> to vector<8x256xf32>
    %c9 = arith.constant 9 : index
    %c0_67 = arith.constant 0 : index
    %c0_68 = arith.constant 0 : index
    %105 = vector.load %arg6[%c9, %c0_67, %c0_68] : memref<10x256x500xf32, #tpu.memory_space<vmem>>, vector<1x256x500xf32>
    %106 = vector.shape_cast %105 : vector<1x256x500xf32> to vector<256x500xf32>
    %cst_69 = arith.constant dense<0.000000e+00> : vector<8x500xf32>
    %107 = tpu.matmul %104, %106, %cst_69 {dimension_numbers = #tpu.dot_dimension_numbers<[1], [0], [0], [1], [0, 0, 1, 1], [], []>} : vector<8x256xf32>, vector<256x500xf32>, vector<8x500xf32> -> vector<8x500xf32>
    %108 = arith.addf %103, %107 : vector<8x500xf32>
    %c0_70 = arith.constant 0 : index
    %c0_71 = arith.constant 0 : index
    %109 = vector.load %arg7[%c0_70, %c0_71] : memref<1x500xf32, #tpu.memory_space<vmem>>, vector<1x500xf32>
    %110 = vector.broadcast %109 : vector<1x500xf32> to vector<8x500xf32>
    %111 = arith.addf %108, %110 : vector<8x500xf32>
    %cst_72 = arith.constant 0.000000e+00 : f32
    %112 = vector.broadcast %cst_72 : f32 to vector<8x500xf32>
    %113 = arith.maximumf %111, %112 : vector<8x500xf32>
    %c0_73 = arith.constant 0 : index
    %c0_74 = arith.constant 0 : index
    %114 = vector.load %arg8[%c0_73, %c0_74] : memref<500x128xf32, #tpu.memory_space<vmem>>, vector<500x128xf32>
    %cst_75 = arith.constant dense<0.000000e+00> : vector<8x128xf32>
    %115 = tpu.matmul %113, %114, %cst_75 {dimension_numbers = #tpu.dot_dimension_numbers<[1], [0], [0], [1], [0, 0, 1, 1], [], []>} : vector<8x500xf32>, vector<500x128xf32>, vector<8x128xf32> -> vector<8x128xf32>
    %c0_76 = arith.constant 0 : index
    %c0_77 = arith.constant 0 : index
    %116 = vector.load %arg9[%c0_76, %c0_77] : memref<1x128xf32, #tpu.memory_space<vmem>>, vector<1x128xf32>
    %117 = vector.broadcast %116 : vector<1x128xf32> to vector<8x128xf32>
    %118 = arith.addf %115, %117 : vector<8x128xf32>
    %cst_78 = arith.constant dense<0xFF800000> : vector<8xf32>
    %119 = vector.multi_reduction <maximumf>, %118, %cst_78 [1] : vector<8x128xf32> to vector<8xf32>
    %120 = vector.shape_cast %119 : vector<8xf32> to vector<8x1xf32>
    %121 = vector.broadcast %120 : vector<8x1xf32> to vector<8x128xf32>
    %122 = arith.subf %118, %121 : vector<8x128xf32>
    %123 = math.exp %122 : vector<8x128xf32>
    %cst_79 = arith.constant dense<0.000000e+00> : vector<8xf32>
    %124 = vector.multi_reduction <add>, %123, %cst_79 [1] : vector<8x128xf32> to vector<8xf32>
    %125 = vector.shape_cast %124 : vector<8xf32> to vector<8x1xf32>
    %126 = math.log %125 : vector<8x1xf32>
    %127 = vector.broadcast %126 : vector<8x1xf32> to vector<8x128xf32>
    %128 = arith.subf %122, %127 : vector<8x128xf32>
    %c0_80 = arith.constant 0 : index
    %c0_81 = arith.constant 0 : index
    %129 = vector.load %arg10[%c0_80, %c0_81] : memref<8x128xf32, #tpu.memory_space<vmem>>, vector<8x128xf32>
    tpu.vector_store %arg10[%c0_80, %c0_81], %128 {strides = array<i32>} : memref<8x128xf32, #tpu.memory_space<vmem>>, vector<8x128xf32>,
    return
  }
  func.func @transform_0(%arg0: i32) -> (i32, i32, i32) {
    %c0_i32 = arith.constant 0 : i32
    %c0_i32_0 = arith.constant 0 : i32
    %c0_i32_1 = arith.constant 0 : i32
    return %c0_i32, %arg0, %c0_i32_0 : i32, i32, i32
  }
  func.func @transform_1(%arg0: i32) -> (i32, i32, i32) {
    %c0_i32 = arith.constant 0 : i32
    %c0_i32_0 = arith.constant 0 : i32
    %c0_i32_1 = arith.constant 0 : i32
    %c0_i32_2 = arith.constant 0 : i32
    return %c0_i32, %c0_i32_0, %c0_i32_1 : i32, i32, i32
  }
  func.func @transform_2(%arg0: i32) -> (i32, i32) {
    %c0_i32 = arith.constant 0 : i32
    %c0_i32_0 = arith.constant 0 : i32
    %c0_i32_1 = arith.constant 0 : i32
    return %c0_i32, %c0_i32_0 : i32, i32
  }
  func.func @transform_3(%arg0: i32) -> (i32, i32, i32) {
    %c0_i32 = arith.constant 0 : i32
    %c0_i32_0 = arith.constant 0 : i32
    %c0_i32_1 = arith.constant 0 : i32
    %c0_i32_2 = arith.constant 0 : i32
    return %c0_i32, %c0_i32_0, %c0_i32_1 : i32, i32, i32
  }
  func.func @transform_4(%arg0: i32) -> (i32, i32) {
    %c0_i32 = arith.constant 0 : i32
    %c0_i32_0 = arith.constant 0 : i32
    %c0_i32_1 = arith.constant 0 : i32
    return %c0_i32, %c0_i32_0 : i32, i32
  }
  func.func @transform_5(%arg0: i32) -> (i32, i32, i32) {
    %c0_i32 = arith.constant 0 : i32
    %c0_i32_0 = arith.constant 0 : i32
    %c0_i32_1 = arith.constant 0 : i32
    %c0_i32_2 = arith.constant 0 : i32
    return %c0_i32, %c0_i32_0, %c0_i32_1 : i32, i32, i32
  }
  func.func @transform_6(%arg0: i32) -> (i32, i32) {
    %c0_i32 = arith.constant 0 : i32
    %c0_i32_0 = arith.constant 0 : i32
    %c0_i32_1 = arith.constant 0 : i32
    return %c0_i32, %c0_i32_0 : i32, i32
  }
  func.func @transform_7(%arg0: i32) -> (i32, i32) {
    %c0_i32 = arith.constant 0 : i32
    %c0_i32_0 = arith.constant 0 : i32
    %c0_i32_1 = arith.constant 0 : i32
    return %c0_i32, %c0_i32_0 : i32, i32
  }
  func.func @transform_8(%arg0: i32) -> (i32, i32) {
    %c0_i32 = arith.constant 0 : i32
    %c0_i32_0 = arith.constant 0 : i32
    %c0_i32_1 = arith.constant 0 : i32
    return %c0_i32, %c0_i32_0 : i32, i32
  }
  func.func @transform_9(%arg0: i32) -> (i32, i32) {
    %c0_i32 = arith.constant 0 : i32
    %c0_i32_0 = arith.constant 0 : i32
    return %arg0, %c0_i32 : i32, i32
  }
}

</mosaic_0001>

<llo_original>
// kernel: convnet_forward.1
$region0: #{convnet_forward.1}
  #allocation0 [shape = 'u32[]', space=smem, size = 0x4, offset = 0x4, fixed_abs, tag = 'smem constant byte address 0x4 - core index']
  #allocation1 [shape = 'u32[144,128]{1,0:T(1,128)}', space=vmem, size = 0x12000, scoped, tag = 'internal scratch']
  %s0 = inlined_call_operand.vmem [shape: f32[28,8,28], index: 0, kind: input, shape index: {}]
  %s1 = inlined_call_operand.vmem [shape: f32[5,28,256], index: 1, kind: input, shape index: {}]
  %s2 = inlined_call_operand.vmem [shape: f32[1,256], index: 2, kind: input, shape index: {}]
  %s3 = inlined_call_operand.vmem [shape: f32[3,128,256], index: 3, kind: input, shape index: {}]
  %s4 = inlined_call_operand.vmem [shape: f32[1,256], index: 4, kind: input, shape index: {}]
  %s5 = inlined_call_operand.vmem [shape: f32[10,256,500], index: 5, kind: input, shape index: {}]
  %s6 = inlined_call_operand.vmem [shape: f32[1,500], index: 6, kind: input, shape index: {}]
  %s7 = inlined_call_operand.vmem [shape: f32[500,128], index: 7, kind: input, shape index: {}]
  %s8 = inlined_call_operand.vmem [shape: f32[1,128], index: 8, kind: input, shape index: {}]
  %s9 = inlined_call_operand.vmem [shape: f32[8,128], index: 9, kind: output, shape index: {}]
  %s10 = sld [smem:[#allocation0]]
  $region46: #{convnet_forward.1} parent=0
    _
  %s12 = ssub.s32 1, %s10
  %s13 = scalar_select 0, %s12, %s10
  // Predicated region
  $region2: #{convnet_forward.1} parent=0 // pred_check
    _
  $region3: #{convnet_forward.1} parent=0 // pred_check_branch
    %15 = sbr.rel (0) target = $region5
  $region4: #{convnet_forward.1} parent=0 // pred_region
    _
  $region5: #{convnet_forward.1} parent=0 // pred_fallthru
    _
  // Predicated region
  $region6: #{convnet_forward.1} parent=0 // pred_check
    _
  $region7: #{convnet_forward.1} parent=0 // pred_check_branch
    %17 = sbr.rel (0) target = $region9
  $region8: #{convnet_forward.1} parent=0 // pred_region
    _
  $region9: #{convnet_forward.1} parent=0 // pred_fallthru
    _
  // Predicated region
  $region10: #{convnet_forward.1} parent=0 // pred_check
    _
  $region11: #{convnet_forward.1} parent=0 // pred_check_branch
    %19 = sbr.rel (0) target = $region13
  $region12: #{convnet_forward.1} parent=0 // pred_region
    _
  $region13: #{convnet_forward.1} parent=0 // pred_fallthru
    _
  // Predicated region
  $region14: #{convnet_forward.1} parent=0 // pred_check
    _
  $region15: #{convnet_forward.1} parent=0 // pred_check_branch
    %21 = sbr.rel (0) target = $region17
  $region16: #{convnet_forward.1} parent=0 // pred_region
    _
  $region17: #{convnet_forward.1} parent=0 // pred_fallthru
    _
  // Predicated region
  $region18: #{convnet_forward.1} parent=0 // pred_check
    _
  $region19: #{convnet_forward.1} parent=0 // pred_check_branch
    %23 = sbr.rel (0) target = $region21
  $region20: #{convnet_forward.1} parent=0 // pred_region
    _
  $region21: #{convnet_forward.1} parent=0 // pred_fallthru
    _
  // Predicated region
  $region22: #{convnet_forward.1} parent=0 // pred_check
    _
  $region23: #{convnet_forward.1} parent=0 // pred_check_branch
    %25 = sbr.rel (0) target = $region25
  $region24: #{convnet_forward.1} parent=0 // pred_region
    _
  $region25: #{convnet_forward.1} parent=0 // pred_fallthru
    _
  // Predicated region
  $region26: #{convnet_forward.1} parent=0 // pred_check
    _
  $region27: #{convnet_forward.1} parent=0 // pred_check_branch
    %27 = sbr.rel (0) target = $region29
  $region28: #{convnet_forward.1} parent=0 // pred_region
    _
  $region29: #{convnet_forward.1} parent=0 // pred_fallthru
    _
  // Predicated region
  $region30: #{convnet_forward.1} parent=0 // pred_check
    _
  $region31: #{convnet_forward.1} parent=0 // pred_check_branch
    %29 = sbr.rel (0) target = $region33
  $region32: #{convnet_forward.1} parent=0 // pred_region
    _
  $region33: #{convnet_forward.1} parent=0 // pred_fallthru
    _
  // Predicated region
  $region34: #{convnet_forward.1} parent=0 // pred_check
    _
  $region35: #{convnet_forward.1} parent=0 // pred_check_branch
    %31 = sbr.rel (0) target = $region37
  $region36: #{convnet_forward.1} parent=0 // pred_region
    _
  $region37: #{convnet_forward.1} parent=0 // pred_fallthru
    _
  %v32 = vld [vmem:[%s0] sm:$0xff]
  %v33 = vld [vmem:[%s0 + $0x8] sm:$0xff]
  %v34 = vld [vmem:[%s0 + $0x10] sm:$0xff]
  %v35 = vld [vmem:[%s0 + $0x18] sm:$0xff]
  %v36 = vld [vmem:[%s0 + $0x20] sm:$0xff]
  %v37 = vld [vmem:[%s0 + $0x28] sm:$0xff]
  %v38 = vld [vmem:[%s0 + $0x30] sm:$0xff]
  %v39 = vld [vmem:[%s0 + $0x38] sm:$0xff]
  %v40 = vld [vmem:[%s0 + $0x40] sm:$0xff]
  %v41 = vld [vmem:[%s0 + $0x48] sm:$0xff]
  %v42 = vld [vmem:[%s0 + $0x50] sm:$0xff]
  %v43 = vld [vmem:[%s0 + $0x58] sm:$0xff]
  %v44 = vld [vmem:[%s0 + $0x60] sm:$0xff]
  %v45 = vld [vmem:[%s0 + $0x68] sm:$0xff]
  %v46 = vld [vmem:[%s0 + $0x70] sm:$0xff]
  %v47 = vld [vmem:[%s0 + $0x78] sm:$0xff]
  %v48 = vld [vmem:[%s0 + $0x80] sm:$0xff]
  %v49 = vld [vmem:[%s0 + $0x88] sm:$0xff]
  %v50 = vld [vmem:[%s0 + $0x90] sm:$0xff]
  %v51 = vld [vmem:[%s0 + $0x98] sm:$0xff]
  %v52 = vld [vmem:[%s0 + $0xa0] sm:$0xff]
  %v53 = vld [vmem:[%s0 + $0xa8] sm:$0xff]
  %v54 = vld [vmem:[%s0 + $0xb0] sm:$0xff]
  %v55 = vld [vmem:[%s0 + $0xb8] sm:$0xff]
  %v56 = vld [vmem:[%s0 + $0xc0] sm:$0xff]
  %v57 = vld [vmem:[%s0 + $0xc8] sm:$0xff]
  %v58 = vld [vmem:[%s0 + $0xd0] sm:$0xff]
  %v59 = vld [vmem:[%s0 + $0xd8] sm:$0xff]
  %v60 = vld [vmem:[%s1] sm:$0xff]
  %v61 = vld [vmem:[%s1 + $0x8] sm:$0xff]
  %v62 = vld [vmem:[%s1 + $0x10] sm:$0xff]
  %v63 = vld [vmem:[%s1 + $0x18] sm:$0xff]
  %v64 = vld [vmem:[%s1 + $0x20] sm:$0xff]
  %v65 = vld [vmem:[%s1 + $0x28] sm:$0xff]
  %v66 = vld [vmem:[%s1 + $0x30] sm:$0xf]
  %v67 = vld [vmem:[%s1 + $0x38] sm:$0xf]
  %s68 = scalar_lea.vmem %s1, 64
  %v69 = vld [vmem:[%s68] sm:$0xff]
  %v70 = vld [vmem:[%s68 + $0x8] sm:$0xff]
  %v71 = vld [vmem:[%s68 + $0x10] sm:$0xff]
  %v72 = vld [vmem:[%s68 + $0x18] sm:$0xff]
  %v73 = vld [vmem:[%s68 + $0x20] sm:$0xff]
  %v74 = vld [vmem:[%s68 + $0x28] sm:$0xff]
  %v75 = vld [vmem:[%s68 + $0x30] sm:$0xf]
  %v76 = vld [vmem:[%s68 + $0x38] sm:$0xf]
  %vm77 = vcmask 228352
  %v79 = vsel %vm77, %v33, 0
  %v82 = vsel %vm77, %v34, 0
  %v85 = vsel %vm77, %v35, 0
  %v88 = vsel %vm77, %v36, 0
  %v91 = vsel %vm77, %v37, 0
  %v94 = vsel %vm77, %v38, 0
  %v97 = vsel %vm77, %v39, 0
  %v100 = vsel %vm77, %v40, 0
  %v103 = vsel %vm77, %v41, 0
  %v106 = vsel %vm77, %v42, 0
  %v109 = vsel %vm77, %v43, 0
  %v112 = vsel %vm77, %v44, 0
  %v115 = vsel %vm77, %v45, 0
  %v118 = vsel %vm77, %v46, 0
  %v121 = vsel %vm77, %v47, 0
  %v124 = vsel %vm77, %v48, 0
  %v127 = vsel %vm77, %v49, 0
  %v130 = vsel %vm77, %v50, 0
  %v133 = vsel %vm77, %v51, 0
  %v136 = vsel %vm77, %v52, 0
  %v139 = vsel %vm77, %v53, 0
  %v142 = vsel %vm77, %v54, 0
  %v145 = vsel %vm77, %v55, 0
  %v148 = vsel %vm77, %v56, 0
  %vm150 = vcmask 1043456
  %v152 = vsel %vm150, %v75, 0
  %v155 = vsel %vm150, %v76, 0
  %157 = vmatprep.subr.mxu0 %v70
  %158 = vmatpush1.msra.mxu0 %v69
  %159 = vmatprep.subr.mxu0 %v72
  %160 = vmatpush1.msra.mxu0 %v71
  %161 = vmatprep.subr.mxu0 %v74
  %162 = vmatpush1.msra.mxu0 %v73
  %163 = vmatprep.subr.mxu0 %v155
  %164 = vmatpush1.msra.mxu0 %v152
  %165 = vmatprep.subr.mxu0 0.0
  %166 = vmatpush1.msra.mxu0 0.0
  %167 = vmatprep.subr.mxu0 0.0
  %168 = vmatpush1.msra.mxu0 0.0
  %169 = vmatprep.subr.mxu0 0.0
  %170 = vmatpush1.msra.mxu0 0.0
  %171 = vmatprep.subr.mxu0 0.0
  %172 = vmatpush1.msra.mxu0 0.0
  %173 = vmatprep.subr.mxu0 0.0
  %174 = vmatpush1.msra.mxu0 0.0
  %175 = vmatprep.subr.mxu0 0.0
  %176 = vmatpush1.msra.mxu0 0.0
  %177 = vmatprep.subr.mxu0 0.0
  %178 = vmatpush1.msra.mxu0 0.0
  %179 = vmatprep.subr.mxu0 0.0
  %180 = vmatpush1.msra.mxu0 0.0
  %181 = vmatprep.subr.mxu0 0.0
  %182 = vmatpush1.msra.mxu0 0.0
  %183 = vmatprep.subr.mxu0 0.0
  %184 = vmatpush1.msra.mxu0 0.0
  %185 = vmatprep.subr.mxu0 0.0
  %186 = vmatpush1.msra.mxu0 0.0
  %187 = vmatprep.subr.mxu0 0.0
  %188 = vmatpush1.msra.mxu0 0.0
  %189 = vmatprep.subr.mxu0 0.0
  %190 = vmatpush1.msra.mxu0 0.0
  %191 = vmatprep.subr.mxu0 0.0
  %192 = vmatpush1.msra.mxu0 0.0
  %193 = vmatprep.subr.mxu0 0.0
  %194 = vmatpush1.msra.mxu0 0.0
  %195 = vmatprep.subr.mxu0 0.0
  %196 = vmatpush1.msra.mxu0 0.0
  %197 = vmatprep.subr.mxu0 0.0
  %198 = vmatpush1.msra.mxu0 0.0
  %199 = vmatprep.subr.mxu0 0.0
  %200 = vmatpush1.msra.mxu0 0.0
  %201 = vmatprep.subr.mxu0 0.0
  %202 = vmatpush1.msra.mxu0 0.0
  %203 = vmatprep.subr.mxu0 0.0
  %204 = vmatpush1.msra.mxu0 0.0
  %205 = vmatprep.subr.mxu0 0.0
  %206 = vmatpush1.msra.mxu0 0.0
  %207 = vmatprep.subr.mxu0 0.0
  %208 = vmatpush1.msra.mxu0 0.0
  %209 = vmatprep.subr.mxu0 0.0
  %210 = vmatpush1.msra.mxu0 0.0
  %211 = vmatprep.subr.mxu0 0.0
  %212 = vmatpush1.msra.mxu0 0.0
  %213 = vmatprep.subr.mxu0 0.0
  %214 = vmatpush1.msra.mxu0 0.0
  %215 = vmatprep.subr.mxu0 0.0
  %216 = vmatpush1.msra.mxu0 0.0
  %217 = vmatprep.subr.mxu0 0.0
  %218 = vmatpush1.msra.mxu0 0.0
  %219 = vmatprep.subr.mxu0 0.0
  %220 = vmatpush1.msra.mxu0 0.0
  %221 = vmatprep.mubr.f32.mxu0 0.0
  %222 = vmatmul.mubr.f32.gmra.mrb[0].mxu0 %v79
  %v223 = vpop.f32.mrb[0].mxu0
  %v224 = vadd.f32 0.0, %v223
  %v225 = vpop.f32.mrb[0].mxu0
  %v226 = vadd.f32 0.0, %v225
  %227 = vmatprep.mubr.f32.mxu0 0.0
  %228 = vmatmul.mubr.f32.gmra.mrb[0].mxu0 %v82
  %v229 = vpop.f32.mrb[0].mxu0
  %v230 = vadd.f32 0.0, %v229
  %v231 = vpop.f32.mrb[0].mxu0
  %v232 = vadd.f32 0.0, %v231
  %233 = vmatprep.mubr.f32.mxu0 0.0
  %234 = vmatmul.mubr.f32.gmra.mrb[0].mxu0 %v85
  %v235 = vpop.f32.mrb[0].mxu0
  %v236 = vadd.f32 0.0, %v235
  %v237 = vpop.f32.mrb[0].mxu0
  %v238 = vadd.f32 0.0, %v237
  %239 = vmatprep.mubr.f32.mxu0 0.0
  %240 = vmatmul.mubr.f32.gmra.mrb[0].mxu0 %v88
  %v241 = vpop.f32.mrb[0].mxu0
  %v242 = vadd.f32 0.0, %v241
  %v243 = vpop.f32.mrb[0].mxu0
  %v244 = vadd.f32 0.0, %v243
  %245 = vmatprep.mubr.f32.mxu0 0.0
  %246 = vmatmul.mubr.f32.gmra.mrb[0].mxu0 %v91
  %v247 = vpop.f32.mrb[0].mxu0
  %v248 = vadd.f32 0.0, %v247
  %v249 = vpop.f32.mrb[0].mxu0
  %v250 = vadd.f32 0.0, %v249
  %251 = vmatprep.mubr.f32.mxu0 0.0
  %252 = vmatmul.mubr.f32.gmra.mrb[0].mxu0 %v94
  %v253 = vpop.f32.mrb[0].mxu0
  %v254 = vadd.f32 0.0, %v253
  %v255 = vpop.f32.mrb[0].mxu0
  %v256 = vadd.f32 0.0, %v255
  %257 = vmatprep.mubr.f32.mxu0 0.0
  %258 = vmatmul.mubr.f32.gmra.mrb[0].mxu0 %v97
  %v259 = vpop.f32.mrb[0].mxu0
  %v260 = vadd.f32 0.0, %v259
  %v261 = vpop.f32.mrb[0].mxu0
  %v262 = vadd.f32 0.0, %v261
  %263 = vmatprep.mubr.f32.mxu0 0.0
  %264 = vmatmul.mubr.f32.gmra.mrb[0].mxu0 %v100
  %v265 = vpop.f32.mrb[0].mxu0
  %v266 = vadd.f32 0.0, %v265
  %v267 = vpop.f32.mrb[0].mxu0
  %v268 = vadd.f32 0.0, %v267
  %269 = vmatprep.mubr.f32.mxu0 0.0
  %270 = vmatmul.mubr.f32.gmra.mrb[0].mxu0 %v103
  %v271 = vpop.f32.mrb[0].mxu0
  %v272 = vadd.f32 0.0, %v271
  %v273 = vpop.f32.mrb[0].mxu0
  %v274 = vadd.f32 0.0, %v273
  %275 = vmatprep.mubr.f32.mxu0 0.0
  %276 = vmatmul.mubr.f32.gmra.mrb[0].mxu0 %v106
  %v277 = vpop.f32.mrb[0].mxu0
  %v278 = vadd.f32 0.0, %v277
  %v279 = vpop.f32.mrb[0].mxu0
  %v280 = vadd.f32 0.0, %v279
  %281 = vmatprep.mubr.f32.mxu0 0.0
  %282 = vmatmul.mubr.f32.gmra.mrb[0].mxu0 %v109
  %v283 = vpop.f32.mrb[0].mxu0
  %v284 = vadd.f32 0.0, %v283
  %v285 = vpop.f32.mrb[0].mxu0
  %v286 = vadd.f32 0.0, %v285
  %287 = vmatprep.mubr.f32.mxu0 0.0
  %288 = vmatmul.mubr.f32.gmra.mrb[0].mxu0 %v112
  %v289 = vpop.f32.mrb[0].mxu0
  %v290 = vadd.f32 0.0, %v289
  %v291 = vpop.f32.mrb[0].mxu0
  %v292 = vadd.f32 0.0, %v291
  %293 = vmatprep.mubr.f32.mxu0 0.0
  %294 = vmatmul.mubr.f32.gmra.mrb[0].mxu0 %v115
  %v295 = vpop.f32.mrb[0].mxu0
  %v296 = vadd.f32 0.0, %v295
  %v297 = vpop.f32.mrb[0].mxu0
  %v298 = vadd.f32 0.0, %v297
  %299 = vmatprep.mubr.f32.mxu0 0.0
  %300 = vmatmul.mubr.f32.gmra.mrb[0].mxu0 %v118
  %v301 = vpop.f32.mrb[0].mxu0
  %v302 = vadd.f32 0.0, %v301
  %v303 = vpop.f32.mrb[0].mxu0
  %v304 = vadd.f32 0.0, %v303
  %305 = vmatprep.mubr.f32.mxu0 0.0
  %306 = vmatmul.mubr.f32.gmra.mrb[0].mxu0 %v121
  %v307 = vpop.f32.mrb[0].mxu0
  %v308 = vadd.f32 0.0, %v307
  %v309 = vpop.f32.mrb[0].mxu0
  %v310 = vadd.f32 0.0, %v309
  %311 = vmatprep.mubr.f32.mxu0 0.0
  %312 = vmatmul.mubr.f32.gmra.mrb[0].mxu0 %v124
  %v313 = vpop.f32.mrb[0].mxu0
  %v314 = vadd.f32 0.0, %v313
  %v315 = vpop.f32.mrb[0].mxu0
  %v316 = vadd.f32 0.0, %v315
  %317 = vmatprep.mubr.f32.mxu0 0.0
  %318 = vmatmul.mubr.f32.gmra.mrb[0].mxu0 %v127
  %v319 = vpop.f32.mrb[0].mxu0
  %v320 = vadd.f32 0.0, %v319
  %v321 = vpop.f32.mrb[0].mxu0
  %v322 = vadd.f32 0.0, %v321
  %323 = vmatprep.mubr.f32.mxu0 0.0
  %324 = vmatmul.mubr.f32.gmra.mrb[0].mxu0 %v130
  %v325 = vpop.f32.mrb[0].mxu0
  %v326 = vadd.f32 0.0, %v325
  %v327 = vpop.f32.mrb[0].mxu0
  %v328 = vadd.f32 0.0, %v327
  %329 = vmatprep.mubr.f32.mxu0 0.0
  %330 = vmatmul.mubr.f32.gmra.mrb[0].mxu0 %v133
  %v331 = vpop.f32.mrb[0].mxu0
  %v332 = vadd.f32 0.0, %v331
  %v333 = vpop.f32.mrb[0].mxu0
  %v334 = vadd.f32 0.0, %v333
  %335 = vmatprep.mubr.f32.mxu0 0.0
  %336 = vmatmul.mubr.f32.gmra.mrb[0].mxu0 %v136
  %v337 = vpop.f32.mrb[0].mxu0
  %v338 = vadd.f32 0.0, %v337
  %v339 = vpop.f32.mrb[0].mxu0
  %v340 = vadd.f32 0.0, %v339
  %341 = vmatprep.mubr.f32.mxu0 0.0
  %342 = vmatmul.mubr.f32.gmra.mrb[0].mxu0 %v139
  %v343 = vpop.f32.mrb[0].mxu0
  %v344 = vadd.f32 0.0, %v343
  %v345 = vpop.f32.mrb[0].mxu0
  %v346 = vadd.f32 0.0, %v345
  %347 = vmatprep.mubr.f32.mxu0 0.0
  %348 = vmatmul.mubr.f32.gmra.mrb[0].mxu0 %v142
  %v349 = vpop.f32.mrb[0].mxu0
  %v350 = vadd.f32 0.0, %v349
  %v351 = vpop.f32.mrb[0].mxu0
  %v352 = vadd.f32 0.0, %v351
  %353 = vmatprep.mubr.f32.mxu0 0.0
  %354 = vmatmul.mubr.f32.gmra.mrb[0].mxu0 %v145
  %v355 = vpop.f32.mrb[0].mxu0
  %v356 = vadd.f32 0.0, %v355
  %v357 = vpop.f32.mrb[0].mxu0
  %v358 = vadd.f32 0.0, %v357
  %359 = vmatprep.mubr.f32.mxu0 0.0
  %360 = vmatmul.mubr.f32.gmra.mrb[0].mxu0 %v148
  %v361 = vpop.f32.mrb[0].mxu0
  %v362 = vadd.f32 0.0, %v361
  %v363 = vpop.f32.mrb[0].mxu0
  %v364 = vadd.f32 0.0, %v363
  %365 = vdwg.mxu0
  %v367 = vsel %vm77, %v32, 0
  %v370 = vsel %vm150, %v66, 0
  %v373 = vsel %vm150, %v67, 0
  %375 = vmatprep.subr.mxu0 %v61
  %376 = vmatpush1.msra.mxu0 %v60
  %377 = vmatprep.subr.mxu0 %v63
  %378 = vmatpush1.msra.mxu0 %v62
  %379 = vmatprep.subr.mxu0 %v65
  %380 = vmatpush1.msra.mxu0 %v64
  %381 = vmatprep.subr.mxu0 %v373
  %382 = vmatpush1.msra.mxu0 %v370
  %383 = vmatprep.subr.mxu0 0.0
  %384 = vmatpush1.msra.mxu0 0.0
  %385 = vmatprep.subr.mxu0 0.0
  %386 = vmatpush1.msra.mxu0 0.0
  %387 = vmatprep.subr.mxu0 0.0
  %388 = vmatpush1.msra.mxu0 0.0
  %389 = vmatprep.subr.mxu0 0.0
  %390 = vmatpush1.msra.mxu0 0.0
  %391 = vmatprep.subr.mxu0 0.0
  %392 = vmatpush1.msra.mxu0 0.0
  %393 = vmatprep.subr.mxu0 0.0
  %394 = vmatpush1.msra.mxu0 0.0
  %395 = vmatprep.subr.mxu0 0.0
  %396 = vmatpush1.msra.mxu0 0.0
  %397 = vmatprep.subr.mxu0 0.0
  %398 = vmatpush1.msra.mxu0 0.0
  %399 = vmatprep.subr.mxu0 0.0
  %400 = vmatpush1.msra.mxu0 0.0
  %401 = vmatprep.subr.mxu0 0.0
  %402 = vmatpush1.msra.mxu0 0.0
  %403 = vmatprep.subr.mxu0 0.0
  %404 = vmatpush1.msra.mxu0 0.0
  %405 = vmatprep.subr.mxu0 0.0
  %406 = vmatpush1.msra.mxu0 0.0
  %407 = vmatprep.subr.mxu0 0.0
  %408 = vmatpush1.msra.mxu0 0.0
  %409 = vmatprep.subr.mxu0 0.0
  %410 = vmatpush1.msra.mxu0 0.0
  %411 = vmatprep.subr.mxu0 0.0
  %412 = vmatpush1.msra.mxu0 0.0
  %413 = vmatprep.subr.mxu0 0.0
  %414 = vmatpush1.msra.mxu0 0.0
  %415 = vmatprep.subr.mxu0 0.0
  %416 = vmatpush1.msra.mxu0 0.0
  %417 = vmatprep.subr.mxu0 0.0
  %418 = vmatpush1.msra.mxu0 0.0
  %419 = vmatprep.subr.mxu0 0.0
  %420 = vmatpush1.msra.mxu0 0.0
  %421 = vmatprep.subr.mxu0 0.0
  %422 = vmatpush1.msra.mxu0 0.0
  %423 = vmatprep.subr.mxu0 0.0
  %424 = vmatpush1.msra.mxu0 0.0
  %425 = vmatprep.subr.mxu0 0.0
  %426 = vmatpush1.msra.mxu0 0.0
  %427 = vmatprep.subr.mxu0 0.0
  %428 = vmatpush1.msra.mxu0 0.0
  %429 = vmatprep.subr.mxu0 0.0
  %430 = vmatpush1.msra.mxu0 0.0
  %431 = vmatprep.subr.mxu0 0.0
  %432 = vmatpush1.msra.mxu0 0.0
  %433 = vmatprep.subr.mxu0 0.0
  %434 = vmatpush1.msra.mxu0 0.0
  %435 = vmatprep.subr.mxu0 0.0
  %436 = vmatpush1.msra.mxu0 0.0
  %437 = vmatprep.subr.mxu0 0.0
  %438 = vmatpush1.msra.mxu0 0.0
  %439 = vmatprep.mubr.f32.mxu0 0.0
  %440 = vmatmul.mubr.f32.gmra.mrb[0].mxu0 %v367
  %v441 = vpop.f32.mrb[0].mxu0
  %v442 = vadd.f32 %v224, %v441
  %v443 = vpop.f32.mrb[0].mxu0
  %v444 = vadd.f32 %v226, %v443
  %445 = vmatprep.mubr.f32.mxu0 0.0
  %446 = vmatmul.mubr.f32.gmra.mrb[0].mxu0 %v79
  %v447 = vpop.f32.mrb[0].mxu0
  %v448 = vadd.f32 %v230, %v447
  %v449 = vpop.f32.mrb[0].mxu0
  %v450 = vadd.f32 %v232, %v449
  %451 = vmatprep.mubr.f32.mxu0 0.0
  %452 = vmatmul.mubr.f32.gmra.mrb[0].mxu0 %v82
  %v453 = vpop.f32.mrb[0].mxu0
  %v454 = vadd.f32 %v236, %v453
  %v455 = vpop.f32.mrb[0].mxu0
  %v456 = vadd.f32 %v238, %v455
  %457 = vmatprep.mubr.f32.mxu0 0.0
  %458 = vmatmul.mubr.f32.gmra.mrb[0].mxu0 %v85
  %v459 = vpop.f32.mrb[0].mxu0
  %v460 = vadd.f32 %v242, %v459
  %v461 = vpop.f32.mrb[0].mxu0
  %v462 = vadd.f32 %v244, %v461
  %463 = vmatprep.mubr.f32.mxu0 0.0
  %464 = vmatmul.mubr.f32.gmra.mrb[0].mxu0 %v88
  %v465 = vpop.f32.mrb[0].mxu0
  %v466 = vadd.f32 %v248, %v465
  %v467 = vpop.f32.mrb[0].mxu0
  %v468 = vadd.f32 %v250, %v467
  %469 = vmatprep.mubr.f32.mxu0 0.0
  %470 = vmatmul.mubr.f32.gmra.mrb[0].mxu0 %v91
  %v471 = vpop.f32.mrb[0].mxu0
  %v472 = vadd.f32 %v254, %v471
  %v473 = vpop.f32.mrb[0].mxu0
  %v474 = vadd.f32 %v256, %v473
  %475 = vmatprep.mubr.f32.mxu0 0.0
  %476 = vmatmul.mubr.f32.gmra.mrb[0].mxu0 %v94
  %v477 = vpop.f32.mrb[0].mxu0
  %v478 = vadd.f32 %v260, %v477
  %v479 = vpop.f32.mrb[0].mxu0
  %v480 = vadd.f32 %v262, %v479
  %481 = vmatprep.mubr.f32.mxu0 0.0
  %482 = vmatmul.mubr.f32.gmra.mrb[0].mxu0 %v97
  %v483 = vpop.f32.mrb[0].mxu0
  %v484 = vadd.f32 %v266, %v483
  %v485 = vpop.f32.mrb[0].mxu0
  %v486 = vadd.f32 %v268, %v485
  %487 = vmatprep.mubr.f32.mxu0 0.0
  %488 = vmatmul.mubr.f32.gmra.mrb[0].mxu0 %v100
  %v489 = vpop.f32.mrb[0].mxu0
  %v490 = vadd.f32 %v272, %v489
  %v491 = vpop.f32.mrb[0].mxu0
  %v492 = vadd.f32 %v274, %v491
  %493 = vmatprep.mubr.f32.mxu0 0.0
  %494 = vmatmul.mubr.f32.gmra.mrb[0].mxu0 %v103
  %v495 = vpop.f32.mrb[0].mxu0
  %v496 = vadd.f32 %v278, %v495
  %v497 = vpop.f32.mrb[0].mxu0
  %v498 = vadd.f32 %v280, %v497
  %499 = vmatprep.mubr.f32.mxu0 0.0
  %500 = vmatmul.mubr.f32.gmra.mrb[0].mxu0 %v106
  %v501 = vpop.f32.mrb[0].mxu0
  %v502 = vadd.f32 %v284, %v501
  %v503 = vpop.f32.mrb[0].mxu0
  %v504 = vadd.f32 %v286, %v503
  %505 = vmatprep.mubr.f32.mxu0 0.0
  %506 = vmatmul.mubr.f32.gmra.mrb[0].mxu0 %v109
  %v507 = vpop.f32.mrb[0].mxu0
  %v508 = vadd.f32 %v290, %v507
  %v509 = vpop.f32.mrb[0].mxu0
  %v510 = vadd.f32 %v292, %v509
  %511 = vmatprep.mubr.f32.mxu0 0.0
  %512 = vmatmul.mubr.f32.gmra.mrb[0].mxu0 %v112
  %v513 = vpop.f32.mrb[0].mxu0
  %v514 = vadd.f32 %v296, %v513
  %v515 = vpop.f32.mrb[0].mxu0
  %v516 = vadd.f32 %v298, %v515
  %517 = vmatprep.mubr.f32.mxu0 0.0
  %518 = vmatmul.mubr.f32.gmra.mrb[0].mxu0 %v115
  %v519 = vpop.f32.mrb[0].mxu0
  %v520 = vadd.f32 %v302, %v519
  %v521 = vpop.f32.mrb[0].mxu0
  %v522 = vadd.f32 %v304, %v521
  %523 = vmatprep.mubr.f32.mxu0 0.0
  %524 = vmatmul.mubr.f32.gmra.mrb[0].mxu0 %v118
  %v525 = vpop.f32.mrb[0].mxu0
  %v526 = vadd.f32 %v308, %v525
  %v527 = vpop.f32.mrb[0].mxu0
  %v528 = vadd.f32 %v310, %v527
  %529 = vmatprep.mubr.f32.mxu0 0.0
  %530 = vmatmul.mubr.f32.gmra.mrb[0].mxu0 %v121
  %v531 = vpop.f32.mrb[0].mxu0
  %v532 = vadd.f32 %v314, %v531
  %v533 = vpop.f32.mrb[0].mxu0
  %v534 = vadd.f32 %v316, %v533
  %535 = vmatprep.mubr.f32.mxu0 0.0
  %536 = vmatmul.mubr.f32.gmra.mrb[0].mxu0 %v124
  %v537 = vpop.f32.mrb[0].mxu0
  %v538 = vadd.f32 %v320, %v537
  %v539 = vpop.f32.mrb[0].mxu0
  %v540 = vadd.f32 %v322, %v539
  %541 = vmatprep.mubr.f32.mxu0 0.0
  %542 = vmatmul.mubr.f32.gmra.mrb[0].mxu0 %v127
  %v543 = vpop.f32.mrb[0].mxu0
  %v544 = vadd.f32 %v326, %v543
  %v545 = vpop.f32.mrb[0].mxu0
  %v546 = vadd.f32 %v328, %v545
  %547 = vmatprep.mubr.f32.mxu0 0.0
  %548 = vmatmul.mubr.f32.gmra.mrb[0].mxu0 %v130
  %v549 = vpop.f32.mrb[0].mxu0
  %v550 = vadd.f32 %v332, %v549
  %v551 = vpop.f32.mrb[0].mxu0
  %v552 = vadd.f32 %v334, %v551
  %553 = vmatprep.mubr.f32.mxu0 0.0
  %554 = vmatmul.mubr.f32.gmra.mrb[0].mxu0 %v133
  %v555 = vpop.f32.mrb[0].mxu0
  %v556 = vadd.f32 %v338, %v555
  %v557 = vpop.f32.mrb[0].mxu0
  %v558 = vadd.f32 %v340, %v557
  %559 = vmatprep.mubr.f32.mxu0 0.0
  %560 = vmatmul.mubr.f32.gmra.mrb[0].mxu0 %v136
  %v561 = vpop.f32.mrb[0].mxu0
  %v562 = vadd.f32 %v344, %v561
  %v563 = vpop.f32.mrb[0].mxu0
  %v564 = vadd.f32 %v346, %v563
  %565 = vmatprep.mubr.f32.mxu0 0.0
  %566 = vmatmul.mubr.f32.gmra.mrb[0].mxu0 %v139
  %v567 = vpop.f32.mrb[0].mxu0
  %v568 = vadd.f32 %v350, %v567
  %v569 = vpop.f32.mrb[0].mxu0
  %v570 = vadd.f32 %v352, %v569
  %571 = vmatprep.mubr.f32.mxu0 0.0
  %572 = vmatmul.mubr.f32.gmra.mrb[0].mxu0 %v142
  %v573 = vpop.f32.mrb[0].mxu0
  %v574 = vadd.f32 %v356, %v573
  %v575 = vpop.f32.mrb[0].mxu0
  %v576 = vadd.f32 %v358, %v575
  %577 = vmatprep.mubr.f32.mxu0 0.0
  %578 = vmatmul.mubr.f32.gmra.mrb[0].mxu0 %v145
  %v579 = vpop.f32.mrb[0].mxu0
  %v580 = vadd.f32 %v362, %v579
  %v581 = vpop.f32.mrb[0].mxu0
  %v582 = vadd.f32 %v364, %v581
  %583 = vdwg.mxu0
  %s584 = scalar_lea.vmem %s1, 128
  %v585 = vld [vmem:[%s584] sm:$0xff]
  %v586 = vld [vmem:[%s584 + $0x8] sm:$0xff]
  %v587 = vld [vmem:[%s584 + $0x10] sm:$0xff]
  %v588 = vld [vmem:[%s584 + $0x18] sm:$0xff]
  %v589 = vld [vmem:[%s584 + $0x20] sm:$0xff]
  %v590 = vld [vmem:[%s584 + $0x28] sm:$0xff]
  %v591 = vld [vmem:[%s584 + $0x30] sm:$0xf]
  %v592 = vld [vmem:[%s584 + $0x38] sm:$0xf]
  %v594 = vsel %vm77, %v57, 0
  %v597 = vsel %vm150, %v591, 0
  %v600 = vsel %vm150, %v592, 0
  %602 = vmatprep.subr.mxu0 %v586
  %603 = vmatpush1.msra.mxu0 %v585
  %604 = vmatprep.subr.mxu0 %v588
  %605 = vmatpush1.msra.mxu0 %v587
  %606 = vmatprep.subr.mxu0 %v590
  %607 = vmatpush1.msra.mxu0 %v589
  %608 = vmatprep.subr.mxu0 %v600
  %609 = vmatpush1.msra.mxu0 %v597
  %610 = vmatprep.subr.mxu0 0.0
  %611 = vmatpush1.msra.mxu0 0.0
  %612 = vmatprep.subr.mxu0 0.0
  %613 = vmatpush1.msra.mxu0 0.0
  %614 = vmatprep.subr.mxu0 0.0
  %615 = vmatpush1.msra.mxu0 0.0
  %616 = vmatprep.subr.mxu0 0.0
  %617 = vmatpush1.msra.mxu0 0.0
  %618 = vmatprep.subr.mxu0 0.0
  %619 = vmatpush1.msra.mxu0 0.0
  %620 = vmatprep.subr.mxu0 0.0
  %621 = vmatpush1.msra.mxu0 0.0
  %622 = vmatprep.subr.mxu0 0.0
  %623 = vmatpush1.msra.mxu0 0.0
  %624 = vmatprep.subr.mxu0 0.0
  %625 = vmatpush1.msra.mxu0 0.0
  %626 = vmatprep.subr.mxu0 0.0
  %627 = vmatpush1.msra.mxu0 0.0
  %628 = vmatprep.subr.mxu0 0.0
  %629 = vmatpush1.msra.mxu0 0.0
  %630 = vmatprep.subr.mxu0 0.0
  %631 = vmatpush1.msra.mxu0 0.0
  %632 = vmatprep.subr.mxu0 0.0
  %633 = vmatpush1.msra.mxu0 0.0
  %634 = vmatprep.subr.mxu0 0.0
  %635 = vmatpush1.msra.mxu0 0.0
  %636 = vmatprep.subr.mxu0 0.0
  %637 = vmatpush1.msra.mxu0 0.0
  %638 = vmatprep.subr.mxu0 0.0
  %639 = vmatpush1.msra.mxu0 0.0
  %640 = vmatprep.subr.mxu0 0.0
  %641 = vmatpush1.msra.mxu0 0.0
  %642 = vmatprep.subr.mxu0 0.0
  %643 = vmatpush1.msra.mxu0 0.0
  %644 = vmatprep.subr.mxu0 0.0
  %645 = vmatpush1.msra.mxu0 0.0
  %646 = vmatprep.subr.mxu0 0.0
  %647 = vmatpush1.msra.mxu0 0.0
  %648 = vmatprep.subr.mxu0 0.0
  %649 = vmatpush1.msra.mxu0 0.0
  %650 = vmatprep.subr.mxu0 0.0
  %651 = vmatpush1.msra.mxu0 0.0
  %652 = vmatprep.subr.mxu0 0.0
  %653 = vmatpush1.msra.mxu0 0.0
  %654 = vmatprep.subr.mxu0 0.0
  %655 = vmatpush1.msra.mxu0 0.0
  %656 = vmatprep.subr.mxu0 0.0
  %657 = vmatpush1.msra.mxu0 0.0
  %658 = vmatprep.subr.mxu0 0.0
  %659 = vmatpush1.msra.mxu0 0.0
  %660 = vmatprep.subr.mxu0 0.0
  %661 = vmatpush1.msra.mxu0 0.0
  %662 = vmatprep.subr.mxu0 0.0
  %663 = vmatpush1.msra.mxu0 0.0
  %664 = vmatprep.subr.mxu0 0.0
  %665 = vmatpush1.msra.mxu0 0.0
  %666 = vmatprep.mubr.f32.mxu0 0.0
  %667 = vmatmul.mubr.f32.gmra.mrb[0].mxu0 %v82
  %v668 = vpop.f32.mrb[0].mxu0
  %v669 = vadd.f32 0.0, %v668
  %v670 = vpop.f32.mrb[0].mxu0
  %v671 = vadd.f32 0.0, %v670
  %672 = vmatprep.mubr.f32.mxu0 0.0
  %673 = vmatmul.mubr.f32.gmra.mrb[0].mxu0 %v85
  %v674 = vpop.f32.mrb[0].mxu0
  %v675 = vadd.f32 0.0, %v674
  %v676 = vpop.f32.mrb[0].mxu0
  %v677 = vadd.f32 0.0, %v676
  %678 = vmatprep.mubr.f32.mxu0 0.0
  %679 = vmatmul.mubr.f32.gmra.mrb[0].mxu0 %v88
  %v680 = vpop.f32.mrb[0].mxu0
  %v681 = vadd.f32 0.0, %v680
  %v682 = vpop.f32.mrb[0].mxu0
  %v683 = vadd.f32 0.0, %v682
  %684 = vmatprep.mubr.f32.mxu0 0.0
  %685 = vmatmul.mubr.f32.gmra.mrb[0].mxu0 %v91
  %v686 = vpop.f32.mrb[0].mxu0
  %v687 = vadd.f32 0.0, %v686
  %v688 = vpop.f32.mrb[0].mxu0
  %v689 = vadd.f32 0.0, %v688
  %690 = vmatprep.mubr.f32.mxu0 0.0
  %691 = vmatmul.mubr.f32.gmra.mrb[0].mxu0 %v94
  %v692 = vpop.f32.mrb[0].mxu0
  %v693 = vadd.f32 0.0, %v692
  %v694 = vpop.f32.mrb[0].mxu0
  %v695 = vadd.f32 0.0, %v694
  %696 = vmatprep.mubr.f32.mxu0 0.0
  %697 = vmatmul.mubr.f32.gmra.mrb[0].mxu0 %v97
  %v698 = vpop.f32.mrb[0].mxu0
  %v699 = vadd.f32 0.0, %v698
  %v700 = vpop.f32.mrb[0].mxu0
  %v701 = vadd.f32 0.0, %v700
  %702 = vmatprep.mubr.f32.mxu0 0.0
  %703 = vmatmul.mubr.f32.gmra.mrb[0].mxu0 %v100
  %v704 = vpop.f32.mrb[0].mxu0
  %v705 = vadd.f32 0.0, %v704
  %v706 = vpop.f32.mrb[0].mxu0
  %v707 = vadd.f32 0.0, %v706
  %708 = vmatprep.mubr.f32.mxu0 0.0
  %709 = vmatmul.mubr.f32.gmra.mrb[0].mxu0 %v103
  %v710 = vpop.f32.mrb[0].mxu0
  %v711 = vadd.f32 0.0, %v710
  %v712 = vpop.f32.mrb[0].mxu0
  %v713 = vadd.f32 0.0, %v712
  %714 = vmatprep.mubr.f32.mxu0 0.0
  %715 = vmatmul.mubr.f32.gmra.mrb[0].mxu0 %v106
  %v716 = vpop.f32.mrb[0].mxu0
  %v717 = vadd.f32 0.0, %v716
  %v718 = vpop.f32.mrb[0].mxu0
  %v719 = vadd.f32 0.0, %v718
  %720 = vmatprep.mubr.f32.mxu0 0.0
  %721 = vmatmul.mubr.f32.gmra.mrb[0].mxu0 %v109
  %v722 = vpop.f32.mrb[0].mxu0
  %v723 = vadd.f32 0.0, %v722
  %v724 = vpop.f32.mrb[0].mxu0
  %v725 = vadd.f32 0.0, %v724
  %726 = vmatprep.mubr.f32.mxu0 0.0
  %727 = vmatmul.mubr.f32.gmra.mrb[0].mxu0 %v112
  %v728 = vpop.f32.mrb[0].mxu0
  %v729 = vadd.f32 0.0, %v728
  %v730 = vpop.f32.mrb[0].mxu0
  %v731 = vadd.f32 0.0, %v730
  %732 = vmatprep.mubr.f32.mxu0 0.0
  %733 = vmatmul.mubr.f32.gmra.mrb[0].mxu0 %v115
  %v734 = vpop.f32.mrb[0].mxu0
  %v735 = vadd.f32 0.0, %v734
  %v736 = vpop.f32.mrb[0].mxu0
  %v737 = vadd.f32 0.0, %v736
  %738 = vmatprep.mubr.f32.mxu0 0.0
  %739 = vmatmul.mubr.f32.gmra.mrb[0].mxu0 %v118
  %v740 = vpop.f32.mrb[0].mxu0
  %v741 = vadd.f32 0.0, %v740
  %v742 = vpop.f32.mrb[0].mxu0
  %v743 = vadd.f32 0.0, %v742
  %744 = vmatprep.mubr.f32.mxu0 0.0
  %745 = vmatmul.mubr.f32.gmra.mrb[0].mxu0 %v121
  %v746 = vpop.f32.mrb[0].mxu0
  %v747 = vadd.f32 0.0, %v746
  %v748 = vpop.f32.mrb[0].mxu0
  %v749 = vadd.f32 0.0, %v748
  %750 = vmatprep.mubr.f32.mxu0 0.0
  %751 = vmatmul.mubr.f32.gmra.mrb[0].mxu0 %v124
  %v752 = vpop.f32.mrb[0].mxu0
  %v753 = vadd.f32 0.0, %v752
  %v754 = vpop.f32.mrb[0].mxu0
  %v755 = vadd.f32 0.0, %v754
  %756 = vmatprep.mubr.f32.mxu0 0.0
  %757 = vmatmul.mubr.f32.gmra.mrb[0].mxu0 %v127
  %v758 = vpop.f32.mrb[0].mxu0
  %v759 = vadd.f32 0.0, %v758
  %v760 = vpop.f32.mrb[0].mxu0
  %v761 = vadd.f32 0.0, %v760
  %762 = vmatprep.mubr.f32.mxu0 0.0
  %763 = vmatmul.mubr.f32.gmra.mrb[0].mxu0 %v130
  %v764 = vpop.f32.mrb[0].mxu0
  %v765 = vadd.f32 0.0, %v764
  %v766 = vpop.f32.mrb[0].mxu0
  %v767 = vadd.f32 0.0, %v766
  %768 = vmatprep.mubr.f32.mxu0 0.0
  %769 = vmatmul.mubr.f32.gmra.mrb[0].mxu0 %v133
  %v770 = vpop.f32.mrb[0].mxu0
  %v771 = vadd.f32 0.0, %v770
  %v772 = vpop.f32.mrb[0].mxu0
  %v773 = vadd.f32 0.0, %v772
  %774 = vmatprep.mubr.f32.mxu0 0.0
  %775 = vmatmul.mubr.f32.gmra.mrb[0].mxu0 %v136
  %v776 = vpop.f32.mrb[0].mxu0
  %v777 = vadd.f32 0.0, %v776
  %v778 = vpop.f32.mrb[0].mxu0
  %v779 = vadd.f32 0.0, %v778
  %780 = vmatprep.mubr.f32.mxu0 0.0
  %781 = vmatmul.mubr.f32.gmra.mrb[0].mxu0 %v139
  %v782 = vpop.f32.mrb[0].mxu0
  %v783 = vadd.f32 0.0, %v782
  %v784 = vpop.f32.mrb[0].mxu0
  %v785 = vadd.f32 0.0, %v784
  %786 = vmatprep.mubr.f32.mxu0 0.0
  %787 = vmatmul.mubr.f32.gmra.mrb[0].mxu0 %v142
  %v788 = vpop.f32.mrb[0].mxu0
  %v789 = vadd.f32 0.0, %v788
  %v790 = vpop.f32.mrb[0].mxu0
  %v791 = vadd.f32 0.0, %v790
  %792 = vmatprep.mubr.f32.mxu0 0.0
  %793 = vmatmul.mubr.f32.gmra.mrb[0].mxu0 %v145
  %v794 = vpop.f32.mrb[0].mxu0
  %v795 = vadd.f32 0.0, %v794
  %v796 = vpop.f32.mrb[0].mxu0
  %v797 = vadd.f32 0.0, %v796
  %798 = vmatprep.mubr.f32.mxu0 0.0
  %799 = vmatmul.mubr.f32.gmra.mrb[0].mxu0 %v148
  %v800 = vpop.f32.mrb[0].mxu0
  %v801 = vadd.f32 0.0, %v800
  %v802 = vpop.f32.mrb[0].mxu0
  %v803 = vadd.f32 0.0, %v802
  %804 = vmatprep.mubr.f32.mxu0 0.0
  %805 = vmatmul.mubr.f32.gmra.mrb[0].mxu0 %v594
  %v806 = vpop.f32.mrb[0].mxu0
  %v807 = vadd.f32 0.0, %v806
  %v808 = vpop.f32.mrb[0].mxu0
  %v809 = vadd.f32 0.0, %v808
  %810 = vdwg.mxu0
  %v811 = vadd.f32 %v442, %v669
  %v812 = vadd.f32 %v444, %v671
  %v813 = vadd.f32 %v448, %v675
  %v814 = vadd.f32 %v450, %v677
  %v815 = vadd.f32 %v454, %v681
  %v816 = vadd.f32 %v456, %v683
  %v817 = vadd.f32 %v460, %v687
  %v818 = vadd.f32 %v462, %v689
  %v819 = vadd.f32 %v466, %v693
  %v820 = vadd.f32 %v468, %v695
  %v821 = vadd.f32 %v472, %v699
  %v822 = vadd.f32 %v474, %v701
  %v823 = vadd.f32 %v478, %v705
  %v824 = vadd.f32 %v480, %v707
  %v825 = vadd.f32 %v484, %v711
  %v826 = vadd.f32 %v486, %v713
  %v827 = vadd.f32 %v490, %v717
  %v828 = vadd.f32 %v492, %v719
  %v829 = vadd.f32 %v496, %v723
  %v830 = vadd.f32 %v498, %v725
  %v831 = vadd.f32 %v502, %v729
  %v832 = vadd.f32 %v504, %v731
  %v833 = vadd.f32 %v508, %v735
  %v834 = vadd.f32 %v510, %v737
  %v835 = vadd.f32 %v514, %v741
  %v836 = vadd.f32 %v516, %v743
  %v837 = vadd.f32 %v520, %v747
  %v838 = vadd.f32 %v522, %v749
  %v839 = vadd.f32 %v526, %v753
  %v840 = vadd.f32 %v528, %v755
  %v841 = vadd.f32 %v532, %v759
  %v842 = vadd.f32 %v534, %v761
  %v843 = vadd.f32 %v538, %v765
  %v844 = vadd.f32 %v540, %v767
  %v845 = vadd.f32 %v544, %v771
  %v846 = vadd.f32 %v546, %v773
  %v847 = vadd.f32 %v550, %v777
  %v848 = vadd.f32 %v552, %v779
  %v849 = vadd.f32 %v556, %v783
  %v850 = vadd.f32 %v558, %v785
  %v851 = vadd.f32 %v562, %v789
  %v852 = vadd.f32 %v564, %v791
  %v853 = vadd.f32 %v568, %v795
  %v854 = vadd.f32 %v570, %v797
  %v855 = vadd.f32 %v574, %v801
  %v856 = vadd.f32 %v576, %v803
  %v857 = vadd.f32 %v580, %v807
  %v858 = vadd.f32 %v582, %v809
  %s859 = scalar_lea.vmem %s1, 192
  %v860 = vld [vmem:[%s859] sm:$0xff]
  %v861 = vld [vmem:[%s859 + $0x8] sm:$0xff]
  %v862 = vld [vmem:[%s859 + $0x10] sm:$0xff]
  %v863 = vld [vmem:[%s859 + $0x18] sm:$0xff]
  %v864 = vld [vmem:[%s859 + $0x20] sm:$0xff]
  %v865 = vld [vmem:[%s859 + $0x28] sm:$0xff]
  %v866 = vld [vmem:[%s859 + $0x30] sm:$0xf]
  %v867 = vld [vmem:[%s859 + $0x38] sm:$0xf]
  %v869 = vsel %vm77, %v58, 0
  %v872 = vsel %vm150, %v866, 0
  %v875 = vsel %vm150, %v867, 0
  %877 = vmatprep.subr.mxu0 %v861
  %878 = vmatpush1.msra.mxu0 %v860
  %879 = vmatprep.subr.mxu0 %v863
  %880 = vmatpush1.msra.mxu0 %v862
  %881 = vmatprep.subr.mxu0 %v865
  %882 = vmatpush1.msra.mxu0 %v864
  %883 = vmatprep.subr.mxu0 %v875
  %884 = vmatpush1.msra.mxu0 %v872
  %885 = vmatprep.subr.mxu0 0.0
  %886 = vmatpush1.msra.mxu0 0.0
  %887 = vmatprep.subr.mxu0 0.0
  %888 = vmatpush1.msra.mxu0 0.0
  %889 = vmatprep.subr.mxu0 0.0
  %890 = vmatpush1.msra.mxu0 0.0
  %891 = vmatprep.subr.mxu0 0.0
  %892 = vmatpush1.msra.mxu0 0.0
  %893 = vmatprep.subr.mxu0 0.0
  %894 = vmatpush1.msra.mxu0 0.0
  %895 = vmatprep.subr.mxu0 0.0
  %896 = vmatpush1.msra.mxu0 0.0
  %897 = vmatprep.subr.mxu0 0.0
  %898 = vmatpush1.msra.mxu0 0.0
  %899 = vmatprep.subr.mxu0 0.0
  %900 = vmatpush1.msra.mxu0 0.0
  %901 = vmatprep.subr.mxu0 0.0
  %902 = vmatpush1.msra.mxu0 0.0
  %903 = vmatprep.subr.mxu0 0.0
  %904 = vmatpush1.msra.mxu0 0.0
  %905 = vmatprep.subr.mxu0 0.0
  %906 = vmatpush1.msra.mxu0 0.0
  %907 = vmatprep.subr.mxu0 0.0
  %908 = vmatpush1.msra.mxu0 0.0
  %909 = vmatprep.subr.mxu0 0.0
  %910 = vmatpush1.msra.mxu0 0.0
  %911 = vmatprep.subr.mxu0 0.0
  %912 = vmatpush1.msra.mxu0 0.0
  %913 = vmatprep.subr.mxu0 0.0
  %914 = vmatpush1.msra.mxu0 0.0
  %915 = vmatprep.subr.mxu0 0.0
  %916 = vmatpush1.msra.mxu0 0.0
  %917 = vmatprep.subr.mxu0 0.0
  %918 = vmatpush1.msra.mxu0 0.0
  %919 = vmatprep.subr.mxu0 0.0
  %920 = vmatpush1.msra.mxu0 0.0
  %921 = vmatprep.subr.mxu0 0.0
  %922 = vmatpush1.msra.mxu0 0.0
  %923 = vmatprep.subr.mxu0 0.0
  %924 = vmatpush1.msra.mxu0 0.0
  %925 = vmatprep.subr.mxu0 0.0
  %926 = vmatpush1.msra.mxu0 0.0
  %927 = vmatprep.subr.mxu0 0.0
  %928 = vmatpush1.msra.mxu0 0.0
  %929 = vmatprep.subr.mxu0 0.0
  %930 = vmatpush1.msra.mxu0 0.0
  %931 = vmatprep.subr.mxu0 0.0
  %932 = vmatpush1.msra.mxu0 0.0
  %933 = vmatprep.subr.mxu0 0.0
  %934 = vmatpush1.msra.mxu0 0.0
  %935 = vmatprep.subr.mxu0 0.0
  %936 = vmatpush1.msra.mxu0 0.0
  %937 = vmatprep.subr.mxu0 0.0
  %938 = vmatpush1.msra.mxu0 0.0
  %939 = vmatprep.subr.mxu0 0.0
  %940 = vmatpush1.msra.mxu0 0.0
  %941 = vmatprep.mubr.f32.mxu0 0.0
  %942 = vmatmul.mubr.f32.gmra.mrb[0].mxu0 %v85
  %v943 = vpop.f32.mrb[0].mxu0
  %v944 = vadd.f32 0.0, %v943
  %v945 = vpop.f32.mrb[0].mxu0
  %v946 = vadd.f32 0.0, %v945
  %947 = vmatprep.mubr.f32.mxu0 0.0
  %948 = vmatmul.mubr.f32.gmra.mrb[0].mxu0 %v88
  %v949 = vpop.f32.mrb[0].mxu0
  %v950 = vadd.f32 0.0, %v949
  %v951 = vpop.f32.mrb[0].mxu0
  %v952 = vadd.f32 0.0, %v951
  %953 = vmatprep.mubr.f32.mxu0 0.0
  %954 = vmatmul.mubr.f32.gmra.mrb[0].mxu0 %v91
  %v955 = vpop.f32.mrb[0].mxu0
  %v956 = vadd.f32 0.0, %v955
  %v957 = vpop.f32.mrb[0].mxu0
  %v958 = vadd.f32 0.0, %v957
  %959 = vmatprep.mubr.f32.mxu0 0.0
  %960 = vmatmul.mubr.f32.gmra.mrb[0].mxu0 %v94
  %v961 = vpop.f32.mrb[0].mxu0
  %v962 = vadd.f32 0.0, %v961
  %v963 = vpop.f32.mrb[0].mxu0
  %v964 = vadd.f32 0.0, %v963
  %965 = vmatprep.mubr.f32.mxu0 0.0
  %966 = vmatmul.mubr.f32.gmra.mrb[0].mxu0 %v97
  %v967 = vpop.f32.mrb[0].mxu0
  %v968 = vadd.f32 0.0, %v967
  %v969 = vpop.f32.mrb[0].mxu0
  %v970 = vadd.f32 0.0, %v969
  %971 = vmatprep.mubr.f32.mxu0 0.0
  %972 = vmatmul.mubr.f32.gmra.mrb[0].mxu0 %v100
  %v973 = vpop.f32.mrb[0].mxu0
  %v974 = vadd.f32 0.0, %v973
  %v975 = vpop.f32.mrb[0].mxu0
  %v976 = vadd.f32 0.0, %v975
  %977 = vmatprep.mubr.f32.mxu0 0.0
  %978 = vmatmul.mubr.f32.gmra.mrb[0].mxu0 %v103
  %v979 = vpop.f32.mrb[0].mxu0
  %v980 = vadd.f32 0.0, %v979
  %v981 = vpop.f32.mrb[0].mxu0
  %v982 = vadd.f32 0.0, %v981
  %983 = vmatprep.mubr.f32.mxu0 0.0
  %984 = vmatmul.mubr.f32.gmra.mrb[0].mxu0 %v106
  %v985 = vpop.f32.mrb[0].mxu0
  %v986 = vadd.f32 0.0, %v985
  %v987 = vpop.f32.mrb[0].mxu0
  %v988 = vadd.f32 0.0, %v987
  %989 = vmatprep.mubr.f32.mxu0 0.0
  %990 = vmatmul.mubr.f32.gmra.mrb[0].mxu0 %v109
  %v991 = vpop.f32.mrb[0].mxu0
  %v992 = vadd.f32 0.0, %v991
  %v993 = vpop.f32.mrb[0].mxu0
  %v994 = vadd.f32 0.0, %v993
  %995 = vmatprep.mubr.f32.mxu0 0.0
  %996 = vmatmul.mubr.f32.gmra.mrb[0].mxu0 %v112
  %v997 = vpop.f32.mrb[0].mxu0
  %v998 = vadd.f32 0.0, %v997
  %v999 = vpop.f32.mrb[0].mxu0
  %v1000 = vadd.f32 0.0, %v999
  %1001 = vmatprep.mubr.f32.mxu0 0.0
  %1002 = vmatmul.mubr.f32.gmra.mrb[0].mxu0 %v115
  %v1003 = vpop.f32.mrb[0].mxu0
  %v1004 = vadd.f32 0.0, %v1003
  %v1005 = vpop.f32.mrb[0].mxu0
  %v1006 = vadd.f32 0.0, %v1005
  %1007 = vmatprep.mubr.f32.mxu0 0.0
  %1008 = vmatmul.mubr.f32.gmra.mrb[0].mxu0 %v118
  %v1009 = vpop.f32.mrb[0].mxu0
  %v1010 = vadd.f32 0.0, %v1009
  %v1011 = vpop.f32.mrb[0].mxu0
  %v1012 = vadd.f32 0.0, %v1011
  %1013 = vmatprep.mubr.f32.mxu0 0.0
  %1014 = vmatmul.mubr.f32.gmra.mrb[0].mxu0 %v121
  %v1015 = vpop.f32.mrb[0].mxu0
  %v1016 = vadd.f32 0.0, %v1015
  %v1017 = vpop.f32.mrb[0].mxu0
  %v1018 = vadd.f32 0.0, %v1017
  %1019 = vmatprep.mubr.f32.mxu0 0.0
  %1020 = vmatmul.mubr.f32.gmra.mrb[0].mxu0 %v124
  %v1021 = vpop.f32.mrb[0].mxu0
  %v1022 = vadd.f32 0.0, %v1021
  %v1023 = vpop.f32.mrb[0].mxu0
  %v1024 = vadd.f32 0.0, %v1023
  %1025 = vmatprep.mubr.f32.mxu0 0.0
  %1026 = vmatmul.mubr.f32.gmra.mrb[0].mxu0 %v127
  %v1027 = vpop.f32.mrb[0].mxu0
  %v1028 = vadd.f32 0.0, %v1027
  %v1029 = vpop.f32.mrb[0].mxu0
  %v1030 = vadd.f32 0.0, %v1029
  %1031 = vmatprep.mubr.f32.mxu0 0.0
  %1032 = vmatmul.mubr.f32.gmra.mrb[0].mxu0 %v130
  %v1033 = vpop.f32.mrb[0].mxu0
  %v1034 = vadd.f32 0.0, %v1033
  %v1035 = vpop.f32.mrb[0].mxu0
  %v1036 = vadd.f32 0.0, %v1035
  %1037 = vmatprep.mubr.f32.mxu0 0.0
  %1038 = vmatmul.mubr.f32.gmra.mrb[0].mxu0 %v133
  %v1039 = vpop.f32.mrb[0].mxu0
  %v1040 = vadd.f32 0.0, %v1039
  %v1041 = vpop.f32.mrb[0].mxu0
  %v1042 = vadd.f32 0.0, %v1041
  %1043 = vmatprep.mubr.f32.mxu0 0.0
  %1044 = vmatmul.mubr.f32.gmra.mrb[0].mxu0 %v136
  %v1045 = vpop.f32.mrb[0].mxu0
  %v1046 = vadd.f32 0.0, %v1045
  %v1047 = vpop.f32.mrb[0].mxu0
  %v1048 = vadd.f32 0.0, %v1047
  %1049 = vmatprep.mubr.f32.mxu0 0.0
  %1050 = vmatmul.mubr.f32.gmra.mrb[0].mxu0 %v139
  %v1051 = vpop.f32.mrb[0].mxu0
  %v1052 = vadd.f32 0.0, %v1051
  %v1053 = vpop.f32.mrb[0].mxu0
  %v1054 = vadd.f32 0.0, %v1053
  %1055 = vmatprep.mubr.f32.mxu0 0.0
  %1056 = vmatmul.mubr.f32.gmra.mrb[0].mxu0 %v142
  %v1057 = vpop.f32.mrb[0].mxu0
  %v1058 = vadd.f32 0.0, %v1057
  %v1059 = vpop.f32.mrb[0].mxu0
  %v1060 = vadd.f32 0.0, %v1059
  %1061 = vmatprep.mubr.f32.mxu0 0.0
  %1062 = vmatmul.mubr.f32.gmra.mrb[0].mxu0 %v145
  %v1063 = vpop.f32.mrb[0].mxu0
  %v1064 = vadd.f32 0.0, %v1063
  %v1065 = vpop.f32.mrb[0].mxu0
  %v1066 = vadd.f32 0.0, %v1065
  %1067 = vmatprep.mubr.f32.mxu0 0.0
  %1068 = vmatmul.mubr.f32.gmra.mrb[0].mxu0 %v148
  %v1069 = vpop.f32.mrb[0].mxu0
  %v1070 = vadd.f32 0.0, %v1069
  %v1071 = vpop.f32.mrb[0].mxu0
  %v1072 = vadd.f32 0.0, %v1071
  %1073 = vmatprep.mubr.f32.mxu0 0.0
  %1074 = vmatmul.mubr.f32.gmra.mrb[0].mxu0 %v594
  %v1075 = vpop.f32.mrb[0].mxu0
  %v1076 = vadd.f32 0.0, %v1075
  %v1077 = vpop.f32.mrb[0].mxu0
  %v1078 = vadd.f32 0.0, %v1077
  %1079 = vmatprep.mubr.f32.mxu0 0.0
  %1080 = vmatmul.mubr.f32.gmra.mrb[0].mxu0 %v869
  %v1081 = vpop.f32.mrb[0].mxu0
  %v1082 = vadd.f32 0.0, %v1081
  %v1083 = vpop.f32.mrb[0].mxu0
  %v1084 = vadd.f32 0.0, %v1083
  %1085 = vdwg.mxu0
  %v1086 = vadd.f32 %v811, %v944
  %v1087 = vadd.f32 %v812, %v946
  %v1088 = vadd.f32 %v813, %v950
  %v1089 = vadd.f32 %v814, %v952
  %v1090 = vadd.f32 %v815, %v956
  %v1091 = vadd.f32 %v816, %v958
  %v1092 = vadd.f32 %v817, %v962
  %v1093 = vadd.f32 %v818, %v964
  %v1094 = vadd.f32 %v819, %v968
  %v1095 = vadd.f32 %v820, %v970
  %v1096 = vadd.f32 %v821, %v974
  %v1097 = vadd.f32 %v822, %v976
  %v1098 = vadd.f32 %v823, %v980
  %v1099 = vadd.f32 %v824, %v982
  %v1100 = vadd.f32 %v825, %v986
  %v1101 = vadd.f32 %v826, %v988
  %v1102 = vadd.f32 %v827, %v992
  %v1103 = vadd.f32 %v828, %v994
  %v1104 = vadd.f32 %v829, %v998
  %v1105 = vadd.f32 %v830, %v1000
  %v1106 = vadd.f32 %v831, %v1004
  %v1107 = vadd.f32 %v832, %v1006
  %v1108 = vadd.f32 %v833, %v1010
  %v1109 = vadd.f32 %v834, %v1012
  %v1110 = vadd.f32 %v835, %v1016
  %v1111 = vadd.f32 %v836, %v1018
  %v1112 = vadd.f32 %v837, %v1022
  %v1113 = vadd.f32 %v838, %v1024
  %v1114 = vadd.f32 %v839, %v1028
  %v1115 = vadd.f32 %v840, %v1030
  %v1116 = vadd.f32 %v841, %v1034
  %v1117 = vadd.f32 %v842, %v1036
  %v1118 = vadd.f32 %v843, %v1040
  %v1119 = vadd.f32 %v844, %v1042
  %v1120 = vadd.f32 %v845, %v1046
  %v1121 = vadd.f32 %v846, %v1048
  %v1122 = vadd.f32 %v847, %v1052
  %v1123 = vadd.f32 %v848, %v1054
  %v1124 = vadd.f32 %v849, %v1058
  %v1125 = vadd.f32 %v850, %v1060
  %v1126 = vadd.f32 %v851, %v1064
  %v1127 = vadd.f32 %v852, %v1066
  %v1128 = vadd.f32 %v853, %v1070
  %v1129 = vadd.f32 %v854, %v1072
  %v1130 = vadd.f32 %v855, %v1076
  %v1131 = vadd.f32 %v856, %v1078
  %v1132 = vadd.f32 %v857, %v1082
  %v1133 = vadd.f32 %v858, %v1084
  %s1134 = scalar_lea.vmem %s1, 256
  %v1135 = vld [vmem:[%s1134] sm:$0xff]
  %v1136 = vld [vmem:[%s1134 + $0x8] sm:$0xff]
  %v1137 = vld [vmem:[%s1134 + $0x10] sm:$0xff]
  %v1138 = vld [vmem:[%s1134 + $0x18] sm:$0xff]
  %v1139 = vld [vmem:[%s1134 + $0x20] sm:$0xff]
  %v1140 = vld [vmem:[%s1134 + $0x28] sm:$0xff]
  %v1141 = vld [vmem:[%s1134 + $0x30] sm:$0xf]
  %v1142 = vld [vmem:[%s1134 + $0x38] sm:$0xf]
  %v1144 = vsel %vm77, %v59, 0
  %v1147 = vsel %vm150, %v1141, 0
  %v1150 = vsel %vm150, %v1142, 0
  %1152 = vmatprep.subr.mxu0 %v1136
  %1153 = vmatpush1.msra.mxu0 %v1135
  %1154 = vmatprep.subr.mxu0 %v1138
  %1155 = vmatpush1.msra.mxu0 %v1137
  %1156 = vmatprep.subr.mxu0 %v1140
  %1157 = vmatpush1.msra.mxu0 %v1139
  %1158 = vmatprep.subr.mxu0 %v1150
  %1159 = vmatpush1.msra.mxu0 %v1147
  %1160 = vmatprep.subr.mxu0 0.0
  %1161 = vmatpush1.msra.mxu0 0.0
  %1162 = vmatprep.subr.mxu0 0.0
  %1163 = vmatpush1.msra.mxu0 0.0
  %1164 = vmatprep.subr.mxu0 0.0
  %1165 = vmatpush1.msra.mxu0 0.0
  %1166 = vmatprep.subr.mxu0 0.0
  %1167 = vmatpush1.msra.mxu0 0.0
  %1168 = vmatprep.subr.mxu0 0.0
  %1169 = vmatpush1.msra.mxu0 0.0
  %1170 = vmatprep.subr.mxu0 0.0
  %1171 = vmatpush1.msra.mxu0 0.0
  %1172 = vmatprep.subr.mxu0 0.0
  %1173 = vmatpush1.msra.mxu0 0.0
  %1174 = vmatprep.subr.mxu0 0.0
  %1175 = vmatpush1.msra.mxu0 0.0
  %1176 = vmatprep.subr.mxu0 0.0
  %1177 = vmatpush1.msra.mxu0 0.0
  %1178 = vmatprep.subr.mxu0 0.0
  %1179 = vmatpush1.msra.mxu0 0.0
  %1180 = vmatprep.subr.mxu0 0.0
  %1181 = vmatpush1.msra.mxu0 0.0
  %1182 = vmatprep.subr.mxu0 0.0
  %1183 = vmatpush1.msra.mxu0 0.0
  %1184 = vmatprep.subr.mxu0 0.0
  %1185 = vmatpush1.msra.mxu0 0.0
  %1186 = vmatprep.subr.mxu0 0.0
  %1187 = vmatpush1.msra.mxu0 0.0
  %1188 = vmatprep.subr.mxu0 0.0
  %1189 = vmatpush1.msra.mxu0 0.0
  %1190 = vmatprep.subr.mxu0 0.0
  %1191 = vmatpush1.msra.mxu0 0.0
  %1192 = vmatprep.subr.mxu0 0.0
  %1193 = vmatpush1.msra.mxu0 0.0
  %1194 = vmatprep.subr.mxu0 0.0
  %1195 = vmatpush1.msra.mxu0 0.0
  %1196 = vmatprep.subr.mxu0 0.0
  %1197 = vmatpush1.msra.mxu0 0.0
  %1198 = vmatprep.subr.mxu0 0.0
  %1199 = vmatpush1.msra.mxu0 0.0
  %1200 = vmatprep.subr.mxu0 0.0
  %1201 = vmatpush1.msra.mxu0 0.0
  %1202 = vmatprep.subr.mxu0 0.0
  %1203 = vmatpush1.msra.mxu0 0.0
  %1204 = vmatprep.subr.mxu0 0.0
  %1205 = vmatpush1.msra.mxu0 0.0
  %1206 = vmatprep.subr.mxu0 0.0
  %1207 = vmatpush1.msra.mxu0 0.0
  %1208 = vmatprep.subr.mxu0 0.0
  %1209 = vmatpush1.msra.mxu0 0.0
  %1210 = vmatprep.subr.mxu0 0.0
  %1211 = vmatpush1.msra.mxu0 0.0
  %1212 = vmatprep.subr.mxu0 0.0
  %1213 = vmatpush1.msra.mxu0 0.0
  %1214 = vmatprep.subr.mxu0 0.0
  %1215 = vmatpush1.msra.mxu0 0.0
  %1216 = vmatprep.mubr.f32.mxu0 0.0
  %1217 = vmatmul.mubr.f32.gmra.mrb[0].mxu0 %v88
  %v1218 = vpop.f32.mrb[0].mxu0
  %v1219 = vadd.f32 0.0, %v1218
  %v1220 = vpop.f32.mrb[0].mxu0
  %v1221 = vadd.f32 0.0, %v1220
  %1222 = vmatprep.mubr.f32.mxu0 0.0
  %1223 = vmatmul.mubr.f32.gmra.mrb[0].mxu0 %v91
  %v1224 = vpop.f32.mrb[0].mxu0
  %v1225 = vadd.f32 0.0, %v1224
  %v1226 = vpop.f32.mrb[0].mxu0
  %v1227 = vadd.f32 0.0, %v1226
  %1228 = vmatprep.mubr.f32.mxu0 0.0
  %1229 = vmatmul.mubr.f32.gmra.mrb[0].mxu0 %v94
  %v1230 = vpop.f32.mrb[0].mxu0
  %v1231 = vadd.f32 0.0, %v1230
  %v1232 = vpop.f32.mrb[0].mxu0
  %v1233 = vadd.f32 0.0, %v1232
  %1234 = vmatprep.mubr.f32.mxu0 0.0
  %1235 = vmatmul.mubr.f32.gmra.mrb[0].mxu0 %v97
  %v1236 = vpop.f32.mrb[0].mxu0
  %v1237 = vadd.f32 0.0, %v1236
  %v1238 = vpop.f32.mrb[0].mxu0
  %v1239 = vadd.f32 0.0, %v1238
  %1240 = vmatprep.mubr.f32.mxu0 0.0
  %1241 = vmatmul.mubr.f32.gmra.mrb[0].mxu0 %v100
  %v1242 = vpop.f32.mrb[0].mxu0
  %v1243 = vadd.f32 0.0, %v1242
  %v1244 = vpop.f32.mrb[0].mxu0
  %v1245 = vadd.f32 0.0, %v1244
  %1246 = vmatprep.mubr.f32.mxu0 0.0
  %1247 = vmatmul.mubr.f32.gmra.mrb[0].mxu0 %v103
  %v1248 = vpop.f32.mrb[0].mxu0
  %v1249 = vadd.f32 0.0, %v1248
  %v1250 = vpop.f32.mrb[0].mxu0
  %v1251 = vadd.f32 0.0, %v1250
  %1252 = vmatprep.mubr.f32.mxu0 0.0
  %1253 = vmatmul.mubr.f32.gmra.mrb[0].mxu0 %v106
  %v1254 = vpop.f32.mrb[0].mxu0
  %v1255 = vadd.f32 0.0, %v1254
  %v1256 = vpop.f32.mrb[0].mxu0
  %v1257 = vadd.f32 0.0, %v1256
  %1258 = vmatprep.mubr.f32.mxu0 0.0
  %1259 = vmatmul.mubr.f32.gmra.mrb[0].mxu0 %v109
  %v1260 = vpop.f32.mrb[0].mxu0
  %v1261 = vadd.f32 0.0, %v1260
  %v1262 = vpop.f32.mrb[0].mxu0
  %v1263 = vadd.f32 0.0, %v1262
  %1264 = vmatprep.mubr.f32.mxu0 0.0
  %1265 = vmatmul.mubr.f32.gmra.mrb[0].mxu0 %v112
  %v1266 = vpop.f32.mrb[0].mxu0
  %v1267 = vadd.f32 0.0, %v1266
  %v1268 = vpop.f32.mrb[0].mxu0
  %v1269 = vadd.f32 0.0, %v1268
  %1270 = vmatprep.mubr.f32.mxu0 0.0
  %1271 = vmatmul.mubr.f32.gmra.mrb[0].mxu0 %v115
  %v1272 = vpop.f32.mrb[0].mxu0
  %v1273 = vadd.f32 0.0, %v1272
  %v1274 = vpop.f32.mrb[0].mxu0
  %v1275 = vadd.f32 0.0, %v1274
  %1276 = vmatprep.mubr.f32.mxu0 0.0
  %1277 = vmatmul.mubr.f32.gmra.mrb[0].mxu0 %v118
  %v1278 = vpop.f32.mrb[0].mxu0
  %v1279 = vadd.f32 0.0, %v1278
  %v1280 = vpop.f32.mrb[0].mxu0
  %v1281 = vadd.f32 0.0, %v1280
  %1282 = vmatprep.mubr.f32.mxu0 0.0
  %1283 = vmatmul.mubr.f32.gmra.mrb[0].mxu0 %v121
  %v1284 = vpop.f32.mrb[0].mxu0
  %v1285 = vadd.f32 0.0, %v1284
  %v1286 = vpop.f32.mrb[0].mxu0
  %v1287 = vadd.f32 0.0, %v1286
  %1288 = vmatprep.mubr.f32.mxu0 0.0
  %1289 = vmatmul.mubr.f32.gmra.mrb[0].mxu0 %v124
  %v1290 = vpop.f32.mrb[0].mxu0
  %v1291 = vadd.f32 0.0, %v1290
  %v1292 = vpop.f32.mrb[0].mxu0
  %v1293 = vadd.f32 0.0, %v1292
  %1294 = vmatprep.mubr.f32.mxu0 0.0
  %1295 = vmatmul.mubr.f32.gmra.mrb[0].mxu0 %v127
  %v1296 = vpop.f32.mrb[0].mxu0
  %v1297 = vadd.f32 0.0, %v1296
  %v1298 = vpop.f32.mrb[0].mxu0
  %v1299 = vadd.f32 0.0, %v1298
  %1300 = vmatprep.mubr.f32.mxu0 0.0
  %1301 = vmatmul.mubr.f32.gmra.mrb[0].mxu0 %v130
  %v1302 = vpop.f32.mrb[0].mxu0
  %v1303 = vadd.f32 0.0, %v1302
  %v1304 = vpop.f32.mrb[0].mxu0
  %v1305 = vadd.f32 0.0, %v1304
  %1306 = vmatprep.mubr.f32.mxu0 0.0
  %1307 = vmatmul.mubr.f32.gmra.mrb[0].mxu0 %v133
  %v1308 = vpop.f32.mrb[0].mxu0
  %v1309 = vadd.f32 0.0, %v1308
  %v1310 = vpop.f32.mrb[0].mxu0
  %v1311 = vadd.f32 0.0, %v1310
  %1312 = vmatprep.mubr.f32.mxu0 0.0
  %1313 = vmatmul.mubr.f32.gmra.mrb[0].mxu0 %v136
  %v1314 = vpop.f32.mrb[0].mxu0
  %v1315 = vadd.f32 0.0, %v1314
  %v1316 = vpop.f32.mrb[0].mxu0
  %v1317 = vadd.f32 0.0, %v1316
  %1318 = vmatprep.mubr.f32.mxu0 0.0
  %1319 = vmatmul.mubr.f32.gmra.mrb[0].mxu0 %v139
  %v1320 = vpop.f32.mrb[0].mxu0
  %v1321 = vadd.f32 0.0, %v1320
  %v1322 = vpop.f32.mrb[0].mxu0
  %v1323 = vadd.f32 0.0, %v1322
  %1324 = vmatprep.mubr.f32.mxu0 0.0
  %1325 = vmatmul.mubr.f32.gmra.mrb[0].mxu0 %v142
  %v1326 = vpop.f32.mrb[0].mxu0
  %v1327 = vadd.f32 0.0, %v1326
  %v1328 = vpop.f32.mrb[0].mxu0
  %v1329 = vadd.f32 0.0, %v1328
  %1330 = vmatprep.mubr.f32.mxu0 0.0
  %1331 = vmatmul.mubr.f32.gmra.mrb[0].mxu0 %v145
  %v1332 = vpop.f32.mrb[0].mxu0
  %v1333 = vadd.f32 0.0, %v1332
  %v1334 = vpop.f32.mrb[0].mxu0
  %v1335 = vadd.f32 0.0, %v1334
  %1336 = vmatprep.mubr.f32.mxu0 0.0
  %1337 = vmatmul.mubr.f32.gmra.mrb[0].mxu0 %v148
  %v1338 = vpop.f32.mrb[0].mxu0
  %v1339 = vadd.f32 0.0, %v1338
  %v1340 = vpop.f32.mrb[0].mxu0
  %v1341 = vadd.f32 0.0, %v1340
  %1342 = vmatprep.mubr.f32.mxu0 0.0
  %1343 = vmatmul.mubr.f32.gmra.mrb[0].mxu0 %v594
  %v1344 = vpop.f32.mrb[0].mxu0
  %v1345 = vadd.f32 0.0, %v1344
  %v1346 = vpop.f32.mrb[0].mxu0
  %v1347 = vadd.f32 0.0, %v1346
  %1348 = vmatprep.mubr.f32.mxu0 0.0
  %1349 = vmatmul.mubr.f32.gmra.mrb[0].mxu0 %v869
  %v1350 = vpop.f32.mrb[0].mxu0
  %v1351 = vadd.f32 0.0, %v1350
  %v1352 = vpop.f32.mrb[0].mxu0
  %v1353 = vadd.f32 0.0, %v1352
  %1354 = vmatprep.mubr.f32.mxu0 0.0
  %1355 = vmatmul.mubr.f32.gmra.mrb[0].mxu0 %v1144
  %v1356 = vpop.f32.mrb[0].mxu0
  %v1357 = vadd.f32 0.0, %v1356
  %v1358 = vpop.f32.mrb[0].mxu0
  %v1359 = vadd.f32 0.0, %v1358
  %1360 = vdwg.mxu0
  %v1361 = vadd.f32 %v1086, %v1219
  %v1362 = vadd.f32 %v1087, %v1221
  %v1363 = vadd.f32 %v1088, %v1225
  %v1364 = vadd.f32 %v1089, %v1227
  %v1365 = vadd.f32 %v1090, %v1231
  %v1366 = vadd.f32 %v1091, %v1233
  %v1367 = vadd.f32 %v1092, %v1237
  %v1368 = vadd.f32 %v1093, %v1239
  %v1369 = vadd.f32 %v1094, %v1243
  %v1370 = vadd.f32 %v1095, %v1245
  %v1371 = vadd.f32 %v1096, %v1249
  %v1372 = vadd.f32 %v1097, %v1251
  %v1373 = vadd.f32 %v1098, %v1255
  %v1374 = vadd.f32 %v1099, %v1257
  %v1375 = vadd.f32 %v1100, %v1261
  %v1376 = vadd.f32 %v1101, %v1263
  %v1377 = vadd.f32 %v1102, %v1267
  %v1378 = vadd.f32 %v1103, %v1269
  %v1379 = vadd.f32 %v1104, %v1273
  %v1380 = vadd.f32 %v1105, %v1275
  %v1381 = vadd.f32 %v1106, %v1279
  %v1382 = vadd.f32 %v1107, %v1281
  %v1383 = vadd.f32 %v1108, %v1285
  %v1384 = vadd.f32 %v1109, %v1287
  %v1385 = vadd.f32 %v1110, %v1291
  %v1386 = vadd.f32 %v1111, %v1293
  %v1387 = vadd.f32 %v1112, %v1297
  %v1388 = vadd.f32 %v1113, %v1299
  %v1389 = vadd.f32 %v1114, %v1303
  %v1390 = vadd.f32 %v1115, %v1305
  %v1391 = vadd.f32 %v1116, %v1309
  %v1392 = vadd.f32 %v1117, %v1311
  %v1393 = vadd.f32 %v1118, %v1315
  %v1394 = vadd.f32 %v1119, %v1317
  %v1395 = vadd.f32 %v1120, %v1321
  %v1396 = vadd.f32 %v1121, %v1323
  %v1397 = vadd.f32 %v1122, %v1327
  %v1398 = vadd.f32 %v1123, %v1329
  %v1399 = vadd.f32 %v1124, %v1333
  %v1400 = vadd.f32 %v1125, %v1335
  %v1401 = vadd.f32 %v1126, %v1339
  %v1402 = vadd.f32 %v1127, %v1341
  %v1403 = vadd.f32 %v1128, %v1345
  %v1404 = vadd.f32 %v1129, %v1347
  %v1405 = vadd.f32 %v1130, %v1351
  %v1406 = vadd.f32 %v1131, %v1353
  %v1407 = vadd.f32 %v1132, %v1357
  %v1408 = vadd.f32 %v1133, %v1359
  %v1409 = vld [vmem:[%s2] sm:$0x3]
  %v1411 = vlaneseq
  %v1412 = vshrl.u32 %v1411, 7
  %v1413 = vsub.s32 0, %v1412
  %v1414 = vrot.slane %v1409, %v1413
  %v1415 = vlaneseq
  %v1416 = vshrl.u32 %v1415, 7
  %v1417 = vsub.s32 1, %v1416
  %v1418 = vrot.slane %v1409, %v1417
  %v1421 = vadd.f32 %v1361, %v1414
  %v1422 = vadd.f32 %v1362, %v1418
  %v1423 = vadd.f32 %v1363, %v1414
  %v1424 = vadd.f32 %v1364, %v1418
  %v1425 = vadd.f32 %v1365, %v1414
  %v1426 = vadd.f32 %v1366, %v1418
  %v1427 = vadd.f32 %v1367, %v1414
  %v1428 = vadd.f32 %v1368, %v1418
  %v1429 = vadd.f32 %v1369, %v1414
  %v1430 = vadd.f32 %v1370, %v1418
  %v1431 = vadd.f32 %v1371, %v1414
  %v1432 = vadd.f32 %v1372, %v1418
  %v1433 = vadd.f32 %v1373, %v1414
  %v1434 = vadd.f32 %v1374, %v1418
  %v1435 = vadd.f32 %v1375, %v1414
  %v1436 = vadd.f32 %v1376, %v1418
  %v1437 = vadd.f32 %v1377, %v1414
  %v1438 = vadd.f32 %v1378, %v1418
  %v1439 = vadd.f32 %v1379, %v1414
  %v1440 = vadd.f32 %v1380, %v1418
  %v1441 = vadd.f32 %v1381, %v1414
  %v1442 = vadd.f32 %v1382, %v1418
  %v1443 = vadd.f32 %v1383, %v1414
  %v1444 = vadd.f32 %v1384, %v1418
  %v1445 = vadd.f32 %v1385, %v1414
  %v1446 = vadd.f32 %v1386, %v1418
  %v1447 = vadd.f32 %v1387, %v1414
  %v1448 = vadd.f32 %v1388, %v1418
  %v1449 = vadd.f32 %v1389, %v1414
  %v1450 = vadd.f32 %v1390, %v1418
  %v1451 = vadd.f32 %v1391, %v1414
  %v1452 = vadd.f32 %v1392, %v1418
  %v1453 = vadd.f32 %v1393, %v1414
  %v1454 = vadd.f32 %v1394, %v1418
  %v1455 = vadd.f32 %v1395, %v1414
  %v1456 = vadd.f32 %v1396, %v1418
  %v1457 = vadd.f32 %v1397, %v1414
  %v1458 = vadd.f32 %v1398, %v1418
  %v1459 = vadd.f32 %v1399, %v1414
  %v1460 = vadd.f32 %v1400, %v1418
  %v1461 = vadd.f32 %v1401, %v1414
  %v1462 = vadd.f32 %v1402, %v1418
  %v1463 = vadd.f32 %v1403, %v1414
  %v1464 = vadd.f32 %v1404, %v1418
  %v1465 = vadd.f32 %v1405, %v1414
  %v1466 = vadd.f32 %v1406, %v1418
  %v1467 = vadd.f32 %v1407, %v1414
  %v1468 = vadd.f32 %v1408, %v1418
  %v1469 = vmax.f32 %v1421, 0.0
  %v1470 = vmax.f32 %v1422, 0.0
  %v1471 = vmax.f32 %v1423, 0.0
  %v1472 = vmax.f32 %v1424, 0.0
  %v1473 = vmax.f32 %v1425, 0.0
  %v1474 = vmax.f32 %v1426, 0.0
  %v1475 = vmax.f32 %v1427, 0.0
  %v1476 = vmax.f32 %v1428, 0.0
  %v1477 = vmax.f32 %v1429, 0.0
  %v1478 = vmax.f32 %v1430, 0.0
  %v1479 = vmax.f32 %v1431, 0.0
  %v1480 = vmax.f32 %v1432, 0.0
  %v1481 = vmax.f32 %v1433, 0.0
  %v1482 = vmax.f32 %v1434, 0.0
  %v1483 = vmax.f32 %v1435, 0.0
  %v1484 = vmax.f32 %v1436, 0.0
  %v1485 = vmax.f32 %v1437, 0.0
  %v1486 = vmax.f32 %v1438, 0.0
  %v1487 = vmax.f32 %v1439, 0.0
  %v1488 = vmax.f32 %v1440, 0.0
  %v1489 = vmax.f32 %v1441, 0.0
  %v1490 = vmax.f32 %v1442, 0.0
  %v1491 = vmax.f32 %v1443, 0.0
  %v1492 = vmax.f32 %v1444, 0.0
  %v1493 = vmax.f32 %v1445, 0.0
  %v1494 = vmax.f32 %v1446, 0.0
  %v1495 = vmax.f32 %v1447, 0.0
  %v1496 = vmax.f32 %v1448, 0.0
  %v1497 = vmax.f32 %v1449, 0.0
  %v1498 = vmax.f32 %v1450, 0.0
  %v1499 = vmax.f32 %v1451, 0.0
  %v1500 = vmax.f32 %v1452, 0.0
  %v1501 = vmax.f32 %v1453, 0.0
  %v1502 = vmax.f32 %v1454, 0.0
  %v1503 = vmax.f32 %v1455, 0.0
  %v1504 = vmax.f32 %v1456, 0.0
  %v1505 = vmax.f32 %v1457, 0.0
  %v1506 = vmax.f32 %v1458, 0.0
  %v1507 = vmax.f32 %v1459, 0.0
  %v1508 = vmax.f32 %v1460, 0.0
  %v1509 = vmax.f32 %v1461, 0.0
  %v1510 = vmax.f32 %v1462, 0.0
  %v1511 = vmax.f32 %v1463, 0.0
  %v1512 = vmax.f32 %v1464, 0.0
  %v1513 = vmax.f32 %v1465, 0.0
  %v1514 = vmax.f32 %v1466, 0.0
  %v1515 = vmax.f32 %v1467, 0.0
  %v1516 = vmax.f32 %v1468, 0.0
  %v1517 = vmax.f32 %v1469, %v1470
  %v1518 = vmax.f32 %v1471, %v1472
  %v1519 = vmax.f32 %v1473, %v1474
  %v1520 = vmax.f32 %v1475, %v1476
  %v1521 = vmax.f32 %v1477, %v1478
  %v1522 = vmax.f32 %v1479, %v1480
  %v1523 = vmax.f32 %v1481, %v1482
  %v1524 = vmax.f32 %v1483, %v1484
  %v1525 = vmax.f32 %v1485, %v1486
  %v1526 = vmax.f32 %v1487, %v1488
  %v1527 = vmax.f32 %v1489, %v1490
  %v1528 = vmax.f32 %v1491, %v1492
  %v1529 = vmax.f32 %v1493, %v1494
  %v1530 = vmax.f32 %v1495, %v1496
  %v1531 = vmax.f32 %v1497, %v1498
  %v1532 = vmax.f32 %v1499, %v1500
  %v1533 = vmax.f32 %v1501, %v1502
  %v1534 = vmax.f32 %v1503, %v1504
  %v1535 = vmax.f32 %v1505, %v1506
  %v1536 = vmax.f32 %v1507, %v1508
  %v1537 = vmax.f32 %v1509, %v1510
  %v1538 = vmax.f32 %v1511, %v1512
  %v1539 = vmax.f32 %v1513, %v1514
  %v1540 = vmax.f32 %v1515, %v1516
  %v1541 = vmax.f32 %v1517, %v1518
  %v1542 = vmax.f32 %v1519, %v1520
  %v1543 = vmax.f32 %v1521, %v1522
  %v1544 = vmax.f32 %v1523, %v1524
  %v1545 = vmax.f32 %v1525, %v1526
  %v1546 = vmax.f32 %v1527, %v1528
  %v1547 = vmax.f32 %v1529, %v1530
  %v1548 = vmax.f32 %v1531, %v1532
  %v1549 = vmax.f32 %v1533, %v1534
  %v1550 = vmax.f32 %v1535, %v1536
  %v1551 = vmax.f32 %v1537, %v1538
  %v1552 = vmax.f32 %v1539, %v1540
  %v1553 = vld [vmem:[%s3] sm:$0xff]
  %v1554 = vld [vmem:[%s3 + $0x8] sm:$0xff]
  %v1555 = vld [vmem:[%s3 + $0x10] sm:$0xff]
  %v1556 = vld [vmem:[%s3 + $0x18] sm:$0xff]
  %v1557 = vld [vmem:[%s3 + $0x20] sm:$0xff]
  %v1558 = vld [vmem:[%s3 + $0x28] sm:$0xff]
  %v1559 = vld [vmem:[%s3 + $0x30] sm:$0xff]
  %v1560 = vld [vmem:[%s3 + $0x38] sm:$0xff]
  %v1561 = vld [vmem:[%s3 + $0x40] sm:$0xff]
  %v1562 = vld [vmem:[%s3 + $0x48] sm:$0xff]
  %v1563 = vld [vmem:[%s3 + $0x50] sm:$0xff]
  %v1564 = vld [vmem:[%s3 + $0x58] sm:$0xff]
  %v1565 = vld [vmem:[%s3 + $0x60] sm:$0xff]
  %v1566 = vld [vmem:[%s3 + $0x68] sm:$0xff]
  %v1567 = vld [vmem:[%s3 + $0x70] sm:$0xff]
  %v1568 = vld [vmem:[%s3 + $0x78] sm:$0xff]
  %v1569 = vld [vmem:[%s3 + $0x80] sm:$0xff]
  %v1570 = vld [vmem:[%s3 + $0x88] sm:$0xff]
  %v1571 = vld [vmem:[%s3 + $0x90] sm:$0xff]
  %v1572 = vld [vmem:[%s3 + $0x98] sm:$0xff]
  %v1573 = vld [vmem:[%s3 + $0xa0] sm:$0xff]
  %v1574 = vld [vmem:[%s3 + $0xa8] sm:$0xff]
  %v1575 = vld [vmem:[%s3 + $0xb0] sm:$0xff]
  %v1576 = vld [vmem:[%s3 + $0xb8] sm:$0xff]
  %v1577 = vld [vmem:[%s3 + $0xc0] sm:$0xff]
  %v1578 = vld [vmem:[%s3 + $0xc8] sm:$0xff]
  %v1579 = vld [vmem:[%s3 + $0xd0] sm:$0xff]
  %v1580 = vld [vmem:[%s3 + $0xd8] sm:$0xff]
  %v1581 = vld [vmem:[%s3 + $0xe0] sm:$0xff]
  %v1582 = vld [vmem:[%s3 + $0xe8] sm:$0xff]
  %v1583 = vld [vmem:[%s3 + $0xf0] sm:$0xff]
  %v1584 = vld [vmem:[%s3 + $0xf8] sm:$0xff]
  %s1585 = scalar_lea.vmem %s3, 256
  %v1586 = vld [vmem:[%s1585] sm:$0xff]
  %v1587 = vld [vmem:[%s1585 + $0x8] sm:$0xff]
  %v1588 = vld [vmem:[%s1585 + $0x10] sm:$0xff]
  %v1589 = vld [vmem:[%s1585 + $0x18] sm:$0xff]
  %v1590 = vld [vmem:[%s1585 + $0x20] sm:$0xff]
  %v1591 = vld [vmem:[%s1585 + $0x28] sm:$0xff]
  %v1592 = vld [vmem:[%s1585 + $0x30] sm:$0xff]
  %v1593 = vld [vmem:[%s1585 + $0x38] sm:$0xff]
  %v1594 = vld [vmem:[%s1585 + $0x40] sm:$0xff]
  %v1595 = vld [vmem:[%s1585 + $0x48] sm:$0xff]
  %v1596 = vld [vmem:[%s1585 + $0x50] sm:$0xff]
  %v1597 = vld [vmem:[%s1585 + $0x58] sm:$0xff]
  %v1598 = vld [vmem:[%s1585 + $0x60] sm:$0xff]
  %v1599 = vld [vmem:[%s1585 + $0x68] sm:$0xff]
  %v1600 = vld [vmem:[%s1585 + $0x70] sm:$0xff]
  %v1601 = vld [vmem:[%s1585 + $0x78] sm:$0xff]
  %v1602 = vld [vmem:[%s1585 + $0x80] sm:$0xff]
  %v1603 = vld [vmem:[%s1585 + $0x88] sm:$0xff]
  %v1604 = vld [vmem:[%s1585 + $0x90] sm:$0xff]
  %v1605 = vld [vmem:[%s1585 + $0x98] sm:$0xff]
  %v1606 = vld [vmem:[%s1585 + $0xa0] sm:$0xff]
  %v1607 = vld [vmem:[%s1585 + $0xa8] sm:$0xff]
  %v1608 = vld [vmem:[%s1585 + $0xb0] sm:$0xff]
  %v1609 = vld [vmem:[%s1585 + $0xb8] sm:$0xff]
  %v1610 = vld [vmem:[%s1585 + $0xc0] sm:$0xff]
  %v1611 = vld [vmem:[%s1585 + $0xc8] sm:$0xff]
  %v1612 = vld [vmem:[%s1585 + $0xd0] sm:$0xff]
  %v1613 = vld [vmem:[%s1585 + $0xd8] sm:$0xff]
  %v1614 = vld [vmem:[%s1585 + $0xe0] sm:$0xff]
  %v1615 = vld [vmem:[%s1585 + $0xe8] sm:$0xff]
  %v1616 = vld [vmem:[%s1585 + $0xf0] sm:$0xff]
  %v1617 = vld [vmem:[%s1585 + $0xf8] sm:$0xff]
  %1618 = vmatprep.subr.mxu0 %v1587
  %1619 = vmatpush1.msra.mxu0 %v1586
  %1620 = vmatprep.subr.mxu0 %v1589
  %1621 = vmatpush1.msra.mxu0 %v1588
  %1622 = vmatprep.subr.mxu0 %v1591
  %1623 = vmatpush1.msra.mxu0 %v1590
  %1624 = vmatprep.subr.mxu0 %v1593
  %1625 = vmatpush1.msra.mxu0 %v1592
  %1626 = vmatprep.subr.mxu0 %v1595
  %1627 = vmatpush1.msra.mxu0 %v1594
  %1628 = vmatprep.subr.mxu0 %v1597
  %1629 = vmatpush1.msra.mxu0 %v1596
  %1630 = vmatprep.subr.mxu0 %v1599
  %1631 = vmatpush1.msra.mxu0 %v1598
  %1632 = vmatprep.subr.mxu0 %v1601
  %1633 = vmatpush1.msra.mxu0 %v1600
  %1634 = vmatprep.subr.mxu0 %v1603
  %1635 = vmatpush1.msra.mxu0 %v1602
  %1636 = vmatprep.subr.mxu0 %v1605
  %1637 = vmatpush1.msra.mxu0 %v1604
  %1638 = vmatprep.subr.mxu0 %v1607
  %1639 = vmatpush1.msra.mxu0 %v1606
  %1640 = vmatprep.subr.mxu0 %v1609
  %1641 = vmatpush1.msra.mxu0 %v1608
  %1642 = vmatprep.subr.mxu0 %v1611
  %1643 = vmatpush1.msra.mxu0 %v1610
  %1644 = vmatprep.subr.mxu0 %v1613
  %1645 = vmatpush1.msra.mxu0 %v1612
  %1646 = vmatprep.subr.mxu0 %v1615
  %1647 = vmatpush1.msra.mxu0 %v1614
  %1648 = vmatprep.subr.mxu0 %v1617
  %1649 = vmatpush1.msra.mxu0 %v1616
  %1650 = vmatprep.subr.mxu0 0.0
  %1651 = vmatpush1.msra.mxu0 0.0
  %1652 = vmatprep.subr.mxu0 0.0
  %1653 = vmatpush1.msra.mxu0 0.0
  %1654 = vmatprep.subr.mxu0 0.0
  %1655 = vmatpush1.msra.mxu0 0.0
  %1656 = vmatprep.subr.mxu0 0.0
  %1657 = vmatpush1.msra.mxu0 0.0
  %1658 = vmatprep.subr.mxu0 0.0
  %1659 = vmatpush1.msra.mxu0 0.0
  %1660 = vmatprep.subr.mxu0 0.0
  %1661 = vmatpush1.msra.mxu0 0.0
  %1662 = vmatprep.subr.mxu0 0.0
  %1663 = vmatpush1.msra.mxu0 0.0
  %1664 = vmatprep.subr.mxu0 0.0
  %1665 = vmatpush1.msra.mxu0 0.0
  %1666 = vmatprep.subr.mxu0 0.0
  %1667 = vmatpush1.msra.mxu0 0.0
  %1668 = vmatprep.subr.mxu0 0.0
  %1669 = vmatpush1.msra.mxu0 0.0
  %1670 = vmatprep.subr.mxu0 0.0
  %1671 = vmatpush1.msra.mxu0 0.0
  %1672 = vmatprep.subr.mxu0 0.0
  %1673 = vmatpush1.msra.mxu0 0.0
  %1674 = vmatprep.subr.mxu0 0.0
  %1675 = vmatpush1.msra.mxu0 0.0
  %1676 = vmatprep.subr.mxu0 0.0
  %1677 = vmatpush1.msra.mxu0 0.0
  %1678 = vmatprep.subr.mxu0 0.0
  %1679 = vmatpush1.msra.mxu0 0.0
  %1680 = vmatprep.subr.mxu0 0.0
  %1681 = vmatpush1.msra.mxu0 0.0
  %1682 = vmatprep.mubr.f32.mxu0 0.0
  %1683 = vmatmul.mubr.f32.gmra.mrb[0].mxu0 %v1542
  %v1684 = vpop.f32.mrb[0].mxu0
  %v1685 = vadd.f32 0.0, %v1684
  %v1686 = vpop.f32.mrb[0].mxu0
  %v1687 = vadd.f32 0.0, %v1686
  %1688 = vmatprep.mubr.f32.mxu0 0.0
  %1689 = vmatmul.mubr.f32.gmra.mrb[0].mxu0 %v1543
  %v1690 = vpop.f32.mrb[0].mxu0
  %v1691 = vadd.f32 0.0, %v1690
  %v1692 = vpop.f32.mrb[0].mxu0
  %v1693 = vadd.f32 0.0, %v1692
  %1694 = vmatprep.mubr.f32.mxu0 0.0
  %1695 = vmatmul.mubr.f32.gmra.mrb[0].mxu0 %v1544
  %v1696 = vpop.f32.mrb[0].mxu0
  %v1697 = vadd.f32 0.0, %v1696
  %v1698 = vpop.f32.mrb[0].mxu0
  %v1699 = vadd.f32 0.0, %v1698
  %1700 = vmatprep.mubr.f32.mxu0 0.0
  %1701 = vmatmul.mubr.f32.gmra.mrb[0].mxu0 %v1545
  %v1702 = vpop.f32.mrb[0].mxu0
  %v1703 = vadd.f32 0.0, %v1702
  %v1704 = vpop.f32.mrb[0].mxu0
  %v1705 = vadd.f32 0.0, %v1704
  %1706 = vmatprep.mubr.f32.mxu0 0.0
  %1707 = vmatmul.mubr.f32.gmra.mrb[0].mxu0 %v1546
  %v1708 = vpop.f32.mrb[0].mxu0
  %v1709 = vadd.f32 0.0, %v1708
  %v1710 = vpop.f32.mrb[0].mxu0
  %v1711 = vadd.f32 0.0, %v1710
  %1712 = vmatprep.mubr.f32.mxu0 0.0
  %1713 = vmatmul.mubr.f32.gmra.mrb[0].mxu0 %v1547
  %v1714 = vpop.f32.mrb[0].mxu0
  %v1715 = vadd.f32 0.0, %v1714
  %v1716 = vpop.f32.mrb[0].mxu0
  %v1717 = vadd.f32 0.0, %v1716
  %1718 = vmatprep.mubr.f32.mxu0 0.0
  %1719 = vmatmul.mubr.f32.gmra.mrb[0].mxu0 %v1548
  %v1720 = vpop.f32.mrb[0].mxu0
  %v1721 = vadd.f32 0.0, %v1720
  %v1722 = vpop.f32.mrb[0].mxu0
  %v1723 = vadd.f32 0.0, %v1722
  %1724 = vmatprep.mubr.f32.mxu0 0.0
  %1725 = vmatmul.mubr.f32.gmra.mrb[0].mxu0 %v1549
  %v1726 = vpop.f32.mrb[0].mxu0
  %v1727 = vadd.f32 0.0, %v1726
  %v1728 = vpop.f32.mrb[0].mxu0
  %v1729 = vadd.f32 0.0, %v1728
  %1730 = vmatprep.mubr.f32.mxu0 0.0
  %1731 = vmatmul.mubr.f32.gmra.mrb[0].mxu0 %v1550
  %v1732 = vpop.f32.mrb[0].mxu0
  %v1733 = vadd.f32 0.0, %v1732
  %v1734 = vpop.f32.mrb[0].mxu0
  %v1735 = vadd.f32 0.0, %v1734
  %1736 = vmatprep.mubr.f32.mxu0 0.0
  %1737 = vmatmul.mubr.f32.gmra.mrb[0].mxu0 %v1551
  %v1738 = vpop.f32.mrb[0].mxu0
  %v1739 = vadd.f32 0.0, %v1738
  %v1740 = vpop.f32.mrb[0].mxu0
  %v1741 = vadd.f32 0.0, %v1740
  %1742 = vdwg.mxu0
  %1743 = vmatprep.subr.mxu0 %v1554
  %1744 = vmatpush1.msra.mxu0 %v1553
  %1745 = vmatprep.subr.mxu0 %v1556
  %1746 = vmatpush1.msra.mxu0 %v1555
  %1747 = vmatprep.subr.mxu0 %v1558
  %1748 = vmatpush1.msra.mxu0 %v1557
  %1749 = vmatprep.subr.mxu0 %v1560
  %1750 = vmatpush1.msra.mxu0 %v1559
  %1751 = vmatprep.subr.mxu0 %v1562
  %1752 = vmatpush1.msra.mxu0 %v1561
  %1753 = vmatprep.subr.mxu0 %v1564
  %1754 = vmatpush1.msra.mxu0 %v1563
  %1755 = vmatprep.subr.mxu0 %v1566
  %1756 = vmatpush1.msra.mxu0 %v1565
  %1757 = vmatprep.subr.mxu0 %v1568
  %1758 = vmatpush1.msra.mxu0 %v1567
  %1759 = vmatprep.subr.mxu0 %v1570
  %1760 = vmatpush1.msra.mxu0 %v1569
  %1761 = vmatprep.subr.mxu0 %v1572
  %1762 = vmatpush1.msra.mxu0 %v1571
  %1763 = vmatprep.subr.mxu0 %v1574
  %1764 = vmatpush1.msra.mxu0 %v1573
  %1765 = vmatprep.subr.mxu0 %v1576
  %1766 = vmatpush1.msra.mxu0 %v1575
  %1767 = vmatprep.subr.mxu0 %v1578
  %1768 = vmatpush1.msra.mxu0 %v1577
  %1769 = vmatprep.subr.mxu0 %v1580
  %1770 = vmatpush1.msra.mxu0 %v1579
  %1771 = vmatprep.subr.mxu0 %v1582
  %1772 = vmatpush1.msra.mxu0 %v1581
  %1773 = vmatprep.subr.mxu0 %v1584
  %1774 = vmatpush1.msra.mxu0 %v1583
  %1775 = vmatprep.subr.mxu0 0.0
  %1776 = vmatpush1.msra.mxu0 0.0
  %1777 = vmatprep.subr.mxu0 0.0
  %1778 = vmatpush1.msra.mxu0 0.0
  %1779 = vmatprep.subr.mxu0 0.0
  %1780 = vmatpush1.msra.mxu0 0.0
  %1781 = vmatprep.subr.mxu0 0.0
  %1782 = vmatpush1.msra.mxu0 0.0
  %1783 = vmatprep.subr.mxu0 0.0
  %1784 = vmatpush1.msra.mxu0 0.0
  %1785 = vmatprep.subr.mxu0 0.0
  %1786 = vmatpush1.msra.mxu0 0.0
  %1787 = vmatprep.subr.mxu0 0.0
  %1788 = vmatpush1.msra.mxu0 0.0
  %1789 = vmatprep.subr.mxu0 0.0
  %1790 = vmatpush1.msra.mxu0 0.0
  %1791 = vmatprep.subr.mxu0 0.0
  %1792 = vmatpush1.msra.mxu0 0.0
  %1793 = vmatprep.subr.mxu0 0.0
  %1794 = vmatpush1.msra.mxu0 0.0
  %1795 = vmatprep.subr.mxu0 0.0
  %1796 = vmatpush1.msra.mxu0 0.0
  %1797 = vmatprep.subr.mxu0 0.0
  %1798 = vmatpush1.msra.mxu0 0.0
  %1799 = vmatprep.subr.mxu0 0.0
  %1800 = vmatpush1.msra.mxu0 0.0
  %1801 = vmatprep.subr.mxu0 0.0
  %1802 = vmatpush1.msra.mxu0 0.0
  %1803 = vmatprep.subr.mxu0 0.0
  %1804 = vmatpush1.msra.mxu0 0.0
  %1805 = vmatprep.subr.mxu0 0.0
  %1806 = vmatpush1.msra.mxu0 0.0
  %1807 = vmatprep.mubr.f32.mxu0 0.0
  %1808 = vmatmul.mubr.f32.gmra.mrb[0].mxu0 %v1541
  %v1809 = vpop.f32.mrb[0].mxu0
  %v1810 = vadd.f32 %v1685, %v1809
  %v1811 = vpop.f32.mrb[0].mxu0
  %v1812 = vadd.f32 %v1687, %v1811
  %1813 = vmatprep.mubr.f32.mxu0 0.0
  %1814 = vmatmul.mubr.f32.gmra.mrb[0].mxu0 %v1542
  %v1815 = vpop.f32.mrb[0].mxu0
  %v1816 = vadd.f32 %v1691, %v1815
  %v1817 = vpop.f32.mrb[0].mxu0
  %v1818 = vadd.f32 %v1693, %v1817
  %1819 = vmatprep.mubr.f32.mxu0 0.0
  %1820 = vmatmul.mubr.f32.gmra.mrb[0].mxu0 %v1543
  %v1821 = vpop.f32.mrb[0].mxu0
  %v1822 = vadd.f32 %v1697, %v1821
  %v1823 = vpop.f32.mrb[0].mxu0
  %v1824 = vadd.f32 %v1699, %v1823
  %1825 = vmatprep.mubr.f32.mxu0 0.0
  %1826 = vmatmul.mubr.f32.gmra.mrb[0].mxu0 %v1544
  %v1827 = vpop.f32.mrb[0].mxu0
  %v1828 = vadd.f32 %v1703, %v1827
  %v1829 = vpop.f32.mrb[0].mxu0
  %v1830 = vadd.f32 %v1705, %v1829
  %1831 = vmatprep.mubr.f32.mxu0 0.0
  %1832 = vmatmul.mubr.f32.gmra.mrb[0].mxu0 %v1545
  %v1833 = vpop.f32.mrb[0].mxu0
  %v1834 = vadd.f32 %v1709, %v1833
  %v1835 = vpop.f32.mrb[0].mxu0
  %v1836 = vadd.f32 %v1711, %v1835
  %1837 = vmatprep.mubr.f32.mxu0 0.0
  %1838 = vmatmul.mubr.f32.gmra.mrb[0].mxu0 %v1546
  %v1839 = vpop.f32.mrb[0].mxu0
  %v1840 = vadd.f32 %v1715, %v1839
  %v1841 = vpop.f32.mrb[0].mxu0
  %v1842 = vadd.f32 %v1717, %v1841
  %1843 = vmatprep.mubr.f32.mxu0 0.0
  %1844 = vmatmul.mubr.f32.gmra.mrb[0].mxu0 %v1547
  %v1845 = vpop.f32.mrb[0].mxu0
  %v1846 = vadd.f32 %v1721, %v1845
  %v1847 = vpop.f32.mrb[0].mxu0
  %v1848 = vadd.f32 %v1723, %v1847
  %1849 = vmatprep.mubr.f32.mxu0 0.0
  %1850 = vmatmul.mubr.f32.gmra.mrb[0].mxu0 %v1548
  %v1851 = vpop.f32.mrb[0].mxu0
  %v1852 = vadd.f32 %v1727, %v1851
  %v1853 = vpop.f32.mrb[0].mxu0
  %v1854 = vadd.f32 %v1729, %v1853
  %1855 = vmatprep.mubr.f32.mxu0 0.0
  %1856 = vmatmul.mubr.f32.gmra.mrb[0].mxu0 %v1549
  %v1857 = vpop.f32.mrb[0].mxu0
  %v1858 = vadd.f32 %v1733, %v1857
  %v1859 = vpop.f32.mrb[0].mxu0
  %v1860 = vadd.f32 %v1735, %v1859
  %1861 = vmatprep.mubr.f32.mxu0 0.0
  %1862 = vmatmul.mubr.f32.gmra.mrb[0].mxu0 %v1550
  %v1863 = vpop.f32.mrb[0].mxu0
  %v1864 = vadd.f32 %v1739, %v1863
  %v1865 = vpop.f32.mrb[0].mxu0
  %v1866 = vadd.f32 %v1741, %v1865
  %1867 = vdwg.mxu0
  %s1868 = scalar_lea.vmem %s3, 512
  %v1869 = vld [vmem:[%s1868] sm:$0xff]
  %v1870 = vld [vmem:[%s1868 + $0x8] sm:$0xff]
  %v1871 = vld [vmem:[%s1868 + $0x10] sm:$0xff]
  %v1872 = vld [vmem:[%s1868 + $0x18] sm:$0xff]
  %v1873 = vld [vmem:[%s1868 + $0x20] sm:$0xff]
  %v1874 = vld [vmem:[%s1868 + $0x28] sm:$0xff]
  %v1875 = vld [vmem:[%s1868 + $0x30] sm:$0xff]
  %v1876 = vld [vmem:[%s1868 + $0x38] sm:$0xff]
  %v1877 = vld [vmem:[%s1868 + $0x40] sm:$0xff]
  %v1878 = vld [vmem:[%s1868 + $0x48] sm:$0xff]
  %v1879 = vld [vmem:[%s1868 + $0x50] sm:$0xff]
  %v1880 = vld [vmem:[%s1868 + $0x58] sm:$0xff]
  %v1881 = vld [vmem:[%s1868 + $0x60] sm:$0xff]
  %v1882 = vld [vmem:[%s1868 + $0x68] sm:$0xff]
  %v1883 = vld [vmem:[%s1868 + $0x70] sm:$0xff]
  %v1884 = vld [vmem:[%s1868 + $0x78] sm:$0xff]
  %v1885 = vld [vmem:[%s1868 + $0x80] sm:$0xff]
  %v1886 = vld [vmem:[%s1868 + $0x88] sm:$0xff]
  %v1887 = vld [vmem:[%s1868 + $0x90] sm:$0xff]
  %v1888 = vld [vmem:[%s1868 + $0x98] sm:$0xff]
  %v1889 = vld [vmem:[%s1868 + $0xa0] sm:$0xff]
  %v1890 = vld [vmem:[%s1868 + $0xa8] sm:$0xff]
  %v1891 = vld [vmem:[%s1868 + $0xb0] sm:$0xff]
  %v1892 = vld [vmem:[%s1868 + $0xb8] sm:$0xff]
  %v1893 = vld [vmem:[%s1868 + $0xc0] sm:$0xff]
  %v1894 = vld [vmem:[%s1868 + $0xc8] sm:$0xff]
  %v1895 = vld [vmem:[%s1868 + $0xd0] sm:$0xff]
  %v1896 = vld [vmem:[%s1868 + $0xd8] sm:$0xff]
  %v1897 = vld [vmem:[%s1868 + $0xe0] sm:$0xff]
  %v1898 = vld [vmem:[%s1868 + $0xe8] sm:$0xff]
  %v1899 = vld [vmem:[%s1868 + $0xf0] sm:$0xff]
  %v1900 = vld [vmem:[%s1868 + $0xf8] sm:$0xff]
  %1901 = vmatprep.subr.mxu0 %v1870
  %1902 = vmatpush1.msra.mxu0 %v1869
  %1903 = vmatprep.subr.mxu0 %v1872
  %1904 = vmatpush1.msra.mxu0 %v1871
  %1905 = vmatprep.subr.mxu0 %v1874
  %1906 = vmatpush1.msra.mxu0 %v1873
  %1907 = vmatprep.subr.mxu0 %v1876
  %1908 = vmatpush1.msra.mxu0 %v1875
  %1909 = vmatprep.subr.mxu0 %v1878
  %1910 = vmatpush1.msra.mxu0 %v1877
  %1911 = vmatprep.subr.mxu0 %v1880
  %1912 = vmatpush1.msra.mxu0 %v1879
  %1913 = vmatprep.subr.mxu0 %v1882
  %1914 = vmatpush1.msra.mxu0 %v1881
  %1915 = vmatprep.subr.mxu0 %v1884
  %1916 = vmatpush1.msra.mxu0 %v1883
  %1917 = vmatprep.subr.mxu0 %v1886
  %1918 = vmatpush1.msra.mxu0 %v1885
  %1919 = vmatprep.subr.mxu0 %v1888
  %1920 = vmatpush1.msra.mxu0 %v1887
  %1921 = vmatprep.subr.mxu0 %v1890
  %1922 = vmatpush1.msra.mxu0 %v1889
  %1923 = vmatprep.subr.mxu0 %v1892
  %1924 = vmatpush1.msra.mxu0 %v1891
  %1925 = vmatprep.subr.mxu0 %v1894
  %1926 = vmatpush1.msra.mxu0 %v1893
  %1927 = vmatprep.subr.mxu0 %v1896
  %1928 = vmatpush1.msra.mxu0 %v1895
  %1929 = vmatprep.subr.mxu0 %v1898
  %1930 = vmatpush1.msra.mxu0 %v1897
  %1931 = vmatprep.subr.mxu0 %v1900
  %1932 = vmatpush1.msra.mxu0 %v1899
  %1933 = vmatprep.subr.mxu0 0.0
  %1934 = vmatpush1.msra.mxu0 0.0
  %1935 = vmatprep.subr.mxu0 0.0
  %1936 = vmatpush1.msra.mxu0 0.0
  %1937 = vmatprep.subr.mxu0 0.0
  %1938 = vmatpush1.msra.mxu0 0.0
  %1939 = vmatprep.subr.mxu0 0.0
  %1940 = vmatpush1.msra.mxu0 0.0
  %1941 = vmatprep.subr.mxu0 0.0
  %1942 = vmatpush1.msra.mxu0 0.0
  %1943 = vmatprep.subr.mxu0 0.0
  %1944 = vmatpush1.msra.mxu0 0.0
  %1945 = vmatprep.subr.mxu0 0.0
  %1946 = vmatpush1.msra.mxu0 0.0
  %1947 = vmatprep.subr.mxu0 0.0
  %1948 = vmatpush1.msra.mxu0 0.0
  %1949 = vmatprep.subr.mxu0 0.0
  %1950 = vmatpush1.msra.mxu0 0.0
  %1951 = vmatprep.subr.mxu0 0.0
  %1952 = vmatpush1.msra.mxu0 0.0
  %1953 = vmatprep.subr.mxu0 0.0
  %1954 = vmatpush1.msra.mxu0 0.0
  %1955 = vmatprep.subr.mxu0 0.0
  %1956 = vmatpush1.msra.mxu0 0.0
  %1957 = vmatprep.subr.mxu0 0.0
  %1958 = vmatpush1.msra.mxu0 0.0
  %1959 = vmatprep.subr.mxu0 0.0
  %1960 = vmatpush1.msra.mxu0 0.0
  %1961 = vmatprep.subr.mxu0 0.0
  %1962 = vmatpush1.msra.mxu0 0.0
  %1963 = vmatprep.subr.mxu0 0.0
  %1964 = vmatpush1.msra.mxu0 0.0
  %1965 = vmatprep.mubr.f32.mxu0 0.0
  %1966 = vmatmul.mubr.f32.gmra.mrb[0].mxu0 %v1543
  %v1967 = vpop.f32.mrb[0].mxu0
  %v1968 = vadd.f32 0.0, %v1967
  %v1969 = vpop.f32.mrb[0].mxu0
  %v1970 = vadd.f32 0.0, %v1969
  %1971 = vmatprep.mubr.f32.mxu0 0.0
  %1972 = vmatmul.mubr.f32.gmra.mrb[0].mxu0 %v1544
  %v1973 = vpop.f32.mrb[0].mxu0
  %v1974 = vadd.f32 0.0, %v1973
  %v1975 = vpop.f32.mrb[0].mxu0
  %v1976 = vadd.f32 0.0, %v1975
  %1977 = vmatprep.mubr.f32.mxu0 0.0
  %1978 = vmatmul.mubr.f32.gmra.mrb[0].mxu0 %v1545
  %v1979 = vpop.f32.mrb[0].mxu0
  %v1980 = vadd.f32 0.0, %v1979
  %v1981 = vpop.f32.mrb[0].mxu0
  %v1982 = vadd.f32 0.0, %v1981
  %1983 = vmatprep.mubr.f32.mxu0 0.0
  %1984 = vmatmul.mubr.f32.gmra.mrb[0].mxu0 %v1546
  %v1985 = vpop.f32.mrb[0].mxu0
  %v1986 = vadd.f32 0.0, %v1985
  %v1987 = vpop.f32.mrb[0].mxu0
  %v1988 = vadd.f32 0.0, %v1987
  %1989 = vmatprep.mubr.f32.mxu0 0.0
  %1990 = vmatmul.mubr.f32.gmra.mrb[0].mxu0 %v1547
  %v1991 = vpop.f32.mrb[0].mxu0
  %v1992 = vadd.f32 0.0, %v1991
  %v1993 = vpop.f32.mrb[0].mxu0
  %v1994 = vadd.f32 0.0, %v1993
  %1995 = vmatprep.mubr.f32.mxu0 0.0
  %1996 = vmatmul.mubr.f32.gmra.mrb[0].mxu0 %v1548
  %v1997 = vpop.f32.mrb[0].mxu0
  %v1998 = vadd.f32 0.0, %v1997
  %v1999 = vpop.f32.mrb[0].mxu0
  %v2000 = vadd.f32 0.0, %v1999
  %2001 = vmatprep.mubr.f32.mxu0 0.0
  %2002 = vmatmul.mubr.f32.gmra.mrb[0].mxu0 %v1549
  %v2003 = vpop.f32.mrb[0].mxu0
  %v2004 = vadd.f32 0.0, %v2003
  %v2005 = vpop.f32.mrb[0].mxu0
  %v2006 = vadd.f32 0.0, %v2005
  %2007 = vmatprep.mubr.f32.mxu0 0.0
  %2008 = vmatmul.mubr.f32.gmra.mrb[0].mxu0 %v1550
  %v2009 = vpop.f32.mrb[0].mxu0
  %v2010 = vadd.f32 0.0, %v2009
  %v2011 = vpop.f32.mrb[0].mxu0
  %v2012 = vadd.f32 0.0, %v2011
  %2013 = vmatprep.mubr.f32.mxu0 0.0
  %2014 = vmatmul.mubr.f32.gmra.mrb[0].mxu0 %v1551
  %v2015 = vpop.f32.mrb[0].mxu0
  %v2016 = vadd.f32 0.0, %v2015
  %v2017 = vpop.f32.mrb[0].mxu0
  %v2018 = vadd.f32 0.0, %v2017
  %2019 = vmatprep.mubr.f32.mxu0 0.0
  %2020 = vmatmul.mubr.f32.gmra.mrb[0].mxu0 %v1552
  %v2021 = vpop.f32.mrb[0].mxu0
  %v2022 = vadd.f32 0.0, %v2021
  %v2023 = vpop.f32.mrb[0].mxu0
  %v2024 = vadd.f32 0.0, %v2023
  %2025 = vdwg.mxu0
  %v2026 = vadd.f32 %v1810, %v1968
  %v2027 = vadd.f32 %v1812, %v1970
  %v2028 = vadd.f32 %v1816, %v1974
  %v2029 = vadd.f32 %v1818, %v1976
  %v2030 = vadd.f32 %v1822, %v1980
  %v2031 = vadd.f32 %v1824, %v1982
  %v2032 = vadd.f32 %v1828, %v1986
  %v2033 = vadd.f32 %v1830, %v1988
  %v2034 = vadd.f32 %v1834, %v1992
  %v2035 = vadd.f32 %v1836, %v1994
  %v2036 = vadd.f32 %v1840, %v1998
  %v2037 = vadd.f32 %v1842, %v2000
  %v2038 = vadd.f32 %v1846, %v2004
  %v2039 = vadd.f32 %v1848, %v2006
  %v2040 = vadd.f32 %v1852, %v2010
  %v2041 = vadd.f32 %v1854, %v2012
  %v2042 = vadd.f32 %v1858, %v2016
  %v2043 = vadd.f32 %v1860, %v2018
  %v2044 = vadd.f32 %v1864, %v2022
  %v2045 = vadd.f32 %v1866, %v2024
  %v2046 = vld [vmem:[%s4] sm:$0x3]
  %v2048 = vlaneseq
  %v2049 = vshrl.u32 %v2048, 7
  %v2050 = vsub.s32 0, %v2049
  %v2051 = vrot.slane %v2046, %v2050
  %v2052 = vlaneseq
  %v2053 = vshrl.u32 %v2052, 7
  %v2054 = vsub.s32 1, %v2053
  %v2055 = vrot.slane %v2046, %v2054
  %v2058 = vadd.f32 %v2026, %v2051
  %v2059 = vadd.f32 %v2027, %v2055
  %v2060 = vadd.f32 %v2028, %v2051
  %v2061 = vadd.f32 %v2029, %v2055
  %v2062 = vadd.f32 %v2030, %v2051
  %v2063 = vadd.f32 %v2031, %v2055
  %v2064 = vadd.f32 %v2032, %v2051
  %v2065 = vadd.f32 %v2033, %v2055
  %v2066 = vadd.f32 %v2034, %v2051
  %v2067 = vadd.f32 %v2035, %v2055
  %v2068 = vadd.f32 %v2036, %v2051
  %v2069 = vadd.f32 %v2037, %v2055
  %v2070 = vadd.f32 %v2038, %v2051
  %v2071 = vadd.f32 %v2039, %v2055
  %v2072 = vadd.f32 %v2040, %v2051
  %v2073 = vadd.f32 %v2041, %v2055
  %v2074 = vadd.f32 %v2042, %v2051
  %v2075 = vadd.f32 %v2043, %v2055
  %v2076 = vadd.f32 %v2044, %v2051
  %v2077 = vadd.f32 %v2045, %v2055
  %v2078 = vmax.f32 %v2058, 0.0
  %v2079 = vmax.f32 %v2059, 0.0
  %v2080 = vmax.f32 %v2060, 0.0
  %v2081 = vmax.f32 %v2061, 0.0
  %v2082 = vmax.f32 %v2062, 0.0
  %v2083 = vmax.f32 %v2063, 0.0
  %v2084 = vmax.f32 %v2064, 0.0
  %v2085 = vmax.f32 %v2065, 0.0
  %v2086 = vmax.f32 %v2066, 0.0
  %v2087 = vmax.f32 %v2067, 0.0
  %v2088 = vmax.f32 %v2068, 0.0
  %v2089 = vmax.f32 %v2069, 0.0
  %v2090 = vmax.f32 %v2070, 0.0
  %v2091 = vmax.f32 %v2071, 0.0
  %v2092 = vmax.f32 %v2072, 0.0
  %v2093 = vmax.f32 %v2073, 0.0
  %v2094 = vmax.f32 %v2074, 0.0
  %v2095 = vmax.f32 %v2075, 0.0
  %v2096 = vmax.f32 %v2076, 0.0
  %v2097 = vmax.f32 %v2077, 0.0
  %v2098 = vld [vmem:[%s5] sm:$0xff]
  %v2099 = vld [vmem:[%s5 + $0x8] sm:$0xff]
  %v2100 = vld [vmem:[%s5 + $0x10] sm:$0xff]
  %v2101 = vld [vmem:[%s5 + $0x18] sm:$0xff]
  %v2102 = vld [vmem:[%s5 + $0x20] sm:$0xff]
  %v2103 = vld [vmem:[%s5 + $0x28] sm:$0xff]
  %v2104 = vld [vmem:[%s5 + $0x30] sm:$0xff]
  %v2105 = vld [vmem:[%s5 + $0x38] sm:$0xff]
  %v2106 = vld [vmem:[%s5 + $0x40] sm:$0xff]
  %v2107 = vld [vmem:[%s5 + $0x48] sm:$0xff]
  %v2108 = vld [vmem:[%s5 + $0x50] sm:$0xff]
  %v2109 = vld [vmem:[%s5 + $0x58] sm:$0xff]
  %v2110 = vld [vmem:[%s5 + $0x60] sm:$0xff]
  %v2111 = vld [vmem:[%s5 + $0x68] sm:$0xff]
  %v2112 = vld [vmem:[%s5 + $0x70] sm:$0xff]
  %v2113 = vld [vmem:[%s5 + $0x78] sm:$0xff]
  %v2114 = vld [vmem:[%s5 + $0x80] sm:$0xff]
  %v2115 = vld [vmem:[%s5 + $0x88] sm:$0xff]
  %v2116 = vld [vmem:[%s5 + $0x90] sm:$0xff]
  %v2117 = vld [vmem:[%s5 + $0x98] sm:$0xff]
  %v2118 = vld [vmem:[%s5 + $0xa0] sm:$0xff]
  %v2119 = vld [vmem:[%s5 + $0xa8] sm:$0xff]
  %v2120 = vld [vmem:[%s5 + $0xb0] sm:$0xff]
  %v2121 = vld [vmem:[%s5 + $0xb8] sm:$0xff]
  %v2122 = vld [vmem:[%s5 + $0xc0] sm:$0xff]
  %v2123 = vld [vmem:[%s5 + $0xc8] sm:$0xff]
  %v2124 = vld [vmem:[%s5 + $0xd0] sm:$0xff]
  %v2125 = vld [vmem:[%s5 + $0xd8] sm:$0xff]
  %v2126 = vld [vmem:[%s5 + $0xe0] sm:$0xff]
  %v2127 = vld [vmem:[%s5 + $0xe8] sm:$0xff]
  %v2128 = vld [vmem:[%s5 + $0xf0] sm:$0xff]
  %v2129 = vld [vmem:[%s5 + $0xf8] sm:$0xff]
  %v2130 = vld [vmem:[%s5 + $0x100] sm:$0xff]
  %v2131 = vld [vmem:[%s5 + $0x108] sm:$0xff]
  %v2132 = vld [vmem:[%s5 + $0x110] sm:$0xff]
  %v2133 = vld [vmem:[%s5 + $0x118] sm:$0xff]
  %v2134 = vld [vmem:[%s5 + $0x120] sm:$0xff]
  %v2135 = vld [vmem:[%s5 + $0x128] sm:$0xff]
  %v2136 = vld [vmem:[%s5 + $0x130] sm:$0xff]
  %v2137 = vld [vmem:[%s5 + $0x138] sm:$0xff]
  %v2138 = vld [vmem:[%s5 + $0x140] sm:$0xff]
  %v2139 = vld [vmem:[%s5 + $0x148] sm:$0xff]
  %v2140 = vld [vmem:[%s5 + $0x150] sm:$0xff]
  %v2141 = vld [vmem:[%s5 + $0x158] sm:$0xff]
  %v2142 = vld [vmem:[%s5 + $0x160] sm:$0xff]
  %v2143 = vld [vmem:[%s5 + $0x168] sm:$0xff]
  %v2144 = vld [vmem:[%s5 + $0x170] sm:$0xff]
  %v2145 = vld [vmem:[%s5 + $0x178] sm:$0xff]
  %v2146 = vld [vmem:[%s5 + $0x180] sm:$0xff]
  %v2147 = vld [vmem:[%s5 + $0x188] sm:$0xff]
  %v2148 = vld [vmem:[%s5 + $0x190] sm:$0xff]
  %v2149 = vld [vmem:[%s5 + $0x198] sm:$0xff]
  %v2150 = vld [vmem:[%s5 + $0x1a0] sm:$0xff]
  %v2151 = vld [vmem:[%s5 + $0x1a8] sm:$0xff]
  %v2152 = vld [vmem:[%s5 + $0x1b0] sm:$0xff]
  %v2153 = vld [vmem:[%s5 + $0x1b8] sm:$0xff]
  %v2154 = vld [vmem:[%s5 + $0x1c0] sm:$0xff]
  %v2155 = vld [vmem:[%s5 + $0x1c8] sm:$0xff]
  %v2156 = vld [vmem:[%s5 + $0x1d0] sm:$0xff]
  %v2157 = vld [vmem:[%s5 + $0x1d8] sm:$0xff]
  %v2158 = vld [vmem:[%s5 + $0x1e0] sm:$0xff]
  %v2159 = vld [vmem:[%s5 + $0x1e8] sm:$0xff]
  %v2160 = vld [vmem:[%s5 + $0x1f0] sm:$0xff]
  %v2161 = vld [vmem:[%s5 + $0x1f8] sm:$0xff]
  %v2162 = vld [vmem:[%s5 + $0x200] sm:$0xff]
  %v2163 = vld [vmem:[%s5 + $0x208] sm:$0xff]
  %v2164 = vld [vmem:[%s5 + $0x210] sm:$0xff]
  %v2165 = vld [vmem:[%s5 + $0x218] sm:$0xff]
  %v2166 = vld [vmem:[%s5 + $0x220] sm:$0xff]
  %v2167 = vld [vmem:[%s5 + $0x228] sm:$0xff]
  %v2168 = vld [vmem:[%s5 + $0x230] sm:$0xff]
  %v2169 = vld [vmem:[%s5 + $0x238] sm:$0xff]
  %v2170 = vld [vmem:[%s5 + $0x240] sm:$0xff]
  %v2171 = vld [vmem:[%s5 + $0x248] sm:$0xff]
  %v2172 = vld [vmem:[%s5 + $0x250] sm:$0xff]
  %v2173 = vld [vmem:[%s5 + $0x258] sm:$0xff]
  %v2174 = vld [vmem:[%s5 + $0x260] sm:$0xff]
  %v2175 = vld [vmem:[%s5 + $0x268] sm:$0xff]
  %v2176 = vld [vmem:[%s5 + $0x270] sm:$0xff]
  %v2177 = vld [vmem:[%s5 + $0x278] sm:$0xff]
  %v2178 = vld [vmem:[%s5 + $0x280] sm:$0xff]
  %v2179 = vld [vmem:[%s5 + $0x288] sm:$0xff]
  %v2180 = vld [vmem:[%s5 + $0x290] sm:$0xff]
  %v2181 = vld [vmem:[%s5 + $0x298] sm:$0xff]
  %v2182 = vld [vmem:[%s5 + $0x2a0] sm:$0xff]
  %v2183 = vld [vmem:[%s5 + $0x2a8] sm:$0xff]
  %v2184 = vld [vmem:[%s5 + $0x2b0] sm:$0xff]
  %v2185 = vld [vmem:[%s5 + $0x2b8] sm:$0xff]
  %v2186 = vld [vmem:[%s5 + $0x2c0] sm:$0xff]
  %v2187 = vld [vmem:[%s5 + $0x2c8] sm:$0xff]
  %v2188 = vld [vmem:[%s5 + $0x2d0] sm:$0xff]
  %v2189 = vld [vmem:[%s5 + $0x2d8] sm:$0xff]
  %v2190 = vld [vmem:[%s5 + $0x2e0] sm:$0xff]
  %v2191 = vld [vmem:[%s5 + $0x2e8] sm:$0xff]
  %v2192 = vld [vmem:[%s5 + $0x2f0] sm:$0xff]
  %v2193 = vld [vmem:[%s5 + $0x2f8] sm:$0xff]
  %v2194 = vld [vmem:[%s5 + $0x300] sm:$0xff]
  %v2195 = vld [vmem:[%s5 + $0x308] sm:$0xff]
  %v2196 = vld [vmem:[%s5 + $0x310] sm:$0xff]
  %v2197 = vld [vmem:[%s5 + $0x318] sm:$0xff]
  %v2198 = vld [vmem:[%s5 + $0x320] sm:$0xff]
  %v2199 = vld [vmem:[%s5 + $0x328] sm:$0xff]
  %v2200 = vld [vmem:[%s5 + $0x330] sm:$0xff]
  %v2201 = vld [vmem:[%s5 + $0x338] sm:$0xff]
  %v2202 = vld [vmem:[%s5 + $0x340] sm:$0xff]
  %v2203 = vld [vmem:[%s5 + $0x348] sm:$0xff]
  %v2204 = vld [vmem:[%s5 + $0x350] sm:$0xff]
  %v2205 = vld [vmem:[%s5 + $0x358] sm:$0xff]
  %v2206 = vld [vmem:[%s5 + $0x360] sm:$0xff]
  %v2207 = vld [vmem:[%s5 + $0x368] sm:$0xff]
  %v2208 = vld [vmem:[%s5 + $0x370] sm:$0xff]
  %v2209 = vld [vmem:[%s5 + $0x378] sm:$0xff]
  %v2210 = vld [vmem:[%s5 + $0x380] sm:$0xff]
  %v2211 = vld [vmem:[%s5 + $0x388] sm:$0xff]
  %v2212 = vld [vmem:[%s5 + $0x390] sm:$0xff]
  %v2213 = vld [vmem:[%s5 + $0x398] sm:$0xff]
  %v2214 = vld [vmem:[%s5 + $0x3a0] sm:$0xff]
  %v2215 = vld [vmem:[%s5 + $0x3a8] sm:$0xff]
  %v2216 = vld [vmem:[%s5 + $0x3b0] sm:$0xff]
  %v2217 = vld [vmem:[%s5 + $0x3b8] sm:$0xff]
  %v2218 = vld [vmem:[%s5 + $0x3c0] sm:$0xff]
  %v2219 = vld [vmem:[%s5 + $0x3c8] sm:$0xff]
  %v2220 = vld [vmem:[%s5 + $0x3d0] sm:$0xff]
  %v2221 = vld [vmem:[%s5 + $0x3d8] sm:$0xff]
  %v2222 = vld [vmem:[%s5 + $0x3e0] sm:$0xff]
  %v2223 = vld [vmem:[%s5 + $0x3e8] sm:$0xff]
  %v2224 = vld [vmem:[%s5 + $0x3f0] sm:$0xff]
  %v2225 = vld [vmem:[%s5 + $0x3f8] sm:$0xff]
  %s2226 = scalar_lea.vmem %s5, 1024
  %v2227 = vld [vmem:[%s2226] sm:$0xff]
  %v2228 = vld [vmem:[%s2226 + $0x8] sm:$0xff]
  %v2229 = vld [vmem:[%s2226 + $0x10] sm:$0xff]
  %v2230 = vld [vmem:[%s2226 + $0x18] sm:$0xff]
  %v2231 = vld [vmem:[%s2226 + $0x20] sm:$0xff]
  %v2232 = vld [vmem:[%s2226 + $0x28] sm:$0xff]
  %v2233 = vld [vmem:[%s2226 + $0x30] sm:$0xff]
  %v2234 = vld [vmem:[%s2226 + $0x38] sm:$0xff]
  %v2235 = vld [vmem:[%s2226 + $0x40] sm:$0xff]
  %v2236 = vld [vmem:[%s2226 + $0x48] sm:$0xff]
  %v2237 = vld [vmem:[%s2226 + $0x50] sm:$0xff]
  %v2238 = vld [vmem:[%s2226 + $0x58] sm:$0xff]
  %v2239 = vld [vmem:[%s2226 + $0x60] sm:$0xff]
  %v2240 = vld [vmem:[%s2226 + $0x68] sm:$0xff]
  %v2241 = vld [vmem:[%s2226 + $0x70] sm:$0xff]
  %v2242 = vld [vmem:[%s2226 + $0x78] sm:$0xff]
  %v2243 = vld [vmem:[%s2226 + $0x80] sm:$0xff]
  %v2244 = vld [vmem:[%s2226 + $0x88] sm:$0xff]
  %v2245 = vld [vmem:[%s2226 + $0x90] sm:$0xff]
  %v2246 = vld [vmem:[%s2226 + $0x98] sm:$0xff]
  %v2247 = vld [vmem:[%s2226 + $0xa0] sm:$0xff]
  %v2248 = vld [vmem:[%s2226 + $0xa8] sm:$0xff]
  %v2249 = vld [vmem:[%s2226 + $0xb0] sm:$0xff]
  %v2250 = vld [vmem:[%s2226 + $0xb8] sm:$0xff]
  %v2251 = vld [vmem:[%s2226 + $0xc0] sm:$0xff]
  %v2252 = vld [vmem:[%s2226 + $0xc8] sm:$0xff]
  %v2253 = vld [vmem:[%s2226 + $0xd0] sm:$0xff]
  %v2254 = vld [vmem:[%s2226 + $0xd8] sm:$0xff]
  %v2255 = vld [vmem:[%s2226 + $0xe0] sm:$0xff]
  %v2256 = vld [vmem:[%s2226 + $0xe8] sm:$0xff]
  %v2257 = vld [vmem:[%s2226 + $0xf0] sm:$0xff]
  %v2258 = vld [vmem:[%s2226 + $0xf8] sm:$0xff]
  %v2259 = vld [vmem:[%s2226 + $0x100] sm:$0xff]
  %v2260 = vld [vmem:[%s2226 + $0x108] sm:$0xff]
  %v2261 = vld [vmem:[%s2226 + $0x110] sm:$0xff]
  %v2262 = vld [vmem:[%s2226 + $0x118] sm:$0xff]
  %v2263 = vld [vmem:[%s2226 + $0x120] sm:$0xff]
  %v2264 = vld [vmem:[%s2226 + $0x128] sm:$0xff]
  %v2265 = vld [vmem:[%s2226 + $0x130] sm:$0xff]
  %v2266 = vld [vmem:[%s2226 + $0x138] sm:$0xff]
  %v2267 = vld [vmem:[%s2226 + $0x140] sm:$0xff]
  %v2268 = vld [vmem:[%s2226 + $0x148] sm:$0xff]
  %v2269 = vld [vmem:[%s2226 + $0x150] sm:$0xff]
  %v2270 = vld [vmem:[%s2226 + $0x158] sm:$0xff]
  %v2271 = vld [vmem:[%s2226 + $0x160] sm:$0xff]
  %v2272 = vld [vmem:[%s2226 + $0x168] sm:$0xff]
  %v2273 = vld [vmem:[%s2226 + $0x170] sm:$0xff]
  %v2274 = vld [vmem:[%s2226 + $0x178] sm:$0xff]
  %v2275 = vld [vmem:[%s2226 + $0x180] sm:$0xff]
  %v2276 = vld [vmem:[%s2226 + $0x188] sm:$0xff]
  %v2277 = vld [vmem:[%s2226 + $0x190] sm:$0xff]
  %v2278 = vld [vmem:[%s2226 + $0x198] sm:$0xff]
  %v2279 = vld [vmem:[%s2226 + $0x1a0] sm:$0xff]
  %v2280 = vld [vmem:[%s2226 + $0x1a8] sm:$0xff]
  %v2281 = vld [vmem:[%s2226 + $0x1b0] sm:$0xff]
  %v2282 = vld [vmem:[%s2226 + $0x1b8] sm:$0xff]
  %v2283 = vld [vmem:[%s2226 + $0x1c0] sm:$0xff]
  %v2284 = vld [vmem:[%s2226 + $0x1c8] sm:$0xff]
  %v2285 = vld [vmem:[%s2226 + $0x1d0] sm:$0xff]
  %v2286 = vld [vmem:[%s2226 + $0x1d8] sm:$0xff]
  %v2287 = vld [vmem:[%s2226 + $0x1e0] sm:$0xff]
  %v2288 = vld [vmem:[%s2226 + $0x1e8] sm:$0xff]
  %v2289 = vld [vmem:[%s2226 + $0x1f0] sm:$0xff]
  %v2290 = vld [vmem:[%s2226 + $0x1f8] sm:$0xff]
  %v2291 = vld [vmem:[%s2226 + $0x200] sm:$0xff]
  %v2292 = vld [vmem:[%s2226 + $0x208] sm:$0xff]
  %v2293 = vld [vmem:[%s2226 + $0x210] sm:$0xff]
  %v2294 = vld [vmem:[%s2226 + $0x218] sm:$0xff]
  %v2295 = vld [vmem:[%s2226 + $0x220] sm:$0xff]
  %v2296 = vld [vmem:[%s2226 + $0x228] sm:$0xff]
  %v2297 = vld [vmem:[%s2226 + $0x230] sm:$0xff]
  %v2298 = vld [vmem:[%s2226 + $0x238] sm:$0xff]
  %v2299 = vld [vmem:[%s2226 + $0x240] sm:$0xff]
  %v2300 = vld [vmem:[%s2226 + $0x248] sm:$0xff]
  %v2301 = vld [vmem:[%s2226 + $0x250] sm:$0xff]
  %v2302 = vld [vmem:[%s2226 + $0x258] sm:$0xff]
  %v2303 = vld [vmem:[%s2226 + $0x260] sm:$0xff]
  %v2304 = vld [vmem:[%s2226 + $0x268] sm:$0xff]
  %v2305 = vld [vmem:[%s2226 + $0x270] sm:$0xff]
  %v2306 = vld [vmem:[%s2226 + $0x278] sm:$0xff]
  %v2307 = vld [vmem:[%s2226 + $0x280] sm:$0xff]
  %v2308 = vld [vmem:[%s2226 + $0x288] sm:$0xff]
  %v2309 = vld [vmem:[%s2226 + $0x290] sm:$0xff]
  %v2310 = vld [vmem:[%s2226 + $0x298] sm:$0xff]
  %v2311 = vld [vmem:[%s2226 + $0x2a0] sm:$0xff]
  %v2312 = vld [vmem:[%s2226 + $0x2a8] sm:$0xff]
  %v2313 = vld [vmem:[%s2226 + $0x2b0] sm:$0xff]
  %v2314 = vld [vmem:[%s2226 + $0x2b8] sm:$0xff]
  %v2315 = vld [vmem:[%s2226 + $0x2c0] sm:$0xff]
  %v2316 = vld [vmem:[%s2226 + $0x2c8] sm:$0xff]
  %v2317 = vld [vmem:[%s2226 + $0x2d0] sm:$0xff]
  %v2318 = vld [vmem:[%s2226 + $0x2d8] sm:$0xff]
  %v2319 = vld [vmem:[%s2226 + $0x2e0] sm:$0xff]
  %v2320 = vld [vmem:[%s2226 + $0x2e8] sm:$0xff]
  %v2321 = vld [vmem:[%s2226 + $0x2f0] sm:$0xff]
  %v2322 = vld [vmem:[%s2226 + $0x2f8] sm:$0xff]
  %v2323 = vld [vmem:[%s2226 + $0x300] sm:$0xff]
  %v2324 = vld [vmem:[%s2226 + $0x308] sm:$0xff]
  %v2325 = vld [vmem:[%s2226 + $0x310] sm:$0xff]
  %v2326 = vld [vmem:[%s2226 + $0x318] sm:$0xff]
  %v2327 = vld [vmem:[%s2226 + $0x320] sm:$0xff]
  %v2328 = vld [vmem:[%s2226 + $0x328] sm:$0xff]
  %v2329 = vld [vmem:[%s2226 + $0x330] sm:$0xff]
  %v2330 = vld [vmem:[%s2226 + $0x338] sm:$0xff]
  %v2331 = vld [vmem:[%s2226 + $0x340] sm:$0xff]
  %v2332 = vld [vmem:[%s2226 + $0x348] sm:$0xff]
  %v2333 = vld [vmem:[%s2226 + $0x350] sm:$0xff]
  %v2334 = vld [vmem:[%s2226 + $0x358] sm:$0xff]
  %v2335 = vld [vmem:[%s2226 + $0x360] sm:$0xff]
  %v2336 = vld [vmem:[%s2226 + $0x368] sm:$0xff]
  %v2337 = vld [vmem:[%s2226 + $0x370] sm:$0xff]
  %v2338 = vld [vmem:[%s2226 + $0x378] sm:$0xff]
  %v2339 = vld [vmem:[%s2226 + $0x380] sm:$0xff]
  %v2340 = vld [vmem:[%s2226 + $0x388] sm:$0xff]
  %v2341 = vld [vmem:[%s2226 + $0x390] sm:$0xff]
  %v2342 = vld [vmem:[%s2226 + $0x398] sm:$0xff]
  %v2343 = vld [vmem:[%s2226 + $0x3a0] sm:$0xff]
  %v2344 = vld [vmem:[%s2226 + $0x3a8] sm:$0xff]
  %v2345 = vld [vmem:[%s2226 + $0x3b0] sm:$0xff]
  %v2346 = vld [vmem:[%s2226 + $0x3b8] sm:$0xff]
  %v2347 = vld [vmem:[%s2226 + $0x3c0] sm:$0xff]
  %v2348 = vld [vmem:[%s2226 + $0x3c8] sm:$0xff]
  %v2349 = vld [vmem:[%s2226 + $0x3d0] sm:$0xff]
  %v2350 = vld [vmem:[%s2226 + $0x3d8] sm:$0xff]
  %v2351 = vld [vmem:[%s2226 + $0x3e0] sm:$0xff]
  %v2352 = vld [vmem:[%s2226 + $0x3e8] sm:$0xff]
  %v2353 = vld [vmem:[%s2226 + $0x3f0] sm:$0xff]
  %v2354 = vld [vmem:[%s2226 + $0x3f8] sm:$0xff]
  %2355 = vmatprep.subr.mxu0 %v2228
  %2356 = vmatpush1.msra.mxu0 %v2227
  %2357 = vmatprep.subr.mxu0 %v2232
  %2358 = vmatpush1.msra.mxu0 %v2231
  %2359 = vmatprep.subr.mxu0 %v2236
  %2360 = vmatpush1.msra.mxu0 %v2235
  %2361 = vmatprep.subr.mxu0 %v2240
  %2362 = vmatpush1.msra.mxu0 %v2239
  %2363 = vmatprep.subr.mxu0 %v2244
  %2364 = vmatpush1.msra.mxu0 %v2243
  %2365 = vmatprep.subr.mxu0 %v2248
  %2366 = vmatpush1.msra.mxu0 %v2247
  %2367 = vmatprep.subr.mxu0 %v2252
  %2368 = vmatpush1.msra.mxu0 %v2251
  %2369 = vmatprep.subr.mxu0 %v2256
  %2370 = vmatpush1.msra.mxu0 %v2255
  %2371 = vmatprep.subr.mxu0 %v2260
  %2372 = vmatpush1.msra.mxu0 %v2259
  %2373 = vmatprep.subr.mxu0 %v2264
  %2374 = vmatpush1.msra.mxu0 %v2263
  %2375 = vmatprep.subr.mxu0 %v2268
  %2376 = vmatpush1.msra.mxu0 %v2267
  %2377 = vmatprep.subr.mxu0 %v2272
  %2378 = vmatpush1.msra.mxu0 %v2271
  %2379 = vmatprep.subr.mxu0 %v2276
  %2380 = vmatpush1.msra.mxu0 %v2275
  %2381 = vmatprep.subr.mxu0 %v2280
  %2382 = vmatpush1.msra.mxu0 %v2279
  %2383 = vmatprep.subr.mxu0 %v2284
  %2384 = vmatpush1.msra.mxu0 %v2283
  %2385 = vmatprep.subr.mxu0 %v2288
  %2386 = vmatpush1.msra.mxu0 %v2287
  %2387 = vmatprep.subr.mxu0 %v2292
  %2388 = vmatpush1.msra.mxu0 %v2291
  %2389 = vmatprep.subr.mxu0 %v2296
  %2390 = vmatpush1.msra.mxu0 %v2295
  %2391 = vmatprep.subr.mxu0 %v2300
  %2392 = vmatpush1.msra.mxu0 %v2299
  %2393 = vmatprep.subr.mxu0 %v2304
  %2394 = vmatpush1.msra.mxu0 %v2303
  %2395 = vmatprep.subr.mxu0 %v2308
  %2396 = vmatpush1.msra.mxu0 %v2307
  %2397 = vmatprep.subr.mxu0 %v2312
  %2398 = vmatpush1.msra.mxu0 %v2311
  %2399 = vmatprep.subr.mxu0 %v2316
  %2400 = vmatpush1.msra.mxu0 %v2315
  %2401 = vmatprep.subr.mxu0 %v2320
  %2402 = vmatpush1.msra.mxu0 %v2319
  %2403 = vmatprep.subr.mxu0 %v2324
  %2404 = vmatpush1.msra.mxu0 %v2323
  %2405 = vmatprep.subr.mxu0 %v2328
  %2406 = vmatpush1.msra.mxu0 %v2327
  %2407 = vmatprep.subr.mxu0 %v2332
  %2408 = vmatpush1.msra.mxu0 %v2331
  %2409 = vmatprep.subr.mxu0 %v2336
  %2410 = vmatpush1.msra.mxu0 %v2335
  %2411 = vmatprep.subr.mxu0 %v2340
  %2412 = vmatpush1.msra.mxu0 %v2339
  %2413 = vmatprep.subr.mxu0 %v2344
  %2414 = vmatpush1.msra.mxu0 %v2343
  %2415 = vmatprep.subr.mxu0 %v2348
  %2416 = vmatpush1.msra.mxu0 %v2347
  %2417 = vmatprep.subr.mxu0 %v2352
  %2418 = vmatpush1.msra.mxu0 %v2351
  %2419 = vmatprep.mubr.f32.mxu0 %v2081
  %2420 = vmatmul.mubr.f32.gmra.mrb[0].mxu0 %v2080
  %v2421 = vpop.f32.mrb[0].mxu0
  %v2422 = vadd.f32 0.0, %v2421
  %v2423 = vpop.f32.mrb[0].mxu0
  %v2424 = vadd.f32 0.0, %v2423
  %2425 = vdwg.mxu0
  %2426 = vmatprep.subr.mxu0 %v2230
  %2427 = vmatpush1.msra.mxu0 %v2229
  %2428 = vmatprep.subr.mxu0 %v2234
  %2429 = vmatpush1.msra.mxu0 %v2233
  %2430 = vmatprep.subr.mxu0 %v2238
  %2431 = vmatpush1.msra.mxu0 %v2237
  %2432 = vmatprep.subr.mxu0 %v2242
  %2433 = vmatpush1.msra.mxu0 %v2241
  %2434 = vmatprep.subr.mxu0 %v2246
  %2435 = vmatpush1.msra.mxu0 %v2245
  %2436 = vmatprep.subr.mxu0 %v2250
  %2437 = vmatpush1.msra.mxu0 %v2249
  %2438 = vmatprep.subr.mxu0 %v2254
  %2439 = vmatpush1.msra.mxu0 %v2253
  %2440 = vmatprep.subr.mxu0 %v2258
  %2441 = vmatpush1.msra.mxu0 %v2257
  %2442 = vmatprep.subr.mxu0 %v2262
  %2443 = vmatpush1.msra.mxu0 %v2261
  %2444 = vmatprep.subr.mxu0 %v2266
  %2445 = vmatpush1.msra.mxu0 %v2265
  %2446 = vmatprep.subr.mxu0 %v2270
  %2447 = vmatpush1.msra.mxu0 %v2269
  %2448 = vmatprep.subr.mxu0 %v2274
  %2449 = vmatpush1.msra.mxu0 %v2273
  %2450 = vmatprep.subr.mxu0 %v2278
  %2451 = vmatpush1.msra.mxu0 %v2277
  %2452 = vmatprep.subr.mxu0 %v2282
  %2453 = vmatpush1.msra.mxu0 %v2281
  %2454 = vmatprep.subr.mxu0 %v2286
  %2455 = vmatpush1.msra.mxu0 %v2285
  %2456 = vmatprep.subr.mxu0 %v2290
  %2457 = vmatpush1.msra.mxu0 %v2289
  %2458 = vmatprep.subr.mxu0 %v2294
  %2459 = vmatpush1.msra.mxu0 %v2293
  %2460 = vmatprep.subr.mxu0 %v2298
  %2461 = vmatpush1.msra.mxu0 %v2297
  %2462 = vmatprep.subr.mxu0 %v2302
  %2463 = vmatpush1.msra.mxu0 %v2301
  %2464 = vmatprep.subr.mxu0 %v2306
  %2465 = vmatpush1.msra.mxu0 %v2305
  %2466 = vmatprep.subr.mxu0 %v2310
  %2467 = vmatpush1.msra.mxu0 %v2309
  %2468 = vmatprep.subr.mxu0 %v2314
  %2469 = vmatpush1.msra.mxu0 %v2313
  %2470 = vmatprep.subr.mxu0 %v2318
  %2471 = vmatpush1.msra.mxu0 %v2317
  %2472 = vmatprep.subr.mxu0 %v2322
  %2473 = vmatpush1.msra.mxu0 %v2321
  %2474 = vmatprep.subr.mxu0 %v2326
  %2475 = vmatpush1.msra.mxu0 %v2325
  %2476 = vmatprep.subr.mxu0 %v2330
  %2477 = vmatpush1.msra.mxu0 %v2329
  %2478 = vmatprep.subr.mxu0 %v2334
  %2479 = vmatpush1.msra.mxu0 %v2333
  %2480 = vmatprep.subr.mxu0 %v2338
  %2481 = vmatpush1.msra.mxu0 %v2337
  %2482 = vmatprep.subr.mxu0 %v2342
  %2483 = vmatpush1.msra.mxu0 %v2341
  %2484 = vmatprep.subr.mxu0 %v2346
  %2485 = vmatpush1.msra.mxu0 %v2345
  %2486 = vmatprep.subr.mxu0 %v2350
  %2487 = vmatpush1.msra.mxu0 %v2349
  %2488 = vmatprep.subr.mxu0 %v2354
  %2489 = vmatpush1.msra.mxu0 %v2353
  %2490 = vmatprep.mubr.f32.mxu0 %v2081
  %2491 = vmatmul.mubr.f32.gmra.mrb[0].mxu0 %v2080
  %v2492 = vpop.f32.mrb[0].mxu0
  %v2493 = vadd.f32 0.0, %v2492
  %v2494 = vpop.f32.mrb[0].mxu0
  %v2495 = vadd.f32 0.0, %v2494
  %2496 = vdwg.mxu0
  %2497 = vmatprep.subr.mxu0 %v2099
  %2498 = vmatpush1.msra.mxu0 %v2098
  %2499 = vmatprep.subr.mxu0 %v2103
  %2500 = vmatpush1.msra.mxu0 %v2102
  %2501 = vmatprep.subr.mxu0 %v2107
  %2502 = vmatpush1.msra.mxu0 %v2106
  %2503 = vmatprep.subr.mxu0 %v2111
  %2504 = vmatpush1.msra.mxu0 %v2110
  %2505 = vmatprep.subr.mxu0 %v2115
  %2506 = vmatpush1.msra.mxu0 %v2114
  %2507 = vmatprep.subr.mxu0 %v2119
  %2508 = vmatpush1.msra.mxu0 %v2118
  %2509 = vmatprep.subr.mxu0 %v2123
  %2510 = vmatpush1.msra.mxu0 %v2122
  %2511 = vmatprep.subr.mxu0 %v2127
  %2512 = vmatpush1.msra.mxu0 %v2126
  %2513 = vmatprep.subr.mxu0 %v2131
  %2514 = vmatpush1.msra.mxu0 %v2130
  %2515 = vmatprep.subr.mxu0 %v2135
  %2516 = vmatpush1.msra.mxu0 %v2134
  %2517 = vmatprep.subr.mxu0 %v2139
  %2518 = vmatpush1.msra.mxu0 %v2138
  %2519 = vmatprep.subr.mxu0 %v2143
  %2520 = vmatpush1.msra.mxu0 %v2142
  %2521 = vmatprep.subr.mxu0 %v2147
  %2522 = vmatpush1.msra.mxu0 %v2146
  %2523 = vmatprep.subr.mxu0 %v2151
  %2524 = vmatpush1.msra.mxu0 %v2150
  %2525 = vmatprep.subr.mxu0 %v2155
  %2526 = vmatpush1.msra.mxu0 %v2154
  %2527 = vmatprep.subr.mxu0 %v2159
  %2528 = vmatpush1.msra.mxu0 %v2158
  %2529 = vmatprep.subr.mxu0 %v2163
  %2530 = vmatpush1.msra.mxu0 %v2162
  %2531 = vmatprep.subr.mxu0 %v2167
  %2532 = vmatpush1.msra.mxu0 %v2166
  %2533 = vmatprep.subr.mxu0 %v2171
  %2534 = vmatpush1.msra.mxu0 %v2170
  %2535 = vmatprep.subr.mxu0 %v2175
  %2536 = vmatpush1.msra.mxu0 %v2174
  %2537 = vmatprep.subr.mxu0 %v2179
  %2538 = vmatpush1.msra.mxu0 %v2178
  %2539 = vmatprep.subr.mxu0 %v2183
  %2540 = vmatpush1.msra.mxu0 %v2182
  %2541 = vmatprep.subr.mxu0 %v2187
  %2542 = vmatpush1.msra.mxu0 %v2186
  %2543 = vmatprep.subr.mxu0 %v2191
  %2544 = vmatpush1.msra.mxu0 %v2190
  %2545 = vmatprep.subr.mxu0 %v2195
  %2546 = vmatpush1.msra.mxu0 %v2194
  %2547 = vmatprep.subr.mxu0 %v2199
  %2548 = vmatpush1.msra.mxu0 %v2198
  %2549 = vmatprep.subr.mxu0 %v2203
  %2550 = vmatpush1.msra.mxu0 %v2202
  %2551 = vmatprep.subr.mxu0 %v2207
  %2552 = vmatpush1.msra.mxu0 %v2206
  %2553 = vmatprep.subr.mxu0 %v2211
  %2554 = vmatpush1.msra.mxu0 %v2210
  %2555 = vmatprep.subr.mxu0 %v2215
  %2556 = vmatpush1.msra.mxu0 %v2214
  %2557 = vmatprep.subr.mxu0 %v2219
  %2558 = vmatpush1.msra.mxu0 %v2218
  %2559 = vmatprep.subr.mxu0 %v2223
  %2560 = vmatpush1.msra.mxu0 %v2222
  %2561 = vmatprep.mubr.f32.mxu0 %v2079
  %2562 = vmatmul.mubr.f32.gmra.mrb[0].mxu0 %v2078
  %v2563 = vpop.f32.mrb[0].mxu0
  %v2564 = vadd.f32 %v2422, %v2563
  %v2565 = vpop.f32.mrb[0].mxu0
  %v2566 = vadd.f32 %v2424, %v2565
  %2567 = vdwg.mxu0
  %2568 = vmatprep.subr.mxu0 %v2101
  %2569 = vmatpush1.msra.mxu0 %v2100
  %2570 = vmatprep.subr.mxu0 %v2105
  %2571 = vmatpush1.msra.mxu0 %v2104
  %2572 = vmatprep.subr.mxu0 %v2109
  %2573 = vmatpush1.msra.mxu0 %v2108
  %2574 = vmatprep.subr.mxu0 %v2113
  %2575 = vmatpush1.msra.mxu0 %v2112
  %2576 = vmatprep.subr.mxu0 %v2117
  %2577 = vmatpush1.msra.mxu0 %v2116
  %2578 = vmatprep.subr.mxu0 %v2121
  %2579 = vmatpush1.msra.mxu0 %v2120
  %2580 = vmatprep.subr.mxu0 %v2125
  %2581 = vmatpush1.msra.mxu0 %v2124
  %2582 = vmatprep.subr.mxu0 %v2129
  %2583 = vmatpush1.msra.mxu0 %v2128
  %2584 = vmatprep.subr.mxu0 %v2133
  %2585 = vmatpush1.msra.mxu0 %v2132
  %2586 = vmatprep.subr.mxu0 %v2137
  %2587 = vmatpush1.msra.mxu0 %v2136
  %2588 = vmatprep.subr.mxu0 %v2141
  %2589 = vmatpush1.msra.mxu0 %v2140
  %2590 = vmatprep.subr.mxu0 %v2145
  %2591 = vmatpush1.msra.mxu0 %v2144
  %2592 = vmatprep.subr.mxu0 %v2149
  %2593 = vmatpush1.msra.mxu0 %v2148
  %2594 = vmatprep.subr.mxu0 %v2153
  %2595 = vmatpush1.msra.mxu0 %v2152
  %2596 = vmatprep.subr.mxu0 %v2157
  %2597 = vmatpush1.msra.mxu0 %v2156
  %2598 = vmatprep.subr.mxu0 %v2161
  %2599 = vmatpush1.msra.mxu0 %v2160
  %2600 = vmatprep.subr.mxu0 %v2165
  %2601 = vmatpush1.msra.mxu0 %v2164
  %2602 = vmatprep.subr.mxu0 %v2169
  %2603 = vmatpush1.msra.mxu0 %v2168
  %2604 = vmatprep.subr.mxu0 %v2173
  %2605 = vmatpush1.msra.mxu0 %v2172
  %2606 = vmatprep.subr.mxu0 %v2177
  %2607 = vmatpush1.msra.mxu0 %v2176
  %2608 = vmatprep.subr.mxu0 %v2181
  %2609 = vmatpush1.msra.mxu0 %v2180
  %2610 = vmatprep.subr.mxu0 %v2185
  %2611 = vmatpush1.msra.mxu0 %v2184
  %2612 = vmatprep.subr.mxu0 %v2189
  %2613 = vmatpush1.msra.mxu0 %v2188
  %2614 = vmatprep.subr.mxu0 %v2193
  %2615 = vmatpush1.msra.mxu0 %v2192
  %2616 = vmatprep.subr.mxu0 %v2197
  %2617 = vmatpush1.msra.mxu0 %v2196
  %2618 = vmatprep.subr.mxu0 %v2201
  %2619 = vmatpush1.msra.mxu0 %v2200
  %2620 = vmatprep.subr.mxu0 %v2205
  %2621 = vmatpush1.msra.mxu0 %v2204
  %2622 = vmatprep.subr.mxu0 %v2209
  %2623 = vmatpush1.msra.mxu0 %v2208
  %2624 = vmatprep.subr.mxu0 %v2213
  %2625 = vmatpush1.msra.mxu0 %v2212
  %2626 = vmatprep.subr.mxu0 %v2217
  %2627 = vmatpush1.msra.mxu0 %v2216
  %2628 = vmatprep.subr.mxu0 %v2221
  %2629 = vmatpush1.msra.mxu0 %v2220
  %2630 = vmatprep.subr.mxu0 %v2225
  %2631 = vmatpush1.msra.mxu0 %v2224
  %2632 = vmatprep.mubr.f32.mxu0 %v2079
  %2633 = vmatmul.mubr.f32.gmra.mrb[0].mxu0 %v2078
  %v2634 = vpop.f32.mrb[0].mxu0
  %v2635 = vadd.f32 %v2493, %v2634
  %v2636 = vpop.f32.mrb[0].mxu0
  %v2637 = vadd.f32 %v2495, %v2636
  %2638 = vdwg.mxu0
  %s2639 = scalar_lea.vmem %s5, 2048
  %v2640 = vld [vmem:[%s2639] sm:$0xff]
  %v2641 = vld [vmem:[%s2639 + $0x8] sm:$0xff]
  %v2642 = vld [vmem:[%s2639 + $0x10] sm:$0xff]
  %v2643 = vld [vmem:[%s2639 + $0x18] sm:$0xff]
  %v2644 = vld [vmem:[%s2639 + $0x20] sm:$0xff]
  %v2645 = vld [vmem:[%s2639 + $0x28] sm:$0xff]
  %v2646 = vld [vmem:[%s2639 + $0x30] sm:$0xff]
  %v2647 = vld [vmem:[%s2639 + $0x38] sm:$0xff]
  %v2648 = vld [vmem:[%s2639 + $0x40] sm:$0xff]
  %v2649 = vld [vmem:[%s2639 + $0x48] sm:$0xff]
  %v2650 = vld [vmem:[%s2639 + $0x50] sm:$0xff]
  %v2651 = vld [vmem:[%s2639 + $0x58] sm:$0xff]
  %v2652 = vld [vmem:[%s2639 + $0x60] sm:$0xff]
  %v2653 = vld [vmem:[%s2639 + $0x68] sm:$0xff]
  %v2654 = vld [vmem:[%s2639 + $0x70] sm:$0xff]
  %v2655 = vld [vmem:[%s2639 + $0x78] sm:$0xff]
  %v2656 = vld [vmem:[%s2639 + $0x80] sm:$0xff]
  %v2657 = vld [vmem:[%s2639 + $0x88] sm:$0xff]
  %v2658 = vld [vmem:[%s2639 + $0x90] sm:$0xff]
  %v2659 = vld [vmem:[%s2639 + $0x98] sm:$0xff]
  %v2660 = vld [vmem:[%s2639 + $0xa0] sm:$0xff]
  %v2661 = vld [vmem:[%s2639 + $0xa8] sm:$0xff]
  %v2662 = vld [vmem:[%s2639 + $0xb0] sm:$0xff]
  %v2663 = vld [vmem:[%s2639 + $0xb8] sm:$0xff]
  %v2664 = vld [vmem:[%s2639 + $0xc0] sm:$0xff]
  %v2665 = vld [vmem:[%s2639 + $0xc8] sm:$0xff]
  %v2666 = vld [vmem:[%s2639 + $0xd0] sm:$0xff]
  %v2667 = vld [vmem:[%s2639 + $0xd8] sm:$0xff]
  %v2668 = vld [vmem:[%s2639 + $0xe0] sm:$0xff]
  %v2669 = vld [vmem:[%s2639 + $0xe8] sm:$0xff]
  %v2670 = vld [vmem:[%s2639 + $0xf0] sm:$0xff]
  %v2671 = vld [vmem:[%s2639 + $0xf8] sm:$0xff]
  %v2672 = vld [vmem:[%s2639 + $0x100] sm:$0xff]
  %v2673 = vld [vmem:[%s2639 + $0x108] sm:$0xff]
  %v2674 = vld [vmem:[%s2639 + $0x110] sm:$0xff]
  %v2675 = vld [vmem:[%s2639 + $0x118] sm:$0xff]
  %v2676 = vld [vmem:[%s2639 + $0x120] sm:$0xff]
  %v2677 = vld [vmem:[%s2639 + $0x128] sm:$0xff]
  %v2678 = vld [vmem:[%s2639 + $0x130] sm:$0xff]
  %v2679 = vld [vmem:[%s2639 + $0x138] sm:$0xff]
  %v2680 = vld [vmem:[%s2639 + $0x140] sm:$0xff]
  %v2681 = vld [vmem:[%s2639 + $0x148] sm:$0xff]
  %v2682 = vld [vmem:[%s2639 + $0x150] sm:$0xff]
  %v2683 = vld [vmem:[%s2639 + $0x158] sm:$0xff]
  %v2684 = vld [vmem:[%s2639 + $0x160] sm:$0xff]
  %v2685 = vld [vmem:[%s2639 + $0x168] sm:$0xff]
  %v2686 = vld [vmem:[%s2639 + $0x170] sm:$0xff]
  %v2687 = vld [vmem:[%s2639 + $0x178] sm:$0xff]
  %v2688 = vld [vmem:[%s2639 + $0x180] sm:$0xff]
  %v2689 = vld [vmem:[%s2639 + $0x188] sm:$0xff]
  %v2690 = vld [vmem:[%s2639 + $0x190] sm:$0xff]
  %v2691 = vld [vmem:[%s2639 + $0x198] sm:$0xff]
  %v2692 = vld [vmem:[%s2639 + $0x1a0] sm:$0xff]
  %v2693 = vld [vmem:[%s2639 + $0x1a8] sm:$0xff]
  %v2694 = vld [vmem:[%s2639 + $0x1b0] sm:$0xff]
  %v2695 = vld [vmem:[%s2639 + $0x1b8] sm:$0xff]
  %v2696 = vld [vmem:[%s2639 + $0x1c0] sm:$0xff]
  %v2697 = vld [vmem:[%s2639 + $0x1c8] sm:$0xff]
  %v2698 = vld [vmem:[%s2639 + $0x1d0] sm:$0xff]
  %v2699 = vld [vmem:[%s2639 + $0x1d8] sm:$0xff]
  %v2700 = vld [vmem:[%s2639 + $0x1e0] sm:$0xff]
  %v2701 = vld [vmem:[%s2639 + $0x1e8] sm:$0xff]
  %v2702 = vld [vmem:[%s2639 + $0x1f0] sm:$0xff]
  %v2703 = vld [vmem:[%s2639 + $0x1f8] sm:$0xff]
  %v2704 = vld [vmem:[%s2639 + $0x200] sm:$0xff]
  %v2705 = vld [vmem:[%s2639 + $0x208] sm:$0xff]
  %v2706 = vld [vmem:[%s2639 + $0x210] sm:$0xff]
  %v2707 = vld [vmem:[%s2639 + $0x218] sm:$0xff]
  %v2708 = vld [vmem:[%s2639 + $0x220] sm:$0xff]
  %v2709 = vld [vmem:[%s2639 + $0x228] sm:$0xff]
  %v2710 = vld [vmem:[%s2639 + $0x230] sm:$0xff]
  %v2711 = vld [vmem:[%s2639 + $0x238] sm:$0xff]
  %v2712 = vld [vmem:[%s2639 + $0x240] sm:$0xff]
  %v2713 = vld [vmem:[%s2639 + $0x248] sm:$0xff]
  %v2714 = vld [vmem:[%s2639 + $0x250] sm:$0xff]
  %v2715 = vld [vmem:[%s2639 + $0x258] sm:$0xff]
  %v2716 = vld [vmem:[%s2639 + $0x260] sm:$0xff]
  %v2717 = vld [vmem:[%s2639 + $0x268] sm:$0xff]
  %v2718 = vld [vmem:[%s2639 + $0x270] sm:$0xff]
  %v2719 = vld [vmem:[%s2639 + $0x278] sm:$0xff]
  %v2720 = vld [vmem:[%s2639 + $0x280] sm:$0xff]
  %v2721 = vld [vmem:[%s2639 + $0x288] sm:$0xff]
  %v2722 = vld [vmem:[%s2639 + $0x290] sm:$0xff]
  %v2723 = vld [vmem:[%s2639 + $0x298] sm:$0xff]
  %v2724 = vld [vmem:[%s2639 + $0x2a0] sm:$0xff]
  %v2725 = vld [vmem:[%s2639 + $0x2a8] sm:$0xff]
  %v2726 = vld [vmem:[%s2639 + $0x2b0] sm:$0xff]
  %v2727 = vld [vmem:[%s2639 + $0x2b8] sm:$0xff]
  %v2728 = vld [vmem:[%s2639 + $0x2c0] sm:$0xff]
  %v2729 = vld [vmem:[%s2639 + $0x2c8] sm:$0xff]
  %v2730 = vld [vmem:[%s2639 + $0x2d0] sm:$0xff]
  %v2731 = vld [vmem:[%s2639 + $0x2d8] sm:$0xff]
  %v2732 = vld [vmem:[%s2639 + $0x2e0] sm:$0xff]
  %v2733 = vld [vmem:[%s2639 + $0x2e8] sm:$0xff]
  %v2734 = vld [vmem:[%s2639 + $0x2f0] sm:$0xff]
  %v2735 = vld [vmem:[%s2639 + $0x2f8] sm:$0xff]
  %v2736 = vld [vmem:[%s2639 + $0x300] sm:$0xff]
  %v2737 = vld [vmem:[%s2639 + $0x308] sm:$0xff]
  %v2738 = vld [vmem:[%s2639 + $0x310] sm:$0xff]
  %v2739 = vld [vmem:[%s2639 + $0x318] sm:$0xff]
  %v2740 = vld [vmem:[%s2639 + $0x320] sm:$0xff]
  %v2741 = vld [vmem:[%s2639 + $0x328] sm:$0xff]
  %v2742 = vld [vmem:[%s2639 + $0x330] sm:$0xff]
  %v2743 = vld [vmem:[%s2639 + $0x338] sm:$0xff]
  %v2744 = vld [vmem:[%s2639 + $0x340] sm:$0xff]
  %v2745 = vld [vmem:[%s2639 + $0x348] sm:$0xff]
  %v2746 = vld [vmem:[%s2639 + $0x350] sm:$0xff]
  %v2747 = vld [vmem:[%s2639 + $0x358] sm:$0xff]
  %v2748 = vld [vmem:[%s2639 + $0x360] sm:$0xff]
  %v2749 = vld [vmem:[%s2639 + $0x368] sm:$0xff]
  %v2750 = vld [vmem:[%s2639 + $0x370] sm:$0xff]
  %v2751 = vld [vmem:[%s2639 + $0x378] sm:$0xff]
  %v2752 = vld [vmem:[%s2639 + $0x380] sm:$0xff]
  %v2753 = vld [vmem:[%s2639 + $0x388] sm:$0xff]
  %v2754 = vld [vmem:[%s2639 + $0x390] sm:$0xff]
  %v2755 = vld [vmem:[%s2639 + $0x398] sm:$0xff]
  %v2756 = vld [vmem:[%s2639 + $0x3a0] sm:$0xff]
  %v2757 = vld [vmem:[%s2639 + $0x3a8] sm:$0xff]
  %v2758 = vld [vmem:[%s2639 + $0x3b0] sm:$0xff]
  %v2759 = vld [vmem:[%s2639 + $0x3b8] sm:$0xff]
  %v2760 = vld [vmem:[%s2639 + $0x3c0] sm:$0xff]
  %v2761 = vld [vmem:[%s2639 + $0x3c8] sm:$0xff]
  %v2762 = vld [vmem:[%s2639 + $0x3d0] sm:$0xff]
  %v2763 = vld [vmem:[%s2639 + $0x3d8] sm:$0xff]
  %v2764 = vld [vmem:[%s2639 + $0x3e0] sm:$0xff]
  %v2765 = vld [vmem:[%s2639 + $0x3e8] sm:$0xff]
  %v2766 = vld [vmem:[%s2639 + $0x3f0] sm:$0xff]
  %v2767 = vld [vmem:[%s2639 + $0x3f8] sm:$0xff]
  %2768 = vmatprep.subr.mxu0 %v2641
  %2769 = vmatpush1.msra.mxu0 %v2640
  %2770 = vmatprep.subr.mxu0 %v2645
  %2771 = vmatpush1.msra.mxu0 %v2644
  %2772 = vmatprep.subr.mxu0 %v2649
  %2773 = vmatpush1.msra.mxu0 %v2648
  %2774 = vmatprep.subr.mxu0 %v2653
  %2775 = vmatpush1.msra.mxu0 %v2652
  %2776 = vmatprep.subr.mxu0 %v2657
  %2777 = vmatpush1.msra.mxu0 %v2656
  %2778 = vmatprep.subr.mxu0 %v2661
  %2779 = vmatpush1.msra.mxu0 %v2660
  %2780 = vmatprep.subr.mxu0 %v2665
  %2781 = vmatpush1.msra.mxu0 %v2664
  %2782 = vmatprep.subr.mxu0 %v2669
  %2783 = vmatpush1.msra.mxu0 %v2668
  %2784 = vmatprep.subr.mxu0 %v2673
  %2785 = vmatpush1.msra.mxu0 %v2672
  %2786 = vmatprep.subr.mxu0 %v2677
  %2787 = vmatpush1.msra.mxu0 %v2676
  %2788 = vmatprep.subr.mxu0 %v2681
  %2789 = vmatpush1.msra.mxu0 %v2680
  %2790 = vmatprep.subr.mxu0 %v2685
  %2791 = vmatpush1.msra.mxu0 %v2684
  %2792 = vmatprep.subr.mxu0 %v2689
  %2793 = vmatpush1.msra.mxu0 %v2688
  %2794 = vmatprep.subr.mxu0 %v2693
  %2795 = vmatpush1.msra.mxu0 %v2692
  %2796 = vmatprep.subr.mxu0 %v2697
  %2797 = vmatpush1.msra.mxu0 %v2696
  %2798 = vmatprep.subr.mxu0 %v2701
  %2799 = vmatpush1.msra.mxu0 %v2700
  %2800 = vmatprep.subr.mxu0 %v2705
  %2801 = vmatpush1.msra.mxu0 %v2704
  %2802 = vmatprep.subr.mxu0 %v2709
  %2803 = vmatpush1.msra.mxu0 %v2708
  %2804 = vmatprep.subr.mxu0 %v2713
  %2805 = vmatpush1.msra.mxu0 %v2712
  %2806 = vmatprep.subr.mxu0 %v2717
  %2807 = vmatpush1.msra.mxu0 %v2716
  %2808 = vmatprep.subr.mxu0 %v2721
  %2809 = vmatpush1.msra.mxu0 %v2720
  %2810 = vmatprep.subr.mxu0 %v2725
  %2811 = vmatpush1.msra.mxu0 %v2724
  %2812 = vmatprep.subr.mxu0 %v2729
  %2813 = vmatpush1.msra.mxu0 %v2728
  %2814 = vmatprep.subr.mxu0 %v2733
  %2815 = vmatpush1.msra.mxu0 %v2732
  %2816 = vmatprep.subr.mxu0 %v2737
  %2817 = vmatpush1.msra.mxu0 %v2736
  %2818 = vmatprep.subr.mxu0 %v2741
  %2819 = vmatpush1.msra.mxu0 %v2740
  %2820 = vmatprep.subr.mxu0 %v2745
  %2821 = vmatpush1.msra.mxu0 %v2744
  %2822 = vmatprep.subr.mxu0 %v2749
  %2823 = vmatpush1.msra.mxu0 %v2748
  %2824 = vmatprep.subr.mxu0 %v2753
  %2825 = vmatpush1.msra.mxu0 %v2752
  %2826 = vmatprep.subr.mxu0 %v2757
  %2827 = vmatpush1.msra.mxu0 %v2756
  %2828 = vmatprep.subr.mxu0 %v2761
  %2829 = vmatpush1.msra.mxu0 %v2760
  %2830 = vmatprep.subr.mxu0 %v2765
  %2831 = vmatpush1.msra.mxu0 %v2764
  %2832 = vmatprep.mubr.f32.mxu0 %v2083
  %2833 = vmatmul.mubr.f32.gmra.mrb[0].mxu0 %v2082
  %v2834 = vpop.f32.mrb[0].mxu0
  %v2835 = vadd.f32 0.0, %v2834
  %v2836 = vpop.f32.mrb[0].mxu0
  %v2837 = vadd.f32 0.0, %v2836
  %2838 = vdwg.mxu0
  %2839 = vmatprep.subr.mxu0 %v2643
  %2840 = vmatpush1.msra.mxu0 %v2642
  %2841 = vmatprep.subr.mxu0 %v2647
  %2842 = vmatpush1.msra.mxu0 %v2646
  %2843 = vmatprep.subr.mxu0 %v2651
  %2844 = vmatpush1.msra.mxu0 %v2650
  %2845 = vmatprep.subr.mxu0 %v2655
  %2846 = vmatpush1.msra.mxu0 %v2654
  %2847 = vmatprep.subr.mxu0 %v2659
  %2848 = vmatpush1.msra.mxu0 %v2658
  %2849 = vmatprep.subr.mxu0 %v2663
  %2850 = vmatpush1.msra.mxu0 %v2662
  %2851 = vmatprep.subr.mxu0 %v2667
  %2852 = vmatpush1.msra.mxu0 %v2666
  %2853 = vmatprep.subr.mxu0 %v2671
  %2854 = vmatpush1.msra.mxu0 %v2670
  %2855 = vmatprep.subr.mxu0 %v2675
  %2856 = vmatpush1.msra.mxu0 %v2674
  %2857 = vmatprep.subr.mxu0 %v2679
  %2858 = vmatpush1.msra.mxu0 %v2678
  %2859 = vmatprep.subr.mxu0 %v2683
  %2860 = vmatpush1.msra.mxu0 %v2682
  %2861 = vmatprep.subr.mxu0 %v2687
  %2862 = vmatpush1.msra.mxu0 %v2686
  %2863 = vmatprep.subr.mxu0 %v2691
  %2864 = vmatpush1.msra.mxu0 %v2690
  %2865 = vmatprep.subr.mxu0 %v2695
  %2866 = vmatpush1.msra.mxu0 %v2694
  %2867 = vmatprep.subr.mxu0 %v2699
  %2868 = vmatpush1.msra.mxu0 %v2698
  %2869 = vmatprep.subr.mxu0 %v2703
  %2870 = vmatpush1.msra.mxu0 %v2702
  %2871 = vmatprep.subr.mxu0 %v2707
  %2872 = vmatpush1.msra.mxu0 %v2706
  %2873 = vmatprep.subr.mxu0 %v2711
  %2874 = vmatpush1.msra.mxu0 %v2710
  %2875 = vmatprep.subr.mxu0 %v2715
  %2876 = vmatpush1.msra.mxu0 %v2714
  %2877 = vmatprep.subr.mxu0 %v2719
  %2878 = vmatpush1.msra.mxu0 %v2718
  %2879 = vmatprep.subr.mxu0 %v2723
  %2880 = vmatpush1.msra.mxu0 %v2722
  %2881 = vmatprep.subr.mxu0 %v2727
  %2882 = vmatpush1.msra.mxu0 %v2726
  %2883 = vmatprep.subr.mxu0 %v2731
  %2884 = vmatpush1.msra.mxu0 %v2730
  %2885 = vmatprep.subr.mxu0 %v2735
  %2886 = vmatpush1.msra.mxu0 %v2734
  %2887 = vmatprep.subr.mxu0 %v2739
  %2888 = vmatpush1.msra.mxu0 %v2738
  %2889 = vmatprep.subr.mxu0 %v2743
  %2890 = vmatpush1.msra.mxu0 %v2742
  %2891 = vmatprep.subr.mxu0 %v2747
  %2892 = vmatpush1.msra.mxu0 %v2746
  %2893 = vmatprep.subr.mxu0 %v2751
  %2894 = vmatpush1.msra.mxu0 %v2750
  %2895 = vmatprep.subr.mxu0 %v2755
  %2896 = vmatpush1.msra.mxu0 %v2754
  %2897 = vmatprep.subr.mxu0 %v2759
  %2898 = vmatpush1.msra.mxu0 %v2758
  %2899 = vmatprep.subr.mxu0 %v2763
  %2900 = vmatpush1.msra.mxu0 %v2762
  %2901 = vmatprep.subr.mxu0 %v2767
  %2902 = vmatpush1.msra.mxu0 %v2766
  %2903 = vmatprep.mubr.f32.mxu0 %v2083
  %2904 = vmatmul.mubr.f32.gmra.mrb[0].mxu0 %v2082
  %v2905 = vpop.f32.mrb[0].mxu0
  %v2906 = vadd.f32 0.0, %v2905
  %v2907 = vpop.f32.mrb[0].mxu0
  %v2908 = vadd.f32 0.0, %v2907
  %2909 = vdwg.mxu0
  %v2910 = vadd.f32 %v2564, %v2835
  %v2911 = vadd.f32 %v2566, %v2837
  %v2912 = vadd.f32 %v2635, %v2906
  %v2913 = vadd.f32 %v2637, %v2908
  %s2914 = scalar_lea.vmem %s5, 3072
  %v2915 = vld [vmem:[%s2914] sm:$0xff]
  %v2916 = vld [vmem:[%s2914 + $0x8] sm:$0xff]
  %v2917 = vld [vmem:[%s2914 + $0x10] sm:$0xff]
  %v2918 = vld [vmem:[%s2914 + $0x18] sm:$0xff]
  %v2919 = vld [vmem:[%s2914 + $0x20] sm:$0xff]
  %v2920 = vld [vmem:[%s2914 + $0x28] sm:$0xff]
  %v2921 = vld [vmem:[%s2914 + $0x30] sm:$0xff]
  %v2922 = vld [vmem:[%s2914 + $0x38] sm:$0xff]
  %v2923 = vld [vmem:[%s2914 + $0x40] sm:$0xff]
  %v2924 = vld [vmem:[%s2914 + $0x48] sm:$0xff]
  %v2925 = vld [vmem:[%s2914 + $0x50] sm:$0xff]
  %v2926 = vld [vmem:[%s2914 + $0x58] sm:$0xff]
  %v2927 = vld [vmem:[%s2914 + $0x60] sm:$0xff]
  %v2928 = vld [vmem:[%s2914 + $0x68] sm:$0xff]
  %v2929 = vld [vmem:[%s2914 + $0x70] sm:$0xff]
  %v2930 = vld [vmem:[%s2914 + $0x78] sm:$0xff]
  %v2931 = vld [vmem:[%s2914 + $0x80] sm:$0xff]
  %v2932 = vld [vmem:[%s2914 + $0x88] sm:$0xff]
  %v2933 = vld [vmem:[%s2914 + $0x90] sm:$0xff]
  %v2934 = vld [vmem:[%s2914 + $0x98] sm:$0xff]
  %v2935 = vld [vmem:[%s2914 + $0xa0] sm:$0xff]
  %v2936 = vld [vmem:[%s2914 + $0xa8] sm:$0xff]
  %v2937 = vld [vmem:[%s2914 + $0xb0] sm:$0xff]
  %v2938 = vld [vmem:[%s2914 + $0xb8] sm:$0xff]
  %v2939 = vld [vmem:[%s2914 + $0xc0] sm:$0xff]
  %v2940 = vld [vmem:[%s2914 + $0xc8] sm:$0xff]
  %v2941 = vld [vmem:[%s2914 + $0xd0] sm:$0xff]
  %v2942 = vld [vmem:[%s2914 + $0xd8] sm:$0xff]
  %v2943 = vld [vmem:[%s2914 + $0xe0] sm:$0xff]
  %v2944 = vld [vmem:[%s2914 + $0xe8] sm:$0xff]
  %v2945 = vld [vmem:[%s2914 + $0xf0] sm:$0xff]
  %v2946 = vld [vmem:[%s2914 + $0xf8] sm:$0xff]
  %v2947 = vld [vmem:[%s2914 + $0x100] sm:$0xff]
  %v2948 = vld [vmem:[%s2914 + $0x108] sm:$0xff]
  %v2949 = vld [vmem:[%s2914 + $0x110] sm:$0xff]
  %v2950 = vld [vmem:[%s2914 + $0x118] sm:$0xff]
  %v2951 = vld [vmem:[%s2914 + $0x120] sm:$0xff]
  %v2952 = vld [vmem:[%s2914 + $0x128] sm:$0xff]
  %v2953 = vld [vmem:[%s2914 + $0x130] sm:$0xff]
  %v2954 = vld [vmem:[%s2914 + $0x138] sm:$0xff]
  %v2955 = vld [vmem:[%s2914 + $0x140] sm:$0xff]
  %v2956 = vld [vmem:[%s2914 + $0x148] sm:$0xff]
  %v2957 = vld [vmem:[%s2914 + $0x150] sm:$0xff]
  %v2958 = vld [vmem:[%s2914 + $0x158] sm:$0xff]
  %v2959 = vld [vmem:[%s2914 + $0x160] sm:$0xff]
  %v2960 = vld [vmem:[%s2914 + $0x168] sm:$0xff]
  %v2961 = vld [vmem:[%s2914 + $0x170] sm:$0xff]
  %v2962 = vld [vmem:[%s2914 + $0x178] sm:$0xff]
  %v2963 = vld [vmem:[%s2914 + $0x180] sm:$0xff]
  %v2964 = vld [vmem:[%s2914 + $0x188] sm:$0xff]
  %v2965 = vld [vmem:[%s2914 + $0x190] sm:$0xff]
  %v2966 = vld [vmem:[%s2914 + $0x198] sm:$0xff]
  %v2967 = vld [vmem:[%s2914 + $0x1a0] sm:$0xff]
  %v2968 = vld [vmem:[%s2914 + $0x1a8] sm:$0xff]
  %v2969 = vld [vmem:[%s2914 + $0x1b0] sm:$0xff]
  %v2970 = vld [vmem:[%s2914 + $0x1b8] sm:$0xff]
  %v2971 = vld [vmem:[%s2914 + $0x1c0] sm:$0xff]
  %v2972 = vld [vmem:[%s2914 + $0x1c8] sm:$0xff]
  %v2973 = vld [vmem:[%s2914 + $0x1d0] sm:$0xff]
  %v2974 = vld [vmem:[%s2914 + $0x1d8] sm:$0xff]
  %v2975 = vld [vmem:[%s2914 + $0x1e0] sm:$0xff]
  %v2976 = vld [vmem:[%s2914 + $0x1e8] sm:$0xff]
  %v2977 = vld [vmem:[%s2914 + $0x1f0] sm:$0xff]
  %v2978 = vld [vmem:[%s2914 + $0x1f8] sm:$0xff]
  %v2979 = vld [vmem:[%s2914 + $0x200] sm:$0xff]
  %v2980 = vld [vmem:[%s2914 + $0x208] sm:$0xff]
  %v2981 = vld [vmem:[%s2914 + $0x210] sm:$0xff]
  %v2982 = vld [vmem:[%s2914 + $0x218] sm:$0xff]
  %v2983 = vld [vmem:[%s2914 + $0x220] sm:$0xff]
  %v2984 = vld [vmem:[%s2914 + $0x228] sm:$0xff]
  %v2985 = vld [vmem:[%s2914 + $0x230] sm:$0xff]
  %v2986 = vld [vmem:[%s2914 + $0x238] sm:$0xff]
  %v2987 = vld [vmem:[%s2914 + $0x240] sm:$0xff]
  %v2988 = vld [vmem:[%s2914 + $0x248] sm:$0xff]
  %v2989 = vld [vmem:[%s2914 + $0x250] sm:$0xff]
  %v2990 = vld [vmem:[%s2914 + $0x258] sm:$0xff]
  %v2991 = vld [vmem:[%s2914 + $0x260] sm:$0xff]
  %v2992 = vld [vmem:[%s2914 + $0x268] sm:$0xff]
  %v2993 = vld [vmem:[%s2914 + $0x270] sm:$0xff]
  %v2994 = vld [vmem:[%s2914 + $0x278] sm:$0xff]
  %v2995 = vld [vmem:[%s2914 + $0x280] sm:$0xff]
  %v2996 = vld [vmem:[%s2914 + $0x288] sm:$0xff]
  %v2997 = vld [vmem:[%s2914 + $0x290] sm:$0xff]
  %v2998 = vld [vmem:[%s2914 + $0x298] sm:$0xff]
  %v2999 = vld [vmem:[%s2914 + $0x2a0] sm:$0xff]
  %v3000 = vld [vmem:[%s2914 + $0x2a8] sm:$0xff]
  %v3001 = vld [vmem:[%s2914 + $0x2b0] sm:$0xff]
  %v3002 = vld [vmem:[%s2914 + $0x2b8] sm:$0xff]
  %v3003 = vld [vmem:[%s2914 + $0x2c0] sm:$0xff]
  %v3004 = vld [vmem:[%s2914 + $0x2c8] sm:$0xff]
  %v3005 = vld [vmem:[%s2914 + $0x2d0] sm:$0xff]
  %v3006 = vld [vmem:[%s2914 + $0x2d8] sm:$0xff]
  %v3007 = vld [vmem:[%s2914 + $0x2e0] sm:$0xff]
  %v3008 = vld [vmem:[%s2914 + $0x2e8] sm:$0xff]
  %v3009 = vld [vmem:[%s2914 + $0x2f0] sm:$0xff]
  %v3010 = vld [vmem:[%s2914 + $0x2f8] sm:$0xff]
  %v3011 = vld [vmem:[%s2914 + $0x300] sm:$0xff]
  %v3012 = vld [vmem:[%s2914 + $0x308] sm:$0xff]
  %v3013 = vld [vmem:[%s2914 + $0x310] sm:$0xff]
  %v3014 = vld [vmem:[%s2914 + $0x318] sm:$0xff]
  %v3015 = vld [vmem:[%s2914 + $0x320] sm:$0xff]
  %v3016 = vld [vmem:[%s2914 + $0x328] sm:$0xff]
  %v3017 = vld [vmem:[%s2914 + $0x330] sm:$0xff]
  %v3018 = vld [vmem:[%s2914 + $0x338] sm:$0xff]
  %v3019 = vld [vmem:[%s2914 + $0x340] sm:$0xff]
  %v3020 = vld [vmem:[%s2914 + $0x348] sm:$0xff]
  %v3021 = vld [vmem:[%s2914 + $0x350] sm:$0xff]
  %v3022 = vld [vmem:[%s2914 + $0x358] sm:$0xff]
  %v3023 = vld [vmem:[%s2914 + $0x360] sm:$0xff]
  %v3024 = vld [vmem:[%s2914 + $0x368] sm:$0xff]
  %v3025 = vld [vmem:[%s2914 + $0x370] sm:$0xff]
  %v3026 = vld [vmem:[%s2914 + $0x378] sm:$0xff]
  %v3027 = vld [vmem:[%s2914 + $0x380] sm:$0xff]
  %v3028 = vld [vmem:[%s2914 + $0x388] sm:$0xff]
  %v3029 = vld [vmem:[%s2914 + $0x390] sm:$0xff]
  %v3030 = vld [vmem:[%s2914 + $0x398] sm:$0xff]
  %v3031 = vld [vmem:[%s2914 + $0x3a0] sm:$0xff]
  %v3032 = vld [vmem:[%s2914 + $0x3a8] sm:$0xff]
  %v3033 = vld [vmem:[%s2914 + $0x3b0] sm:$0xff]
  %v3034 = vld [vmem:[%s2914 + $0x3b8] sm:$0xff]
  %v3035 = vld [vmem:[%s2914 + $0x3c0] sm:$0xff]
  %v3036 = vld [vmem:[%s2914 + $0x3c8] sm:$0xff]
  %v3037 = vld [vmem:[%s2914 + $0x3d0] sm:$0xff]
  %v3038 = vld [vmem:[%s2914 + $0x3d8] sm:$0xff]
  %v3039 = vld [vmem:[%s2914 + $0x3e0] sm:$0xff]
  %v3040 = vld [vmem:[%s2914 + $0x3e8] sm:$0xff]
  %v3041 = vld [vmem:[%s2914 + $0x3f0] sm:$0xff]
  %v3042 = vld [vmem:[%s2914 + $0x3f8] sm:$0xff]
  %3043 = vmatprep.subr.mxu0 %v2916
  %3044 = vmatpush1.msra.mxu0 %v2915
  %3045 = vmatprep.subr.mxu0 %v2920
  %3046 = vmatpush1.msra.mxu0 %v2919
  %3047 = vmatprep.subr.mxu0 %v2924
  %3048 = vmatpush1.msra.mxu0 %v2923
  %3049 = vmatprep.subr.mxu0 %v2928
  %3050 = vmatpush1.msra.mxu0 %v2927
  %3051 = vmatprep.subr.mxu0 %v2932
  %3052 = vmatpush1.msra.mxu0 %v2931
  %3053 = vmatprep.subr.mxu0 %v2936
  %3054 = vmatpush1.msra.mxu0 %v2935
  %3055 = vmatprep.subr.mxu0 %v2940
  %3056 = vmatpush1.msra.mxu0 %v2939
  %3057 = vmatprep.subr.mxu0 %v2944
  %3058 = vmatpush1.msra.mxu0 %v2943
  %3059 = vmatprep.subr.mxu0 %v2948
  %3060 = vmatpush1.msra.mxu0 %v2947
  %3061 = vmatprep.subr.mxu0 %v2952
  %3062 = vmatpush1.msra.mxu0 %v2951
  %3063 = vmatprep.subr.mxu0 %v2956
  %3064 = vmatpush1.msra.mxu0 %v2955
  %3065 = vmatprep.subr.mxu0 %v2960
  %3066 = vmatpush1.msra.mxu0 %v2959
  %3067 = vmatprep.subr.mxu0 %v2964
  %3068 = vmatpush1.msra.mxu0 %v2963
  %3069 = vmatprep.subr.mxu0 %v2968
  %3070 = vmatpush1.msra.mxu0 %v2967
  %3071 = vmatprep.subr.mxu0 %v2972
  %3072 = vmatpush1.msra.mxu0 %v2971
  %3073 = vmatprep.subr.mxu0 %v2976
  %3074 = vmatpush1.msra.mxu0 %v2975
  %3075 = vmatprep.subr.mxu0 %v2980
  %3076 = vmatpush1.msra.mxu0 %v2979
  %3077 = vmatprep.subr.mxu0 %v2984
  %3078 = vmatpush1.msra.mxu0 %v2983
  %3079 = vmatprep.subr.mxu0 %v2988
  %3080 = vmatpush1.msra.mxu0 %v2987
  %3081 = vmatprep.subr.mxu0 %v2992
  %3082 = vmatpush1.msra.mxu0 %v2991
  %3083 = vmatprep.subr.mxu0 %v2996
  %3084 = vmatpush1.msra.mxu0 %v2995
  %3085 = vmatprep.subr.mxu0 %v3000
  %3086 = vmatpush1.msra.mxu0 %v2999
  %3087 = vmatprep.subr.mxu0 %v3004
  %3088 = vmatpush1.msra.mxu0 %v3003
  %3089 = vmatprep.subr.mxu0 %v3008
  %3090 = vmatpush1.msra.mxu0 %v3007
  %3091 = vmatprep.subr.mxu0 %v3012
  %3092 = vmatpush1.msra.mxu0 %v3011
  %3093 = vmatprep.subr.mxu0 %v3016
  %3094 = vmatpush1.msra.mxu0 %v3015
  %3095 = vmatprep.subr.mxu0 %v3020
  %3096 = vmatpush1.msra.mxu0 %v3019
  %3097 = vmatprep.subr.mxu0 %v3024
  %3098 = vmatpush1.msra.mxu0 %v3023
  %3099 = vmatprep.subr.mxu0 %v3028
  %3100 = vmatpush1.msra.mxu0 %v3027
  %3101 = vmatprep.subr.mxu0 %v3032
  %3102 = vmatpush1.msra.mxu0 %v3031
  %3103 = vmatprep.subr.mxu0 %v3036
  %3104 = vmatpush1.msra.mxu0 %v3035
  %3105 = vmatprep.subr.mxu0 %v3040
  %3106 = vmatpush1.msra.mxu0 %v3039
  %3107 = vmatprep.mubr.f32.mxu0 %v2085
  %3108 = vmatmul.mubr.f32.gmra.mrb[0].mxu0 %v2084
  %v3109 = vpop.f32.mrb[0].mxu0
  %v3110 = vadd.f32 0.0, %v3109
  %v3111 = vpop.f32.mrb[0].mxu0
  %v3112 = vadd.f32 0.0, %v3111
  %3113 = vdwg.mxu0
  %3114 = vmatprep.subr.mxu0 %v2918
  %3115 = vmatpush1.msra.mxu0 %v2917
  %3116 = vmatprep.subr.mxu0 %v2922
  %3117 = vmatpush1.msra.mxu0 %v2921
  %3118 = vmatprep.subr.mxu0 %v2926
  %3119 = vmatpush1.msra.mxu0 %v2925
  %3120 = vmatprep.subr.mxu0 %v2930
  %3121 = vmatpush1.msra.mxu0 %v2929
  %3122 = vmatprep.subr.mxu0 %v2934
  %3123 = vmatpush1.msra.mxu0 %v2933
  %3124 = vmatprep.subr.mxu0 %v2938
  %3125 = vmatpush1.msra.mxu0 %v2937
  %3126 = vmatprep.subr.mxu0 %v2942
  %3127 = vmatpush1.msra.mxu0 %v2941
  %3128 = vmatprep.subr.mxu0 %v2946
  %3129 = vmatpush1.msra.mxu0 %v2945
  %3130 = vmatprep.subr.mxu0 %v2950
  %3131 = vmatpush1.msra.mxu0 %v2949
  %3132 = vmatprep.subr.mxu0 %v2954
  %3133 = vmatpush1.msra.mxu0 %v2953
  %3134 = vmatprep.subr.mxu0 %v2958
  %3135 = vmatpush1.msra.mxu0 %v2957
  %3136 = vmatprep.subr.mxu0 %v2962
  %3137 = vmatpush1.msra.mxu0 %v2961
  %3138 = vmatprep.subr.mxu0 %v2966
  %3139 = vmatpush1.msra.mxu0 %v2965
  %3140 = vmatprep.subr.mxu0 %v2970
  %3141 = vmatpush1.msra.mxu0 %v2969
  %3142 = vmatprep.subr.mxu0 %v2974
  %3143 = vmatpush1.msra.mxu0 %v2973
  %3144 = vmatprep.subr.mxu0 %v2978
  %3145 = vmatpush1.msra.mxu0 %v2977
  %3146 = vmatprep.subr.mxu0 %v2982
  %3147 = vmatpush1.msra.mxu0 %v2981
  %3148 = vmatprep.subr.mxu0 %v2986
  %3149 = vmatpush1.msra.mxu0 %v2985
  %3150 = vmatprep.subr.mxu0 %v2990
  %3151 = vmatpush1.msra.mxu0 %v2989
  %3152 = vmatprep.subr.mxu0 %v2994
  %3153 = vmatpush1.msra.mxu0 %v2993
  %3154 = vmatprep.subr.mxu0 %v2998
  %3155 = vmatpush1.msra.mxu0 %v2997
  %3156 = vmatprep.subr.mxu0 %v3002
  %3157 = vmatpush1.msra.mxu0 %v3001
  %3158 = vmatprep.subr.mxu0 %v3006
  %3159 = vmatpush1.msra.mxu0 %v3005
  %3160 = vmatprep.subr.mxu0 %v3010
  %3161 = vmatpush1.msra.mxu0 %v3009
  %3162 = vmatprep.subr.mxu0 %v3014
  %3163 = vmatpush1.msra.mxu0 %v3013
  %3164 = vmatprep.subr.mxu0 %v3018
  %3165 = vmatpush1.msra.mxu0 %v3017
  %3166 = vmatprep.subr.mxu0 %v3022
  %3167 = vmatpush1.msra.mxu0 %v3021
  %3168 = vmatprep.subr.mxu0 %v3026
  %3169 = vmatpush1.msra.mxu0 %v3025
  %3170 = vmatprep.subr.mxu0 %v3030
  %3171 = vmatpush1.msra.mxu0 %v3029
  %3172 = vmatprep.subr.mxu0 %v3034
  %3173 = vmatpush1.msra.mxu0 %v3033
  %3174 = vmatprep.subr.mxu0 %v3038
  %3175 = vmatpush1.msra.mxu0 %v3037
  %3176 = vmatprep.subr.mxu0 %v3042
  %3177 = vmatpush1.msra.mxu0 %v3041
  %3178 = vmatprep.mubr.f32.mxu0 %v2085
  %3179 = vmatmul.mubr.f32.gmra.mrb[0].mxu0 %v2084
  %v3180 = vpop.f32.mrb[0].mxu0
  %v3181 = vadd.f32 0.0, %v3180
  %v3182 = vpop.f32.mrb[0].mxu0
  %v3183 = vadd.f32 0.0, %v3182
  %3184 = vdwg.mxu0
  %v3185 = vadd.f32 %v2910, %v3110
  %v3186 = vadd.f32 %v2911, %v3112
  %v3187 = vadd.f32 %v2912, %v3181
  %v3188 = vadd.f32 %v2913, %v3183
  %s3189 = scalar_lea.vmem %s5, 4096
  %v3190 = vld [vmem:[%s3189] sm:$0xff]
  %v3191 = vld [vmem:[%s3189 + $0x8] sm:$0xff]
  %v3192 = vld [vmem:[%s3189 + $0x10] sm:$0xff]
  %v3193 = vld [vmem:[%s3189 + $0x18] sm:$0xff]
  %v3194 = vld [vmem:[%s3189 + $0x20] sm:$0xff]
  %v3195 = vld [vmem:[%s3189 + $0x28] sm:$0xff]
  %v3196 = vld [vmem:[%s3189 + $0x30] sm:$0xff]
  %v3197 = vld [vmem:[%s3189 + $0x38] sm:$0xff]
  %v3198 = vld [vmem:[%s3189 + $0x40] sm:$0xff]
  %v3199 = vld [vmem:[%s3189 + $0x48] sm:$0xff]
  %v3200 = vld [vmem:[%s3189 + $0x50] sm:$0xff]
  %v3201 = vld [vmem:[%s3189 + $0x58] sm:$0xff]
  %v3202 = vld [vmem:[%s3189 + $0x60] sm:$0xff]
  %v3203 = vld [vmem:[%s3189 + $0x68] sm:$0xff]
  %v3204 = vld [vmem:[%s3189 + $0x70] sm:$0xff]
  %v3205 = vld [vmem:[%s3189 + $0x78] sm:$0xff]
  %v3206 = vld [vmem:[%s3189 + $0x80] sm:$0xff]
  %v3207 = vld [vmem:[%s3189 + $0x88] sm:$0xff]
  %v3208 = vld [vmem:[%s3189 + $0x90] sm:$0xff]
  %v3209 = vld [vmem:[%s3189 + $0x98] sm:$0xff]
  %v3210 = vld [vmem:[%s3189 + $0xa0] sm:$0xff]
  %v3211 = vld [vmem:[%s3189 + $0xa8] sm:$0xff]
  %v3212 = vld [vmem:[%s3189 + $0xb0] sm:$0xff]
  %v3213 = vld [vmem:[%s3189 + $0xb8] sm:$0xff]
  %v3214 = vld [vmem:[%s3189 + $0xc0] sm:$0xff]
  %v3215 = vld [vmem:[%s3189 + $0xc8] sm:$0xff]
  %v3216 = vld [vmem:[%s3189 + $0xd0] sm:$0xff]
  %v3217 = vld [vmem:[%s3189 + $0xd8] sm:$0xff]
  %v3218 = vld [vmem:[%s3189 + $0xe0] sm:$0xff]
  %v3219 = vld [vmem:[%s3189 + $0xe8] sm:$0xff]
  %v3220 = vld [vmem:[%s3189 + $0xf0] sm:$0xff]
  %v3221 = vld [vmem:[%s3189 + $0xf8] sm:$0xff]
  %v3222 = vld [vmem:[%s3189 + $0x100] sm:$0xff]
  %v3223 = vld [vmem:[%s3189 + $0x108] sm:$0xff]
  %v3224 = vld [vmem:[%s3189 + $0x110] sm:$0xff]
  %v3225 = vld [vmem:[%s3189 + $0x118] sm:$0xff]
  %v3226 = vld [vmem:[%s3189 + $0x120] sm:$0xff]
  %v3227 = vld [vmem:[%s3189 + $0x128] sm:$0xff]
  %v3228 = vld [vmem:[%s3189 + $0x130] sm:$0xff]
  %v3229 = vld [vmem:[%s3189 + $0x138] sm:$0xff]
  %v3230 = vld [vmem:[%s3189 + $0x140] sm:$0xff]
  %v3231 = vld [vmem:[%s3189 + $0x148] sm:$0xff]
  %v3232 = vld [vmem:[%s3189 + $0x150] sm:$0xff]
  %v3233 = vld [vmem:[%s3189 + $0x158] sm:$0xff]
  %v3234 = vld [vmem:[%s3189 + $0x160] sm:$0xff]
  %v3235 = vld [vmem:[%s3189 + $0x168] sm:$0xff]
  %v3236 = vld [vmem:[%s3189 + $0x170] sm:$0xff]
  %v3237 = vld [vmem:[%s3189 + $0x178] sm:$0xff]
  %v3238 = vld [vmem:[%s3189 + $0x180] sm:$0xff]
  %v3239 = vld [vmem:[%s3189 + $0x188] sm:$0xff]
  %v3240 = vld [vmem:[%s3189 + $0x190] sm:$0xff]
  %v3241 = vld [vmem:[%s3189 + $0x198] sm:$0xff]
  %v3242 = vld [vmem:[%s3189 + $0x1a0] sm:$0xff]
  %v3243 = vld [vmem:[%s3189 + $0x1a8] sm:$0xff]
  %v3244 = vld [vmem:[%s3189 + $0x1b0] sm:$0xff]
  %v3245 = vld [vmem:[%s3189 + $0x1b8] sm:$0xff]
  %v3246 = vld [vmem:[%s3189 + $0x1c0] sm:$0xff]
  %v3247 = vld [vmem:[%s3189 + $0x1c8] sm:$0xff]
  %v3248 = vld [vmem:[%s3189 + $0x1d0] sm:$0xff]
  %v3249 = vld [vmem:[%s3189 + $0x1d8] sm:$0xff]
  %v3250 = vld [vmem:[%s3189 + $0x1e0] sm:$0xff]
  %v3251 = vld [vmem:[%s3189 + $0x1e8] sm:$0xff]
  %v3252 = vld [vmem:[%s3189 + $0x1f0] sm:$0xff]
  %v3253 = vld [vmem:[%s3189 + $0x1f8] sm:$0xff]
  %v3254 = vld [vmem:[%s3189 + $0x200] sm:$0xff]
  %v3255 = vld [vmem:[%s3189 + $0x208] sm:$0xff]
  %v3256 = vld [vmem:[%s3189 + $0x210] sm:$0xff]
  %v3257 = vld [vmem:[%s3189 + $0x218] sm:$0xff]
  %v3258 = vld [vmem:[%s3189 + $0x220] sm:$0xff]
  %v3259 = vld [vmem:[%s3189 + $0x228] sm:$0xff]
  %v3260 = vld [vmem:[%s3189 + $0x230] sm:$0xff]
  %v3261 = vld [vmem:[%s3189 + $0x238] sm:$0xff]
  %v3262 = vld [vmem:[%s3189 + $0x240] sm:$0xff]
  %v3263 = vld [vmem:[%s3189 + $0x248] sm:$0xff]
  %v3264 = vld [vmem:[%s3189 + $0x250] sm:$0xff]
  %v3265 = vld [vmem:[%s3189 + $0x258] sm:$0xff]
  %v3266 = vld [vmem:[%s3189 + $0x260] sm:$0xff]
  %v3267 = vld [vmem:[%s3189 + $0x268] sm:$0xff]
  %v3268 = vld [vmem:[%s3189 + $0x270] sm:$0xff]
  %v3269 = vld [vmem:[%s3189 + $0x278] sm:$0xff]
  %v3270 = vld [vmem:[%s3189 + $0x280] sm:$0xff]
  %v3271 = vld [vmem:[%s3189 + $0x288] sm:$0xff]
  %v3272 = vld [vmem:[%s3189 + $0x290] sm:$0xff]
  %v3273 = vld [vmem:[%s3189 + $0x298] sm:$0xff]
  %v3274 = vld [vmem:[%s3189 + $0x2a0] sm:$0xff]
  %v3275 = vld [vmem:[%s3189 + $0x2a8] sm:$0xff]
  %v3276 = vld [vmem:[%s3189 + $0x2b0] sm:$0xff]
  %v3277 = vld [vmem:[%s3189 + $0x2b8] sm:$0xff]
  %v3278 = vld [vmem:[%s3189 + $0x2c0] sm:$0xff]
  %v3279 = vld [vmem:[%s3189 + $0x2c8] sm:$0xff]
  %v3280 = vld [vmem:[%s3189 + $0x2d0] sm:$0xff]
  %v3281 = vld [vmem:[%s3189 + $0x2d8] sm:$0xff]
  %v3282 = vld [vmem:[%s3189 + $0x2e0] sm:$0xff]
  %v3283 = vld [vmem:[%s3189 + $0x2e8] sm:$0xff]
  %v3284 = vld [vmem:[%s3189 + $0x2f0] sm:$0xff]
  %v3285 = vld [vmem:[%s3189 + $0x2f8] sm:$0xff]
  %v3286 = vld [vmem:[%s3189 + $0x300] sm:$0xff]
  %v3287 = vld [vmem:[%s3189 + $0x308] sm:$0xff]
  %v3288 = vld [vmem:[%s3189 + $0x310] sm:$0xff]
  %v3289 = vld [vmem:[%s3189 + $0x318] sm:$0xff]
  %v3290 = vld [vmem:[%s3189 + $0x320] sm:$0xff]
  %v3291 = vld [vmem:[%s3189 + $0x328] sm:$0xff]
  %v3292 = vld [vmem:[%s3189 + $0x330] sm:$0xff]
  %v3293 = vld [vmem:[%s3189 + $0x338] sm:$0xff]
  %v3294 = vld [vmem:[%s3189 + $0x340] sm:$0xff]
  %v3295 = vld [vmem:[%s3189 + $0x348] sm:$0xff]
  %v3296 = vld [vmem:[%s3189 + $0x350] sm:$0xff]
  %v3297 = vld [vmem:[%s3189 + $0x358] sm:$0xff]
  %v3298 = vld [vmem:[%s3189 + $0x360] sm:$0xff]
  %v3299 = vld [vmem:[%s3189 + $0x368] sm:$0xff]
  %v3300 = vld [vmem:[%s3189 + $0x370] sm:$0xff]
  %v3301 = vld [vmem:[%s3189 + $0x378] sm:$0xff]
  %v3302 = vld [vmem:[%s3189 + $0x380] sm:$0xff]
  %v3303 = vld [vmem:[%s3189 + $0x388] sm:$0xff]
  %v3304 = vld [vmem:[%s3189 + $0x390] sm:$0xff]
  %v3305 = vld [vmem:[%s3189 + $0x398] sm:$0xff]
  %v3306 = vld [vmem:[%s3189 + $0x3a0] sm:$0xff]
  %v3307 = vld [vmem:[%s3189 + $0x3a8] sm:$0xff]
  %v3308 = vld [vmem:[%s3189 + $0x3b0] sm:$0xff]
  %v3309 = vld [vmem:[%s3189 + $0x3b8] sm:$0xff]
  %v3310 = vld [vmem:[%s3189 + $0x3c0] sm:$0xff]
  %v3311 = vld [vmem:[%s3189 + $0x3c8] sm:$0xff]
  %v3312 = vld [vmem:[%s3189 + $0x3d0] sm:$0xff]
  %v3313 = vld [vmem:[%s3189 + $0x3d8] sm:$0xff]
  %v3314 = vld [vmem:[%s3189 + $0x3e0] sm:$0xff]
  %v3315 = vld [vmem:[%s3189 + $0x3e8] sm:$0xff]
  %v3316 = vld [vmem:[%s3189 + $0x3f0] sm:$0xff]
  %v3317 = vld [vmem:[%s3189 + $0x3f8] sm:$0xff]
  %3318 = vmatprep.subr.mxu0 %v3191
  %3319 = vmatpush1.msra.mxu0 %v3190
  %3320 = vmatprep.subr.mxu0 %v3195
  %3321 = vmatpush1.msra.mxu0 %v3194
  %3322 = vmatprep.subr.mxu0 %v3199
  %3323 = vmatpush1.msra.mxu0 %v3198
  %3324 = vmatprep.subr.mxu0 %v3203
  %3325 = vmatpush1.msra.mxu0 %v3202
  %3326 = vmatprep.subr.mxu0 %v3207
  %3327 = vmatpush1.msra.mxu0 %v3206
  %3328 = vmatprep.subr.mxu0 %v3211
  %3329 = vmatpush1.msra.mxu0 %v3210
  %3330 = vmatprep.subr.mxu0 %v3215
  %3331 = vmatpush1.msra.mxu0 %v3214
  %3332 = vmatprep.subr.mxu0 %v3219
  %3333 = vmatpush1.msra.mxu0 %v3218
  %3334 = vmatprep.subr.mxu0 %v3223
  %3335 = vmatpush1.msra.mxu0 %v3222
  %3336 = vmatprep.subr.mxu0 %v3227
  %3337 = vmatpush1.msra.mxu0 %v3226
  %3338 = vmatprep.subr.mxu0 %v3231
  %3339 = vmatpush1.msra.mxu0 %v3230
  %3340 = vmatprep.subr.mxu0 %v3235
  %3341 = vmatpush1.msra.mxu0 %v3234
  %3342 = vmatprep.subr.mxu0 %v3239
  %3343 = vmatpush1.msra.mxu0 %v3238
  %3344 = vmatprep.subr.mxu0 %v3243
  %3345 = vmatpush1.msra.mxu0 %v3242
  %3346 = vmatprep.subr.mxu0 %v3247
  %3347 = vmatpush1.msra.mxu0 %v3246
  %3348 = vmatprep.subr.mxu0 %v3251
  %3349 = vmatpush1.msra.mxu0 %v3250
  %3350 = vmatprep.subr.mxu0 %v3255
  %3351 = vmatpush1.msra.mxu0 %v3254
  %3352 = vmatprep.subr.mxu0 %v3259
  %3353 = vmatpush1.msra.mxu0 %v3258
  %3354 = vmatprep.subr.mxu0 %v3263
  %3355 = vmatpush1.msra.mxu0 %v3262
  %3356 = vmatprep.subr.mxu0 %v3267
  %3357 = vmatpush1.msra.mxu0 %v3266
  %3358 = vmatprep.subr.mxu0 %v3271
  %3359 = vmatpush1.msra.mxu0 %v3270
  %3360 = vmatprep.subr.mxu0 %v3275
  %3361 = vmatpush1.msra.mxu0 %v3274
  %3362 = vmatprep.subr.mxu0 %v3279
  %3363 = vmatpush1.msra.mxu0 %v3278
  %3364 = vmatprep.subr.mxu0 %v3283
  %3365 = vmatpush1.msra.mxu0 %v3282
  %3366 = vmatprep.subr.mxu0 %v3287
  %3367 = vmatpush1.msra.mxu0 %v3286
  %3368 = vmatprep.subr.mxu0 %v3291
  %3369 = vmatpush1.msra.mxu0 %v3290
  %3370 = vmatprep.subr.mxu0 %v3295
  %3371 = vmatpush1.msra.mxu0 %v3294
  %3372 = vmatprep.subr.mxu0 %v3299
  %3373 = vmatpush1.msra.mxu0 %v3298
  %3374 = vmatprep.subr.mxu0 %v3303
  %3375 = vmatpush1.msra.mxu0 %v3302
  %3376 = vmatprep.subr.mxu0 %v3307
  %3377 = vmatpush1.msra.mxu0 %v3306
  %3378 = vmatprep.subr.mxu0 %v3311
  %3379 = vmatpush1.msra.mxu0 %v3310
  %3380 = vmatprep.subr.mxu0 %v3315
  %3381 = vmatpush1.msra.mxu0 %v3314
  %3382 = vmatprep.mubr.f32.mxu0 %v2087
  %3383 = vmatmul.mubr.f32.gmra.mrb[0].mxu0 %v2086
  %v3384 = vpop.f32.mrb[0].mxu0
  %v3385 = vadd.f32 0.0, %v3384
  %v3386 = vpop.f32.mrb[0].mxu0
  %v3387 = vadd.f32 0.0, %v3386
  %3388 = vdwg.mxu0
  %3389 = vmatprep.subr.mxu0 %v3193
  %3390 = vmatpush1.msra.mxu0 %v3192
  %3391 = vmatprep.subr.mxu0 %v3197
  %3392 = vmatpush1.msra.mxu0 %v3196
  %3393 = vmatprep.subr.mxu0 %v3201
  %3394 = vmatpush1.msra.mxu0 %v3200
  %3395 = vmatprep.subr.mxu0 %v3205
  %3396 = vmatpush1.msra.mxu0 %v3204
  %3397 = vmatprep.subr.mxu0 %v3209
  %3398 = vmatpush1.msra.mxu0 %v3208
  %3399 = vmatprep.subr.mxu0 %v3213
  %3400 = vmatpush1.msra.mxu0 %v3212
  %3401 = vmatprep.subr.mxu0 %v3217
  %3402 = vmatpush1.msra.mxu0 %v3216
  %3403 = vmatprep.subr.mxu0 %v3221
  %3404 = vmatpush1.msra.mxu0 %v3220
  %3405 = vmatprep.subr.mxu0 %v3225
  %3406 = vmatpush1.msra.mxu0 %v3224
  %3407 = vmatprep.subr.mxu0 %v3229
  %3408 = vmatpush1.msra.mxu0 %v3228
  %3409 = vmatprep.subr.mxu0 %v3233
  %3410 = vmatpush1.msra.mxu0 %v3232
  %3411 = vmatprep.subr.mxu0 %v3237
  %3412 = vmatpush1.msra.mxu0 %v3236
  %3413 = vmatprep.subr.mxu0 %v3241
  %3414 = vmatpush1.msra.mxu0 %v3240
  %3415 = vmatprep.subr.mxu0 %v3245
  %3416 = vmatpush1.msra.mxu0 %v3244
  %3417 = vmatprep.subr.mxu0 %v3249
  %3418 = vmatpush1.msra.mxu0 %v3248
  %3419 = vmatprep.subr.mxu0 %v3253
  %3420 = vmatpush1.msra.mxu0 %v3252
  %3421 = vmatprep.subr.mxu0 %v3257
  %3422 = vmatpush1.msra.mxu0 %v3256
  %3423 = vmatprep.subr.mxu0 %v3261
  %3424 = vmatpush1.msra.mxu0 %v3260
  %3425 = vmatprep.subr.mxu0 %v3265
  %3426 = vmatpush1.msra.mxu0 %v3264
  %3427 = vmatprep.subr.mxu0 %v3269
  %3428 = vmatpush1.msra.mxu0 %v3268
  %3429 = vmatprep.subr.mxu0 %v3273
  %3430 = vmatpush1.msra.mxu0 %v3272
  %3431 = vmatprep.subr.mxu0 %v3277
  %3432 = vmatpush1.msra.mxu0 %v3276
  %3433 = vmatprep.subr.mxu0 %v3281
  %3434 = vmatpush1.msra.mxu0 %v3280
  %3435 = vmatprep.subr.mxu0 %v3285
  %3436 = vmatpush1.msra.mxu0 %v3284
  %3437 = vmatprep.subr.mxu0 %v3289
  %3438 = vmatpush1.msra.mxu0 %v3288
  %3439 = vmatprep.subr.mxu0 %v3293
  %3440 = vmatpush1.msra.mxu0 %v3292
  %3441 = vmatprep.subr.mxu0 %v3297
  %3442 = vmatpush1.msra.mxu0 %v3296
  %3443 = vmatprep.subr.mxu0 %v3301
  %3444 = vmatpush1.msra.mxu0 %v3300
  %3445 = vmatprep.subr.mxu0 %v3305
  %3446 = vmatpush1.msra.mxu0 %v3304
  %3447 = vmatprep.subr.mxu0 %v3309
  %3448 = vmatpush1.msra.mxu0 %v3308
  %3449 = vmatprep.subr.mxu0 %v3313
  %3450 = vmatpush1.msra.mxu0 %v3312
  %3451 = vmatprep.subr.mxu0 %v3317
  %3452 = vmatpush1.msra.mxu0 %v3316
  %3453 = vmatprep.mubr.f32.mxu0 %v2087
  %3454 = vmatmul.mubr.f32.gmra.mrb[0].mxu0 %v2086
  %v3455 = vpop.f32.mrb[0].mxu0
  %v3456 = vadd.f32 0.0, %v3455
  %v3457 = vpop.f32.mrb[0].mxu0
  %v3458 = vadd.f32 0.0, %v3457
  %3459 = vdwg.mxu0
  %v3460 = vadd.f32 %v3185, %v3385
  %v3461 = vadd.f32 %v3186, %v3387
  %v3462 = vadd.f32 %v3187, %v3456
  %v3463 = vadd.f32 %v3188, %v3458
  %s3464 = scalar_lea.vmem %s5, 5120
  %v3465 = vld [vmem:[%s3464] sm:$0xff]
  %v3466 = vld [vmem:[%s3464 + $0x8] sm:$0xff]
  %v3467 = vld [vmem:[%s3464 + $0x10] sm:$0xff]
  %v3468 = vld [vmem:[%s3464 + $0x18] sm:$0xff]
  %v3469 = vld [vmem:[%s3464 + $0x20] sm:$0xff]
  %v3470 = vld [vmem:[%s3464 + $0x28] sm:$0xff]
  %v3471 = vld [vmem:[%s3464 + $0x30] sm:$0xff]
  %v3472 = vld [vmem:[%s3464 + $0x38] sm:$0xff]
  %v3473 = vld [vmem:[%s3464 + $0x40] sm:$0xff]
  %v3474 = vld [vmem:[%s3464 + $0x48] sm:$0xff]
  %v3475 = vld [vmem:[%s3464 + $0x50] sm:$0xff]
  %v3476 = vld [vmem:[%s3464 + $0x58] sm:$0xff]
  %v3477 = vld [vmem:[%s3464 + $0x60] sm:$0xff]
  %v3478 = vld [vmem:[%s3464 + $0x68] sm:$0xff]
  %v3479 = vld [vmem:[%s3464 + $0x70] sm:$0xff]
  %v3480 = vld [vmem:[%s3464 + $0x78] sm:$0xff]
  %v3481 = vld [vmem:[%s3464 + $0x80] sm:$0xff]
  %v3482 = vld [vmem:[%s3464 + $0x88] sm:$0xff]
  %v3483 = vld [vmem:[%s3464 + $0x90] sm:$0xff]
  %v3484 = vld [vmem:[%s3464 + $0x98] sm:$0xff]
  %v3485 = vld [vmem:[%s3464 + $0xa0] sm:$0xff]
  %v3486 = vld [vmem:[%s3464 + $0xa8] sm:$0xff]
  %v3487 = vld [vmem:[%s3464 + $0xb0] sm:$0xff]
  %v3488 = vld [vmem:[%s3464 + $0xb8] sm:$0xff]
  %v3489 = vld [vmem:[%s3464 + $0xc0] sm:$0xff]
  %v3490 = vld [vmem:[%s3464 + $0xc8] sm:$0xff]
  %v3491 = vld [vmem:[%s3464 + $0xd0] sm:$0xff]
  %v3492 = vld [vmem:[%s3464 + $0xd8] sm:$0xff]
  %v3493 = vld [vmem:[%s3464 + $0xe0] sm:$0xff]
  %v3494 = vld [vmem:[%s3464 + $0xe8] sm:$0xff]
  %v3495 = vld [vmem:[%s3464 + $0xf0] sm:$0xff]
  %v3496 = vld [vmem:[%s3464 + $0xf8] sm:$0xff]
  %v3497 = vld [vmem:[%s3464 + $0x100] sm:$0xff]
  %v3498 = vld [vmem:[%s3464 + $0x108] sm:$0xff]
  %v3499 = vld [vmem:[%s3464 + $0x110] sm:$0xff]
  %v3500 = vld [vmem:[%s3464 + $0x118] sm:$0xff]
  %v3501 = vld [vmem:[%s3464 + $0x120] sm:$0xff]
  %v3502 = vld [vmem:[%s3464 + $0x128] sm:$0xff]
  %v3503 = vld [vmem:[%s3464 + $0x130] sm:$0xff]
  %v3504 = vld [vmem:[%s3464 + $0x138] sm:$0xff]
  %v3505 = vld [vmem:[%s3464 + $0x140] sm:$0xff]
  %v3506 = vld [vmem:[%s3464 + $0x148] sm:$0xff]
  %v3507 = vld [vmem:[%s3464 + $0x150] sm:$0xff]
  %v3508 = vld [vmem:[%s3464 + $0x158] sm:$0xff]
  %v3509 = vld [vmem:[%s3464 + $0x160] sm:$0xff]
  %v3510 = vld [vmem:[%s3464 + $0x168] sm:$0xff]
  %v3511 = vld [vmem:[%s3464 + $0x170] sm:$0xff]
  %v3512 = vld [vmem:[%s3464 + $0x178] sm:$0xff]
  %v3513 = vld [vmem:[%s3464 + $0x180] sm:$0xff]
  %v3514 = vld [vmem:[%s3464 + $0x188] sm:$0xff]
  %v3515 = vld [vmem:[%s3464 + $0x190] sm:$0xff]
  %v3516 = vld [vmem:[%s3464 + $0x198] sm:$0xff]
  %v3517 = vld [vmem:[%s3464 + $0x1a0] sm:$0xff]
  %v3518 = vld [vmem:[%s3464 + $0x1a8] sm:$0xff]
  %v3519 = vld [vmem:[%s3464 + $0x1b0] sm:$0xff]
  %v3520 = vld [vmem:[%s3464 + $0x1b8] sm:$0xff]
  %v3521 = vld [vmem:[%s3464 + $0x1c0] sm:$0xff]
  %v3522 = vld [vmem:[%s3464 + $0x1c8] sm:$0xff]
  %v3523 = vld [vmem:[%s3464 + $0x1d0] sm:$0xff]
  %v3524 = vld [vmem:[%s3464 + $0x1d8] sm:$0xff]
  %v3525 = vld [vmem:[%s3464 + $0x1e0] sm:$0xff]
  %v3526 = vld [vmem:[%s3464 + $0x1e8] sm:$0xff]
  %v3527 = vld [vmem:[%s3464 + $0x1f0] sm:$0xff]
  %v3528 = vld [vmem:[%s3464 + $0x1f8] sm:$0xff]
  %v3529 = vld [vmem:[%s3464 + $0x200] sm:$0xff]
  %v3530 = vld [vmem:[%s3464 + $0x208] sm:$0xff]
  %v3531 = vld [vmem:[%s3464 + $0x210] sm:$0xff]
  %v3532 = vld [vmem:[%s3464 + $0x218] sm:$0xff]
  %v3533 = vld [vmem:[%s3464 + $0x220] sm:$0xff]
  %v3534 = vld [vmem:[%s3464 + $0x228] sm:$0xff]
  %v3535 = vld [vmem:[%s3464 + $0x230] sm:$0xff]
  %v3536 = vld [vmem:[%s3464 + $0x238] sm:$0xff]
  %v3537 = vld [vmem:[%s3464 + $0x240] sm:$0xff]
  %v3538 = vld [vmem:[%s3464 + $0x248] sm:$0xff]
  %v3539 = vld [vmem:[%s3464 + $0x250] sm:$0xff]
  %v3540 = vld [vmem:[%s3464 + $0x258] sm:$0xff]
  %v3541 = vld [vmem:[%s3464 + $0x260] sm:$0xff]
  %v3542 = vld [vmem:[%s3464 + $0x268] sm:$0xff]
  %v3543 = vld [vmem:[%s3464 + $0x270] sm:$0xff]
  %v3544 = vld [vmem:[%s3464 + $0x278] sm:$0xff]
  %v3545 = vld [vmem:[%s3464 + $0x280] sm:$0xff]
  %v3546 = vld [vmem:[%s3464 + $0x288] sm:$0xff]
  %v3547 = vld [vmem:[%s3464 + $0x290] sm:$0xff]
  %v3548 = vld [vmem:[%s3464 + $0x298] sm:$0xff]
  %v3549 = vld [vmem:[%s3464 + $0x2a0] sm:$0xff]
  %v3550 = vld [vmem:[%s3464 + $0x2a8] sm:$0xff]
  %v3551 = vld [vmem:[%s3464 + $0x2b0] sm:$0xff]
  %v3552 = vld [vmem:[%s3464 + $0x2b8] sm:$0xff]
  %v3553 = vld [vmem:[%s3464 + $0x2c0] sm:$0xff]
  %v3554 = vld [vmem:[%s3464 + $0x2c8] sm:$0xff]
  %v3555 = vld [vmem:[%s3464 + $0x2d0] sm:$0xff]
  %v3556 = vld [vmem:[%s3464 + $0x2d8] sm:$0xff]
  %v3557 = vld [vmem:[%s3464 + $0x2e0] sm:$0xff]
  %v3558 = vld [vmem:[%s3464 + $0x2e8] sm:$0xff]
  %v3559 = vld [vmem:[%s3464 + $0x2f0] sm:$0xff]
  %v3560 = vld [vmem:[%s3464 + $0x2f8] sm:$0xff]
  %v3561 = vld [vmem:[%s3464 + $0x300] sm:$0xff]
  %v3562 = vld [vmem:[%s3464 + $0x308] sm:$0xff]
  %v3563 = vld [vmem:[%s3464 + $0x310] sm:$0xff]
  %v3564 = vld [vmem:[%s3464 + $0x318] sm:$0xff]
  %v3565 = vld [vmem:[%s3464 + $0x320] sm:$0xff]
  %v3566 = vld [vmem:[%s3464 + $0x328] sm:$0xff]
  %v3567 = vld [vmem:[%s3464 + $0x330] sm:$0xff]
  %v3568 = vld [vmem:[%s3464 + $0x338] sm:$0xff]
  %v3569 = vld [vmem:[%s3464 + $0x340] sm:$0xff]
  %v3570 = vld [vmem:[%s3464 + $0x348] sm:$0xff]
  %v3571 = vld [vmem:[%s3464 + $0x350] sm:$0xff]
  %v3572 = vld [vmem:[%s3464 + $0x358] sm:$0xff]
  %v3573 = vld [vmem:[%s3464 + $0x360] sm:$0xff]
  %v3574 = vld [vmem:[%s3464 + $0x368] sm:$0xff]
  %v3575 = vld [vmem:[%s3464 + $0x370] sm:$0xff]
  %v3576 = vld [vmem:[%s3464 + $0x378] sm:$0xff]
  %v3577 = vld [vmem:[%s3464 + $0x380] sm:$0xff]
  %v3578 = vld [vmem:[%s3464 + $0x388] sm:$0xff]
  %v3579 = vld [vmem:[%s3464 + $0x390] sm:$0xff]
  %v3580 = vld [vmem:[%s3464 + $0x398] sm:$0xff]
  %v3581 = vld [vmem:[%s3464 + $0x3a0] sm:$0xff]
  %v3582 = vld [vmem:[%s3464 + $0x3a8] sm:$0xff]
  %v3583 = vld [vmem:[%s3464 + $0x3b0] sm:$0xff]
  %v3584 = vld [vmem:[%s3464 + $0x3b8] sm:$0xff]
  %v3585 = vld [vmem:[%s3464 + $0x3c0] sm:$0xff]
  %v3586 = vld [vmem:[%s3464 + $0x3c8] sm:$0xff]
  %v3587 = vld [vmem:[%s3464 + $0x3d0] sm:$0xff]
  %v3588 = vld [vmem:[%s3464 + $0x3d8] sm:$0xff]
  %v3589 = vld [vmem:[%s3464 + $0x3e0] sm:$0xff]
  %v3590 = vld [vmem:[%s3464 + $0x3e8] sm:$0xff]
  %v3591 = vld [vmem:[%s3464 + $0x3f0] sm:$0xff]
  %v3592 = vld [vmem:[%s3464 + $0x3f8] sm:$0xff]
  %3593 = vmatprep.subr.mxu0 %v3466
  %3594 = vmatpush1.msra.mxu0 %v3465
  %3595 = vmatprep.subr.mxu0 %v3470
  %3596 = vmatpush1.msra.mxu0 %v3469
  %3597 = vmatprep.subr.mxu0 %v3474
  %3598 = vmatpush1.msra.mxu0 %v3473
  %3599 = vmatprep.subr.mxu0 %v3478
  %3600 = vmatpush1.msra.mxu0 %v3477
  %3601 = vmatprep.subr.mxu0 %v3482
  %3602 = vmatpush1.msra.mxu0 %v3481
  %3603 = vmatprep.subr.mxu0 %v3486
  %3604 = vmatpush1.msra.mxu0 %v3485
  %3605 = vmatprep.subr.mxu0 %v3490
  %3606 = vmatpush1.msra.mxu0 %v3489
  %3607 = vmatprep.subr.mxu0 %v3494
  %3608 = vmatpush1.msra.mxu0 %v3493
  %3609 = vmatprep.subr.mxu0 %v3498
  %3610 = vmatpush1.msra.mxu0 %v3497
  %3611 = vmatprep.subr.mxu0 %v3502
  %3612 = vmatpush1.msra.mxu0 %v3501
  %3613 = vmatprep.subr.mxu0 %v3506
  %3614 = vmatpush1.msra.mxu0 %v3505
  %3615 = vmatprep.subr.mxu0 %v3510
  %3616 = vmatpush1.msra.mxu0 %v3509
  %3617 = vmatprep.subr.mxu0 %v3514
  %3618 = vmatpush1.msra.mxu0 %v3513
  %3619 = vmatprep.subr.mxu0 %v3518
  %3620 = vmatpush1.msra.mxu0 %v3517
  %3621 = vmatprep.subr.mxu0 %v3522
  %3622 = vmatpush1.msra.mxu0 %v3521
  %3623 = vmatprep.subr.mxu0 %v3526
  %3624 = vmatpush1.msra.mxu0 %v3525
  %3625 = vmatprep.subr.mxu0 %v3530
  %3626 = vmatpush1.msra.mxu0 %v3529
  %3627 = vmatprep.subr.mxu0 %v3534
  %3628 = vmatpush1.msra.mxu0 %v3533
  %3629 = vmatprep.subr.mxu0 %v3538
  %3630 = vmatpush1.msra.mxu0 %v3537
  %3631 = vmatprep.subr.mxu0 %v3542
  %3632 = vmatpush1.msra.mxu0 %v3541
  %3633 = vmatprep.subr.mxu0 %v3546
  %3634 = vmatpush1.msra.mxu0 %v3545
  %3635 = vmatprep.subr.mxu0 %v3550
  %3636 = vmatpush1.msra.mxu0 %v3549
  %3637 = vmatprep.subr.mxu0 %v3554
  %3638 = vmatpush1.msra.mxu0 %v3553
  %3639 = vmatprep.subr.mxu0 %v3558
  %3640 = vmatpush1.msra.mxu0 %v3557
  %3641 = vmatprep.subr.mxu0 %v3562
  %3642 = vmatpush1.msra.mxu0 %v3561
  %3643 = vmatprep.subr.mxu0 %v3566
  %3644 = vmatpush1.msra.mxu0 %v3565
  %3645 = vmatprep.subr.mxu0 %v3570
  %3646 = vmatpush1.msra.mxu0 %v3569
  %3647 = vmatprep.subr.mxu0 %v3574
  %3648 = vmatpush1.msra.mxu0 %v3573
  %3649 = vmatprep.subr.mxu0 %v3578
  %3650 = vmatpush1.msra.mxu0 %v3577
  %3651 = vmatprep.subr.mxu0 %v3582
  %3652 = vmatpush1.msra.mxu0 %v3581
  %3653 = vmatprep.subr.mxu0 %v3586
  %3654 = vmatpush1.msra.mxu0 %v3585
  %3655 = vmatprep.subr.mxu0 %v3590
  %3656 = vmatpush1.msra.mxu0 %v3589
  %3657 = vmatprep.mubr.f32.mxu0 %v2089
  %3658 = vmatmul.mubr.f32.gmra.mrb[0].mxu0 %v2088
  %v3659 = vpop.f32.mrb[0].mxu0
  %v3660 = vadd.f32 0.0, %v3659
  %v3661 = vpop.f32.mrb[0].mxu0
  %v3662 = vadd.f32 0.0, %v3661
  %3663 = vdwg.mxu0
  %3664 = vmatprep.subr.mxu0 %v3468
  %3665 = vmatpush1.msra.mxu0 %v3467
  %3666 = vmatprep.subr.mxu0 %v3472
  %3667 = vmatpush1.msra.mxu0 %v3471
  %3668 = vmatprep.subr.mxu0 %v3476
  %3669 = vmatpush1.msra.mxu0 %v3475
  %3670 = vmatprep.subr.mxu0 %v3480
  %3671 = vmatpush1.msra.mxu0 %v3479
  %3672 = vmatprep.subr.mxu0 %v3484
  %3673 = vmatpush1.msra.mxu0 %v3483
  %3674 = vmatprep.subr.mxu0 %v3488
  %3675 = vmatpush1.msra.mxu0 %v3487
  %3676 = vmatprep.subr.mxu0 %v3492
  %3677 = vmatpush1.msra.mxu0 %v3491
  %3678 = vmatprep.subr.mxu0 %v3496
  %3679 = vmatpush1.msra.mxu0 %v3495
  %3680 = vmatprep.subr.mxu0 %v3500
  %3681 = vmatpush1.msra.mxu0 %v3499
  %3682 = vmatprep.subr.mxu0 %v3504
  %3683 = vmatpush1.msra.mxu0 %v3503
  %3684 = vmatprep.subr.mxu0 %v3508
  %3685 = vmatpush1.msra.mxu0 %v3507
  %3686 = vmatprep.subr.mxu0 %v3512
  %3687 = vmatpush1.msra.mxu0 %v3511
  %3688 = vmatprep.subr.mxu0 %v3516
  %3689 = vmatpush1.msra.mxu0 %v3515
  %3690 = vmatprep.subr.mxu0 %v3520
  %3691 = vmatpush1.msra.mxu0 %v3519
  %3692 = vmatprep.subr.mxu0 %v3524
  %3693 = vmatpush1.msra.mxu0 %v3523
  %3694 = vmatprep.subr.mxu0 %v3528
  %3695 = vmatpush1.msra.mxu0 %v3527
  %3696 = vmatprep.subr.mxu0 %v3532
  %3697 = vmatpush1.msra.mxu0 %v3531
  %3698 = vmatprep.subr.mxu0 %v3536
  %3699 = vmatpush1.msra.mxu0 %v3535
  %3700 = vmatprep.subr.mxu0 %v3540
  %3701 = vmatpush1.msra.mxu0 %v3539
  %3702 = vmatprep.subr.mxu0 %v3544
  %3703 = vmatpush1.msra.mxu0 %v3543
  %3704 = vmatprep.subr.mxu0 %v3548
  %3705 = vmatpush1.msra.mxu0 %v3547
  %3706 = vmatprep.subr.mxu0 %v3552
  %3707 = vmatpush1.msra.mxu0 %v3551
  %3708 = vmatprep.subr.mxu0 %v3556
  %3709 = vmatpush1.msra.mxu0 %v3555
  %3710 = vmatprep.subr.mxu0 %v3560
  %3711 = vmatpush1.msra.mxu0 %v3559
  %3712 = vmatprep.subr.mxu0 %v3564
  %3713 = vmatpush1.msra.mxu0 %v3563
  %3714 = vmatprep.subr.mxu0 %v3568
  %3715 = vmatpush1.msra.mxu0 %v3567
  %3716 = vmatprep.subr.mxu0 %v3572
  %3717 = vmatpush1.msra.mxu0 %v3571
  %3718 = vmatprep.subr.mxu0 %v3576
  %3719 = vmatpush1.msra.mxu0 %v3575
  %3720 = vmatprep.subr.mxu0 %v3580
  %3721 = vmatpush1.msra.mxu0 %v3579
  %3722 = vmatprep.subr.mxu0 %v3584
  %3723 = vmatpush1.msra.mxu0 %v3583
  %3724 = vmatprep.subr.mxu0 %v3588
  %3725 = vmatpush1.msra.mxu0 %v3587
  %3726 = vmatprep.subr.mxu0 %v3592
  %3727 = vmatpush1.msra.mxu0 %v3591
  %3728 = vmatprep.mubr.f32.mxu0 %v2089
  %3729 = vmatmul.mubr.f32.gmra.mrb[0].mxu0 %v2088
  %v3730 = vpop.f32.mrb[0].mxu0
  %v3731 = vadd.f32 0.0, %v3730
  %v3732 = vpop.f32.mrb[0].mxu0
  %v3733 = vadd.f32 0.0, %v3732
  %3734 = vdwg.mxu0
  %v3735 = vadd.f32 %v3460, %v3660
  %v3736 = vadd.f32 %v3461, %v3662
  %v3737 = vadd.f32 %v3462, %v3731
  %v3738 = vadd.f32 %v3463, %v3733
  %s3739 = scalar_lea.vmem %s5, 6144
  %v3740 = vld [vmem:[%s3739] sm:$0xff]
  %v3741 = vld [vmem:[%s3739 + $0x8] sm:$0xff]
  %v3742 = vld [vmem:[%s3739 + $0x10] sm:$0xff]
  %v3743 = vld [vmem:[%s3739 + $0x18] sm:$0xff]
  %v3744 = vld [vmem:[%s3739 + $0x20] sm:$0xff]
  %v3745 = vld [vmem:[%s3739 + $0x28] sm:$0xff]
  %v3746 = vld [vmem:[%s3739 + $0x30] sm:$0xff]
  %v3747 = vld [vmem:[%s3739 + $0x38] sm:$0xff]
  %v3748 = vld [vmem:[%s3739 + $0x40] sm:$0xff]
  %v3749 = vld [vmem:[%s3739 + $0x48] sm:$0xff]
  %v3750 = vld [vmem:[%s3739 + $0x50] sm:$0xff]
  %v3751 = vld [vmem:[%s3739 + $0x58] sm:$0xff]
  %v3752 = vld [vmem:[%s3739 + $0x60] sm:$0xff]
  %v3753 = vld [vmem:[%s3739 + $0x68] sm:$0xff]
  %v3754 = vld [vmem:[%s3739 + $0x70] sm:$0xff]
  %v3755 = vld [vmem:[%s3739 + $0x78] sm:$0xff]
  %v3756 = vld [vmem:[%s3739 + $0x80] sm:$0xff]
  %v3757 = vld [vmem:[%s3739 + $0x88] sm:$0xff]
  %v3758 = vld [vmem:[%s3739 + $0x90] sm:$0xff]
  %v3759 = vld [vmem:[%s3739 + $0x98] sm:$0xff]
  %v3760 = vld [vmem:[%s3739 + $0xa0] sm:$0xff]
  %v3761 = vld [vmem:[%s3739 + $0xa8] sm:$0xff]
  %v3762 = vld [vmem:[%s3739 + $0xb0] sm:$0xff]
  %v3763 = vld [vmem:[%s3739 + $0xb8] sm:$0xff]
  %v3764 = vld [vmem:[%s3739 + $0xc0] sm:$0xff]
  %v3765 = vld [vmem:[%s3739 + $0xc8] sm:$0xff]
  %v3766 = vld [vmem:[%s3739 + $0xd0] sm:$0xff]
  %v3767 = vld [vmem:[%s3739 + $0xd8] sm:$0xff]
  %v3768 = vld [vmem:[%s3739 + $0xe0] sm:$0xff]
  %v3769 = vld [vmem:[%s3739 + $0xe8] sm:$0xff]
  %v3770 = vld [vmem:[%s3739 + $0xf0] sm:$0xff]
  %v3771 = vld [vmem:[%s3739 + $0xf8] sm:$0xff]
  %v3772 = vld [vmem:[%s3739 + $0x100] sm:$0xff]
  %v3773 = vld [vmem:[%s3739 + $0x108] sm:$0xff]
  %v3774 = vld [vmem:[%s3739 + $0x110] sm:$0xff]
  %v3775 = vld [vmem:[%s3739 + $0x118] sm:$0xff]
  %v3776 = vld [vmem:[%s3739 + $0x120] sm:$0xff]
  %v3777 = vld [vmem:[%s3739 + $0x128] sm:$0xff]
  %v3778 = vld [vmem:[%s3739 + $0x130] sm:$0xff]
  %v3779 = vld [vmem:[%s3739 + $0x138] sm:$0xff]
  %v3780 = vld [vmem:[%s3739 + $0x140] sm:$0xff]
  %v3781 = vld [vmem:[%s3739 + $0x148] sm:$0xff]
  %v3782 = vld [vmem:[%s3739 + $0x150] sm:$0xff]
  %v3783 = vld [vmem:[%s3739 + $0x158] sm:$0xff]
  %v3784 = vld [vmem:[%s3739 + $0x160] sm:$0xff]
  %v3785 = vld [vmem:[%s3739 + $0x168] sm:$0xff]
  %v3786 = vld [vmem:[%s3739 + $0x170] sm:$0xff]
  %v3787 = vld [vmem:[%s3739 + $0x178] sm:$0xff]
  %v3788 = vld [vmem:[%s3739 + $0x180] sm:$0xff]
  %v3789 = vld [vmem:[%s3739 + $0x188] sm:$0xff]
  %v3790 = vld [vmem:[%s3739 + $0x190] sm:$0xff]
  %v3791 = vld [vmem:[%s3739 + $0x198] sm:$0xff]
  %v3792 = vld [vmem:[%s3739 + $0x1a0] sm:$0xff]
  %v3793 = vld [vmem:[%s3739 + $0x1a8] sm:$0xff]
  %v3794 = vld [vmem:[%s3739 + $0x1b0] sm:$0xff]
  %v3795 = vld [vmem:[%s3739 + $0x1b8] sm:$0xff]
  %v3796 = vld [vmem:[%s3739 + $0x1c0] sm:$0xff]
  %v3797 = vld [vmem:[%s3739 + $0x1c8] sm:$0xff]
  %v3798 = vld [vmem:[%s3739 + $0x1d0] sm:$0xff]
  %v3799 = vld [vmem:[%s3739 + $0x1d8] sm:$0xff]
  %v3800 = vld [vmem:[%s3739 + $0x1e0] sm:$0xff]
  %v3801 = vld [vmem:[%s3739 + $0x1e8] sm:$0xff]
  %v3802 = vld [vmem:[%s3739 + $0x1f0] sm:$0xff]
  %v3803 = vld [vmem:[%s3739 + $0x1f8] sm:$0xff]
  %v3804 = vld [vmem:[%s3739 + $0x200] sm:$0xff]
  %v3805 = vld [vmem:[%s3739 + $0x208] sm:$0xff]
  %v3806 = vld [vmem:[%s3739 + $0x210] sm:$0xff]
  %v3807 = vld [vmem:[%s3739 + $0x218] sm:$0xff]
  %v3808 = vld [vmem:[%s3739 + $0x220] sm:$0xff]
  %v3809 = vld [vmem:[%s3739 + $0x228] sm:$0xff]
  %v3810 = vld [vmem:[%s3739 + $0x230] sm:$0xff]
  %v3811 = vld [vmem:[%s3739 + $0x238] sm:$0xff]
  %v3812 = vld [vmem:[%s3739 + $0x240] sm:$0xff]
  %v3813 = vld [vmem:[%s3739 + $0x248] sm:$0xff]
  %v3814 = vld [vmem:[%s3739 + $0x250] sm:$0xff]
  %v3815 = vld [vmem:[%s3739 + $0x258] sm:$0xff]
  %v3816 = vld [vmem:[%s3739 + $0x260] sm:$0xff]
  %v3817 = vld [vmem:[%s3739 + $0x268] sm:$0xff]
  %v3818 = vld [vmem:[%s3739 + $0x270] sm:$0xff]
  %v3819 = vld [vmem:[%s3739 + $0x278] sm:$0xff]
  %v3820 = vld [vmem:[%s3739 + $0x280] sm:$0xff]
  %v3821 = vld [vmem:[%s3739 + $0x288] sm:$0xff]
  %v3822 = vld [vmem:[%s3739 + $0x290] sm:$0xff]
  %v3823 = vld [vmem:[%s3739 + $0x298] sm:$0xff]
  %v3824 = vld [vmem:[%s3739 + $0x2a0] sm:$0xff]
  %v3825 = vld [vmem:[%s3739 + $0x2a8] sm:$0xff]
  %v3826 = vld [vmem:[%s3739 + $0x2b0] sm:$0xff]
  %v3827 = vld [vmem:[%s3739 + $0x2b8] sm:$0xff]
  %v3828 = vld [vmem:[%s3739 + $0x2c0] sm:$0xff]
  %v3829 = vld [vmem:[%s3739 + $0x2c8] sm:$0xff]
  %v3830 = vld [vmem:[%s3739 + $0x2d0] sm:$0xff]
  %v3831 = vld [vmem:[%s3739 + $0x2d8] sm:$0xff]
  %v3832 = vld [vmem:[%s3739 + $0x2e0] sm:$0xff]
  %v3833 = vld [vmem:[%s3739 + $0x2e8] sm:$0xff]
  %v3834 = vld [vmem:[%s3739 + $0x2f0] sm:$0xff]
  %v3835 = vld [vmem:[%s3739 + $0x2f8] sm:$0xff]
  %v3836 = vld [vmem:[%s3739 + $0x300] sm:$0xff]
  %v3837 = vld [vmem:[%s3739 + $0x308] sm:$0xff]
  %v3838 = vld [vmem:[%s3739 + $0x310] sm:$0xff]
  %v3839 = vld [vmem:[%s3739 + $0x318] sm:$0xff]
  %v3840 = vld [vmem:[%s3739 + $0x320] sm:$0xff]
  %v3841 = vld [vmem:[%s3739 + $0x328] sm:$0xff]
  %v3842 = vld [vmem:[%s3739 + $0x330] sm:$0xff]
  %v3843 = vld [vmem:[%s3739 + $0x338] sm:$0xff]
  %v3844 = vld [vmem:[%s3739 + $0x340] sm:$0xff]
  %v3845 = vld [vmem:[%s3739 + $0x348] sm:$0xff]
  %v3846 = vld [vmem:[%s3739 + $0x350] sm:$0xff]
  %v3847 = vld [vmem:[%s3739 + $0x358] sm:$0xff]
  %v3848 = vld [vmem:[%s3739 + $0x360] sm:$0xff]
  %v3849 = vld [vmem:[%s3739 + $0x368] sm:$0xff]
  %v3850 = vld [vmem:[%s3739 + $0x370] sm:$0xff]
  %v3851 = vld [vmem:[%s3739 + $0x378] sm:$0xff]
  %v3852 = vld [vmem:[%s3739 + $0x380] sm:$0xff]
  %v3853 = vld [vmem:[%s3739 + $0x388] sm:$0xff]
  %v3854 = vld [vmem:[%s3739 + $0x390] sm:$0xff]
  %v3855 = vld [vmem:[%s3739 + $0x398] sm:$0xff]
  %v3856 = vld [vmem:[%s3739 + $0x3a0] sm:$0xff]
  %v3857 = vld [vmem:[%s3739 + $0x3a8] sm:$0xff]
  %v3858 = vld [vmem:[%s3739 + $0x3b0] sm:$0xff]
  %v3859 = vld [vmem:[%s3739 + $0x3b8] sm:$0xff]
  %v3860 = vld [vmem:[%s3739 + $0x3c0] sm:$0xff]
  %v3861 = vld [vmem:[%s3739 + $0x3c8] sm:$0xff]
  %v3862 = vld [vmem:[%s3739 + $0x3d0] sm:$0xff]
  %v3863 = vld [vmem:[%s3739 + $0x3d8] sm:$0xff]
  %v3864 = vld [vmem:[%s3739 + $0x3e0] sm:$0xff]
  %v3865 = vld [vmem:[%s3739 + $0x3e8] sm:$0xff]
  %v3866 = vld [vmem:[%s3739 + $0x3f0] sm:$0xff]
  %v3867 = vld [vmem:[%s3739 + $0x3f8] sm:$0xff]
  %3868 = vmatprep.subr.mxu0 %v3741
  %3869 = vmatpush1.msra.mxu0 %v3740
  %3870 = vmatprep.subr.mxu0 %v3745
  %3871 = vmatpush1.msra.mxu0 %v3744
  %3872 = vmatprep.subr.mxu0 %v3749
  %3873 = vmatpush1.msra.mxu0 %v3748
  %3874 = vmatprep.subr.mxu0 %v3753
  %3875 = vmatpush1.msra.mxu0 %v3752
  %3876 = vmatprep.subr.mxu0 %v3757
  %3877 = vmatpush1.msra.mxu0 %v3756
  %3878 = vmatprep.subr.mxu0 %v3761
  %3879 = vmatpush1.msra.mxu0 %v3760
  %3880 = vmatprep.subr.mxu0 %v3765
  %3881 = vmatpush1.msra.mxu0 %v3764
  %3882 = vmatprep.subr.mxu0 %v3769
  %3883 = vmatpush1.msra.mxu0 %v3768
  %3884 = vmatprep.subr.mxu0 %v3773
  %3885 = vmatpush1.msra.mxu0 %v3772
  %3886 = vmatprep.subr.mxu0 %v3777
  %3887 = vmatpush1.msra.mxu0 %v3776
  %3888 = vmatprep.subr.mxu0 %v3781
  %3889 = vmatpush1.msra.mxu0 %v3780
  %3890 = vmatprep.subr.mxu0 %v3785
  %3891 = vmatpush1.msra.mxu0 %v3784
  %3892 = vmatprep.subr.mxu0 %v3789
  %3893 = vmatpush1.msra.mxu0 %v3788
  %3894 = vmatprep.subr.mxu0 %v3793
  %3895 = vmatpush1.msra.mxu0 %v3792
  %3896 = vmatprep.subr.mxu0 %v3797
  %3897 = vmatpush1.msra.mxu0 %v3796
  %3898 = vmatprep.subr.mxu0 %v3801
  %3899 = vmatpush1.msra.mxu0 %v3800
  %3900 = vmatprep.subr.mxu0 %v3805
  %3901 = vmatpush1.msra.mxu0 %v3804
  %3902 = vmatprep.subr.mxu0 %v3809
  %3903 = vmatpush1.msra.mxu0 %v3808
  %3904 = vmatprep.subr.mxu0 %v3813
  %3905 = vmatpush1.msra.mxu0 %v3812
  %3906 = vmatprep.subr.mxu0 %v3817
  %3907 = vmatpush1.msra.mxu0 %v3816
  %3908 = vmatprep.subr.mxu0 %v3821
  %3909 = vmatpush1.msra.mxu0 %v3820
  %3910 = vmatprep.subr.mxu0 %v3825
  %3911 = vmatpush1.msra.mxu0 %v3824
  %3912 = vmatprep.subr.mxu0 %v3829
  %3913 = vmatpush1.msra.mxu0 %v3828
  %3914 = vmatprep.subr.mxu0 %v3833
  %3915 = vmatpush1.msra.mxu0 %v3832
  %3916 = vmatprep.subr.mxu0 %v3837
  %3917 = vmatpush1.msra.mxu0 %v3836
  %3918 = vmatprep.subr.mxu0 %v3841
  %3919 = vmatpush1.msra.mxu0 %v3840
  %3920 = vmatprep.subr.mxu0 %v3845
  %3921 = vmatpush1.msra.mxu0 %v3844
  %3922 = vmatprep.subr.mxu0 %v3849
  %3923 = vmatpush1.msra.mxu0 %v3848
  %3924 = vmatprep.subr.mxu0 %v3853
  %3925 = vmatpush1.msra.mxu0 %v3852
  %3926 = vmatprep.subr.mxu0 %v3857
  %3927 = vmatpush1.msra.mxu0 %v3856
  %3928 = vmatprep.subr.mxu0 %v3861
  %3929 = vmatpush1.msra.mxu0 %v3860
  %3930 = vmatprep.subr.mxu0 %v3865
  %3931 = vmatpush1.msra.mxu0 %v3864
  %3932 = vmatprep.mubr.f32.mxu0 %v2091
  %3933 = vmatmul.mubr.f32.gmra.mrb[0].mxu0 %v2090
  %v3934 = vpop.f32.mrb[0].mxu0
  %v3935 = vadd.f32 0.0, %v3934
  %v3936 = vpop.f32.mrb[0].mxu0
  %v3937 = vadd.f32 0.0, %v3936
  %3938 = vdwg.mxu0
  %3939 = vmatprep.subr.mxu0 %v3743
  %3940 = vmatpush1.msra.mxu0 %v3742
  %3941 = vmatprep.subr.mxu0 %v3747
  %3942 = vmatpush1.msra.mxu0 %v3746
  %3943 = vmatprep.subr.mxu0 %v3751
  %3944 = vmatpush1.msra.mxu0 %v3750
  %3945 = vmatprep.subr.mxu0 %v3755
  %3946 = vmatpush1.msra.mxu0 %v3754
  %3947 = vmatprep.subr.mxu0 %v3759
  %3948 = vmatpush1.msra.mxu0 %v3758
  %3949 = vmatprep.subr.mxu0 %v3763
  %3950 = vmatpush1.msra.mxu0 %v3762
  %3951 = vmatprep.subr.mxu0 %v3767
  %3952 = vmatpush1.msra.mxu0 %v3766
  %3953 = vmatprep.subr.mxu0 %v3771
  %3954 = vmatpush1.msra.mxu0 %v3770
  %3955 = vmatprep.subr.mxu0 %v3775
  %3956 = vmatpush1.msra.mxu0 %v3774
  %3957 = vmatprep.subr.mxu0 %v3779
  %3958 = vmatpush1.msra.mxu0 %v3778
  %3959 = vmatprep.subr.mxu0 %v3783
  %3960 = vmatpush1.msra.mxu0 %v3782
  %3961 = vmatprep.subr.mxu0 %v3787
  %3962 = vmatpush1.msra.mxu0 %v3786
  %3963 = vmatprep.subr.mxu0 %v3791
  %3964 = vmatpush1.msra.mxu0 %v3790
  %3965 = vmatprep.subr.mxu0 %v3795
  %3966 = vmatpush1.msra.mxu0 %v3794
  %3967 = vmatprep.subr.mxu0 %v3799
  %3968 = vmatpush1.msra.mxu0 %v3798
  %3969 = vmatprep.subr.mxu0 %v3803
  %3970 = vmatpush1.msra.mxu0 %v3802
  %3971 = vmatprep.subr.mxu0 %v3807
  %3972 = vmatpush1.msra.mxu0 %v3806
  %3973 = vmatprep.subr.mxu0 %v3811
  %3974 = vmatpush1.msra.mxu0 %v3810
  %3975 = vmatprep.subr.mxu0 %v3815
  %3976 = vmatpush1.msra.mxu0 %v3814
  %3977 = vmatprep.subr.mxu0 %v3819
  %3978 = vmatpush1.msra.mxu0 %v3818
  %3979 = vmatprep.subr.mxu0 %v3823
  %3980 = vmatpush1.msra.mxu0 %v3822
  %3981 = vmatprep.subr.mxu0 %v3827
  %3982 = vmatpush1.msra.mxu0 %v3826
  %3983 = vmatprep.subr.mxu0 %v3831
  %3984 = vmatpush1.msra.mxu0 %v3830
  %3985 = vmatprep.subr.mxu0 %v3835
  %3986 = vmatpush1.msra.mxu0 %v3834
  %3987 = vmatprep.subr.mxu0 %v3839
  %3988 = vmatpush1.msra.mxu0 %v3838
  %3989 = vmatprep.subr.mxu0 %v3843
  %3990 = vmatpush1.msra.mxu0 %v3842
  %3991 = vmatprep.subr.mxu0 %v3847
  %3992 = vmatpush1.msra.mxu0 %v3846
  %3993 = vmatprep.subr.mxu0 %v3851
  %3994 = vmatpush1.msra.mxu0 %v3850
  %3995 = vmatprep.subr.mxu0 %v3855
  %3996 = vmatpush1.msra.mxu0 %v3854
  %3997 = vmatprep.subr.mxu0 %v3859
  %3998 = vmatpush1.msra.mxu0 %v3858
  %3999 = vmatprep.subr.mxu0 %v3863
  %4000 = vmatpush1.msra.mxu0 %v3862
  %4001 = vmatprep.subr.mxu0 %v3867
  %4002 = vmatpush1.msra.mxu0 %v3866
  %4003 = vmatprep.mubr.f32.mxu0 %v2091
  %4004 = vmatmul.mubr.f32.gmra.mrb[0].mxu0 %v2090
  %v4005 = vpop.f32.mrb[0].mxu0
  %v4006 = vadd.f32 0.0, %v4005
  %v4007 = vpop.f32.mrb[0].mxu0
  %v4008 = vadd.f32 0.0, %v4007
  %4009 = vdwg.mxu0
  %v4010 = vadd.f32 %v3735, %v3935
  %v4011 = vadd.f32 %v3736, %v3937
  %v4012 = vadd.f32 %v3737, %v4006
  %v4013 = vadd.f32 %v3738, %v4008
  %s4014 = scalar_lea.vmem %s5, 7168
  %v4015 = vld [vmem:[%s4014] sm:$0xff]
  %v4016 = vld [vmem:[%s4014 + $0x8] sm:$0xff]
  %v4017 = vld [vmem:[%s4014 + $0x10] sm:$0xff]
  %v4018 = vld [vmem:[%s4014 + $0x18] sm:$0xff]
  %v4019 = vld [vmem:[%s4014 + $0x20] sm:$0xff]
  %v4020 = vld [vmem:[%s4014 + $0x28] sm:$0xff]
  %v4021 = vld [vmem:[%s4014 + $0x30] sm:$0xff]
  %v4022 = vld [vmem:[%s4014 + $0x38] sm:$0xff]
  %v4023 = vld [vmem:[%s4014 + $0x40] sm:$0xff]
  %v4024 = vld [vmem:[%s4014 + $0x48] sm:$0xff]
  %v4025 = vld [vmem:[%s4014 + $0x50] sm:$0xff]
  %v4026 = vld [vmem:[%s4014 + $0x58] sm:$0xff]
  %v4027 = vld [vmem:[%s4014 + $0x60] sm:$0xff]
  %v4028 = vld [vmem:[%s4014 + $0x68] sm:$0xff]
  %v4029 = vld [vmem:[%s4014 + $0x70] sm:$0xff]
  %v4030 = vld [vmem:[%s4014 + $0x78] sm:$0xff]
  %v4031 = vld [vmem:[%s4014 + $0x80] sm:$0xff]
  %v4032 = vld [vmem:[%s4014 + $0x88] sm:$0xff]
  %v4033 = vld [vmem:[%s4014 + $0x90] sm:$0xff]
  %v4034 = vld [vmem:[%s4014 + $0x98] sm:$0xff]
  %v4035 = vld [vmem:[%s4014 + $0xa0] sm:$0xff]
  %v4036 = vld [vmem:[%s4014 + $0xa8] sm:$0xff]
  %v4037 = vld [vmem:[%s4014 + $0xb0] sm:$0xff]
  %v4038 = vld [vmem:[%s4014 + $0xb8] sm:$0xff]
  %v4039 = vld [vmem:[%s4014 + $0xc0] sm:$0xff]
  %v4040 = vld [vmem:[%s4014 + $0xc8] sm:$0xff]
  %v4041 = vld [vmem:[%s4014 + $0xd0] sm:$0xff]
  %v4042 = vld [vmem:[%s4014 + $0xd8] sm:$0xff]
  %v4043 = vld [vmem:[%s4014 + $0xe0] sm:$0xff]
  %v4044 = vld [vmem:[%s4014 + $0xe8] sm:$0xff]
  %v4045 = vld [vmem:[%s4014 + $0xf0] sm:$0xff]
  %v4046 = vld [vmem:[%s4014 + $0xf8] sm:$0xff]
  %v4047 = vld [vmem:[%s4014 + $0x100] sm:$0xff]
  %v4048 = vld [vmem:[%s4014 + $0x108] sm:$0xff]
  %v4049 = vld [vmem:[%s4014 + $0x110] sm:$0xff]
  %v4050 = vld [vmem:[%s4014 + $0x118] sm:$0xff]
  %v4051 = vld [vmem:[%s4014 + $0x120] sm:$0xff]
  %v4052 = vld [vmem:[%s4014 + $0x128] sm:$0xff]
  %v4053 = vld [vmem:[%s4014 + $0x130] sm:$0xff]
  %v4054 = vld [vmem:[%s4014 + $0x138] sm:$0xff]
  %v4055 = vld [vmem:[%s4014 + $0x140] sm:$0xff]
  %v4056 = vld [vmem:[%s4014 + $0x148] sm:$0xff]
  %v4057 = vld [vmem:[%s4014 + $0x150] sm:$0xff]
  %v4058 = vld [vmem:[%s4014 + $0x158] sm:$0xff]
  %v4059 = vld [vmem:[%s4014 + $0x160] sm:$0xff]
  %v4060 = vld [vmem:[%s4014 + $0x168] sm:$0xff]
  %v4061 = vld [vmem:[%s4014 + $0x170] sm:$0xff]
  %v4062 = vld [vmem:[%s4014 + $0x178] sm:$0xff]
  %v4063 = vld [vmem:[%s4014 + $0x180] sm:$0xff]
  %v4064 = vld [vmem:[%s4014 + $0x188] sm:$0xff]
  %v4065 = vld [vmem:[%s4014 + $0x190] sm:$0xff]
  %v4066 = vld [vmem:[%s4014 + $0x198] sm:$0xff]
  %v4067 = vld [vmem:[%s4014 + $0x1a0] sm:$0xff]
  %v4068 = vld [vmem:[%s4014 + $0x1a8] sm:$0xff]
  %v4069 = vld [vmem:[%s4014 + $0x1b0] sm:$0xff]
  %v4070 = vld [vmem:[%s4014 + $0x1b8] sm:$0xff]
  %v4071 = vld [vmem:[%s4014 + $0x1c0] sm:$0xff]
  %v4072 = vld [vmem:[%s4014 + $0x1c8] sm:$0xff]
  %v4073 = vld [vmem:[%s4014 + $0x1d0] sm:$0xff]
  %v4074 = vld [vmem:[%s4014 + $0x1d8] sm:$0xff]
  %v4075 = vld [vmem:[%s4014 + $0x1e0] sm:$0xff]
  %v4076 = vld [vmem:[%s4014 + $0x1e8] sm:$0xff]
  %v4077 = vld [vmem:[%s4014 + $0x1f0] sm:$0xff]
  %v4078 = vld [vmem:[%s4014 + $0x1f8] sm:$0xff]
  %v4079 = vld [vmem:[%s4014 + $0x200] sm:$0xff]
  %v4080 = vld [vmem:[%s4014 + $0x208] sm:$0xff]
  %v4081 = vld [vmem:[%s4014 + $0x210] sm:$0xff]
  %v4082 = vld [vmem:[%s4014 + $0x218] sm:$0xff]
  %v4083 = vld [vmem:[%s4014 + $0x220] sm:$0xff]
  %v4084 = vld [vmem:[%s4014 + $0x228] sm:$0xff]
  %v4085 = vld [vmem:[%s4014 + $0x230] sm:$0xff]
  %v4086 = vld [vmem:[%s4014 + $0x238] sm:$0xff]
  %v4087 = vld [vmem:[%s4014 + $0x240] sm:$0xff]
  %v4088 = vld [vmem:[%s4014 + $0x248] sm:$0xff]
  %v4089 = vld [vmem:[%s4014 + $0x250] sm:$0xff]
  %v4090 = vld [vmem:[%s4014 + $0x258] sm:$0xff]
  %v4091 = vld [vmem:[%s4014 + $0x260] sm:$0xff]
  %v4092 = vld [vmem:[%s4014 + $0x268] sm:$0xff]
  %v4093 = vld [vmem:[%s4014 + $0x270] sm:$0xff]
  %v4094 = vld [vmem:[%s4014 + $0x278] sm:$0xff]
  %v4095 = vld [vmem:[%s4014 + $0x280] sm:$0xff]
  %v4096 = vld [vmem:[%s4014 + $0x288] sm:$0xff]
  %v4097 = vld [vmem:[%s4014 + $0x290] sm:$0xff]
  %v4098 = vld [vmem:[%s4014 + $0x298] sm:$0xff]
  %v4099 = vld [vmem:[%s4014 + $0x2a0] sm:$0xff]
  %v4100 = vld [vmem:[%s4014 + $0x2a8] sm:$0xff]
  %v4101 = vld [vmem:[%s4014 + $0x2b0] sm:$0xff]
  %v4102 = vld [vmem:[%s4014 + $0x2b8] sm:$0xff]
  %v4103 = vld [vmem:[%s4014 + $0x2c0] sm:$0xff]
  %v4104 = vld [vmem:[%s4014 + $0x2c8] sm:$0xff]
  %v4105 = vld [vmem:[%s4014 + $0x2d0] sm:$0xff]
  %v4106 = vld [vmem:[%s4014 + $0x2d8] sm:$0xff]
  %v4107 = vld [vmem:[%s4014 + $0x2e0] sm:$0xff]
  %v4108 = vld [vmem:[%s4014 + $0x2e8] sm:$0xff]
  %v4109 = vld [vmem:[%s4014 + $0x2f0] sm:$0xff]
  %v4110 = vld [vmem:[%s4014 + $0x2f8] sm:$0xff]
  %v4111 = vld [vmem:[%s4014 + $0x300] sm:$0xff]
  %v4112 = vld [vmem:[%s4014 + $0x308] sm:$0xff]
  %v4113 = vld [vmem:[%s4014 + $0x310] sm:$0xff]
  %v4114 = vld [vmem:[%s4014 + $0x318] sm:$0xff]
  %v4115 = vld [vmem:[%s4014 + $0x320] sm:$0xff]
  %v4116 = vld [vmem:[%s4014 + $0x328] sm:$0xff]
  %v4117 = vld [vmem:[%s4014 + $0x330] sm:$0xff]
  %v4118 = vld [vmem:[%s4014 + $0x338] sm:$0xff]
  %v4119 = vld [vmem:[%s4014 + $0x340] sm:$0xff]
  %v4120 = vld [vmem:[%s4014 + $0x348] sm:$0xff]
  %v4121 = vld [vmem:[%s4014 + $0x350] sm:$0xff]
  %v4122 = vld [vmem:[%s4014 + $0x358] sm:$0xff]
  %v4123 = vld [vmem:[%s4014 + $0x360] sm:$0xff]
  %v4124 = vld [vmem:[%s4014 + $0x368] sm:$0xff]
  %v4125 = vld [vmem:[%s4014 + $0x370] sm:$0xff]
  %v4126 = vld [vmem:[%s4014 + $0x378] sm:$0xff]
  %v4127 = vld [vmem:[%s4014 + $0x380] sm:$0xff]
  %v4128 = vld [vmem:[%s4014 + $0x388] sm:$0xff]
  %v4129 = vld [vmem:[%s4014 + $0x390] sm:$0xff]
  %v4130 = vld [vmem:[%s4014 + $0x398] sm:$0xff]
  %v4131 = vld [vmem:[%s4014 + $0x3a0] sm:$0xff]
  %v4132 = vld [vmem:[%s4014 + $0x3a8] sm:$0xff]
  %v4133 = vld [vmem:[%s4014 + $0x3b0] sm:$0xff]
  %v4134 = vld [vmem:[%s4014 + $0x3b8] sm:$0xff]
  %v4135 = vld [vmem:[%s4014 + $0x3c0] sm:$0xff]
  %v4136 = vld [vmem:[%s4014 + $0x3c8] sm:$0xff]
  %v4137 = vld [vmem:[%s4014 + $0x3d0] sm:$0xff]
  %v4138 = vld [vmem:[%s4014 + $0x3d8] sm:$0xff]
  %v4139 = vld [vmem:[%s4014 + $0x3e0] sm:$0xff]
  %v4140 = vld [vmem:[%s4014 + $0x3e8] sm:$0xff]
  %v4141 = vld [vmem:[%s4014 + $0x3f0] sm:$0xff]
  %v4142 = vld [vmem:[%s4014 + $0x3f8] sm:$0xff]
  %4143 = vmatprep.subr.mxu0 %v4016
  %4144 = vmatpush1.msra.mxu0 %v4015
  %4145 = vmatprep.subr.mxu0 %v4020
  %4146 = vmatpush1.msra.mxu0 %v4019
  %4147 = vmatprep.subr.mxu0 %v4024
  %4148 = vmatpush1.msra.mxu0 %v4023
  %4149 = vmatprep.subr.mxu0 %v4028
  %4150 = vmatpush1.msra.mxu0 %v4027
  %4151 = vmatprep.subr.mxu0 %v4032
  %4152 = vmatpush1.msra.mxu0 %v4031
  %4153 = vmatprep.subr.mxu0 %v4036
  %4154 = vmatpush1.msra.mxu0 %v4035
  %4155 = vmatprep.subr.mxu0 %v4040
  %4156 = vmatpush1.msra.mxu0 %v4039
  %4157 = vmatprep.subr.mxu0 %v4044
  %4158 = vmatpush1.msra.mxu0 %v4043
  %4159 = vmatprep.subr.mxu0 %v4048
  %4160 = vmatpush1.msra.mxu0 %v4047
  %4161 = vmatprep.subr.mxu0 %v4052
  %4162 = vmatpush1.msra.mxu0 %v4051
  %4163 = vmatprep.subr.mxu0 %v4056
  %4164 = vmatpush1.msra.mxu0 %v4055
  %4165 = vmatprep.subr.mxu0 %v4060
  %4166 = vmatpush1.msra.mxu0 %v4059
  %4167 = vmatprep.subr.mxu0 %v4064
  %4168 = vmatpush1.msra.mxu0 %v4063
  %4169 = vmatprep.subr.mxu0 %v4068
  %4170 = vmatpush1.msra.mxu0 %v4067
  %4171 = vmatprep.subr.mxu0 %v4072
  %4172 = vmatpush1.msra.mxu0 %v4071
  %4173 = vmatprep.subr.mxu0 %v4076
  %4174 = vmatpush1.msra.mxu0 %v4075
  %4175 = vmatprep.subr.mxu0 %v4080
  %4176 = vmatpush1.msra.mxu0 %v4079
  %4177 = vmatprep.subr.mxu0 %v4084
  %4178 = vmatpush1.msra.mxu0 %v4083
  %4179 = vmatprep.subr.mxu0 %v4088
  %4180 = vmatpush1.msra.mxu0 %v4087
  %4181 = vmatprep.subr.mxu0 %v4092
  %4182 = vmatpush1.msra.mxu0 %v4091
  %4183 = vmatprep.subr.mxu0 %v4096
  %4184 = vmatpush1.msra.mxu0 %v4095
  %4185 = vmatprep.subr.mxu0 %v4100
  %4186 = vmatpush1.msra.mxu0 %v4099
  %4187 = vmatprep.subr.mxu0 %v4104
  %4188 = vmatpush1.msra.mxu0 %v4103
  %4189 = vmatprep.subr.mxu0 %v4108
  %4190 = vmatpush1.msra.mxu0 %v4107
  %4191 = vmatprep.subr.mxu0 %v4112
  %4192 = vmatpush1.msra.mxu0 %v4111
  %4193 = vmatprep.subr.mxu0 %v4116
  %4194 = vmatpush1.msra.mxu0 %v4115
  %4195 = vmatprep.subr.mxu0 %v4120
  %4196 = vmatpush1.msra.mxu0 %v4119
  %4197 = vmatprep.subr.mxu0 %v4124
  %4198 = vmatpush1.msra.mxu0 %v4123
  %4199 = vmatprep.subr.mxu0 %v4128
  %4200 = vmatpush1.msra.mxu0 %v4127
  %4201 = vmatprep.subr.mxu0 %v4132
  %4202 = vmatpush1.msra.mxu0 %v4131
  %4203 = vmatprep.subr.mxu0 %v4136
  %4204 = vmatpush1.msra.mxu0 %v4135
  %4205 = vmatprep.subr.mxu0 %v4140
  %4206 = vmatpush1.msra.mxu0 %v4139
  %4207 = vmatprep.mubr.f32.mxu0 %v2093
  %4208 = vmatmul.mubr.f32.gmra.mrb[0].mxu0 %v2092
  %v4209 = vpop.f32.mrb[0].mxu0
  %v4210 = vadd.f32 0.0, %v4209
  %v4211 = vpop.f32.mrb[0].mxu0
  %v4212 = vadd.f32 0.0, %v4211
  %4213 = vdwg.mxu0
  %4214 = vmatprep.subr.mxu0 %v4018
  %4215 = vmatpush1.msra.mxu0 %v4017
  %4216 = vmatprep.subr.mxu0 %v4022
  %4217 = vmatpush1.msra.mxu0 %v4021
  %4218 = vmatprep.subr.mxu0 %v4026
  %4219 = vmatpush1.msra.mxu0 %v4025
  %4220 = vmatprep.subr.mxu0 %v4030
  %4221 = vmatpush1.msra.mxu0 %v4029
  %4222 = vmatprep.subr.mxu0 %v4034
  %4223 = vmatpush1.msra.mxu0 %v4033
  %4224 = vmatprep.subr.mxu0 %v4038
  %4225 = vmatpush1.msra.mxu0 %v4037
  %4226 = vmatprep.subr.mxu0 %v4042
  %4227 = vmatpush1.msra.mxu0 %v4041
  %4228 = vmatprep.subr.mxu0 %v4046
  %4229 = vmatpush1.msra.mxu0 %v4045
  %4230 = vmatprep.subr.mxu0 %v4050
  %4231 = vmatpush1.msra.mxu0 %v4049
  %4232 = vmatprep.subr.mxu0 %v4054
  %4233 = vmatpush1.msra.mxu0 %v4053
  %4234 = vmatprep.subr.mxu0 %v4058
  %4235 = vmatpush1.msra.mxu0 %v4057
  %4236 = vmatprep.subr.mxu0 %v4062
  %4237 = vmatpush1.msra.mxu0 %v4061
  %4238 = vmatprep.subr.mxu0 %v4066
  %4239 = vmatpush1.msra.mxu0 %v4065
  %4240 = vmatprep.subr.mxu0 %v4070
  %4241 = vmatpush1.msra.mxu0 %v4069
  %4242 = vmatprep.subr.mxu0 %v4074
  %4243 = vmatpush1.msra.mxu0 %v4073
  %4244 = vmatprep.subr.mxu0 %v4078
  %4245 = vmatpush1.msra.mxu0 %v4077
  %4246 = vmatprep.subr.mxu0 %v4082
  %4247 = vmatpush1.msra.mxu0 %v4081
  %4248 = vmatprep.subr.mxu0 %v4086
  %4249 = vmatpush1.msra.mxu0 %v4085
  %4250 = vmatprep.subr.mxu0 %v4090
  %4251 = vmatpush1.msra.mxu0 %v4089
  %4252 = vmatprep.subr.mxu0 %v4094
  %4253 = vmatpush1.msra.mxu0 %v4093
  %4254 = vmatprep.subr.mxu0 %v4098
  %4255 = vmatpush1.msra.mxu0 %v4097
  %4256 = vmatprep.subr.mxu0 %v4102
  %4257 = vmatpush1.msra.mxu0 %v4101
  %4258 = vmatprep.subr.mxu0 %v4106
  %4259 = vmatpush1.msra.mxu0 %v4105
  %4260 = vmatprep.subr.mxu0 %v4110
  %4261 = vmatpush1.msra.mxu0 %v4109
  %4262 = vmatprep.subr.mxu0 %v4114
  %4263 = vmatpush1.msra.mxu0 %v4113
  %4264 = vmatprep.subr.mxu0 %v4118
  %4265 = vmatpush1.msra.mxu0 %v4117
  %4266 = vmatprep.subr.mxu0 %v4122
  %4267 = vmatpush1.msra.mxu0 %v4121
  %4268 = vmatprep.subr.mxu0 %v4126
  %4269 = vmatpush1.msra.mxu0 %v4125
  %4270 = vmatprep.subr.mxu0 %v4130
  %4271 = vmatpush1.msra.mxu0 %v4129
  %4272 = vmatprep.subr.mxu0 %v4134
  %4273 = vmatpush1.msra.mxu0 %v4133
  %4274 = vmatprep.subr.mxu0 %v4138
  %4275 = vmatpush1.msra.mxu0 %v4137
  %4276 = vmatprep.subr.mxu0 %v4142
  %4277 = vmatpush1.msra.mxu0 %v4141
  %4278 = vmatprep.mubr.f32.mxu0 %v2093
  %4279 = vmatmul.mubr.f32.gmra.mrb[0].mxu0 %v2092
  %v4280 = vpop.f32.mrb[0].mxu0
  %v4281 = vadd.f32 0.0, %v4280
  %v4282 = vpop.f32.mrb[0].mxu0
  %v4283 = vadd.f32 0.0, %v4282
  %4284 = vdwg.mxu0
  %v4285 = vadd.f32 %v4010, %v4210
  %v4286 = vadd.f32 %v4011, %v4212
  %v4287 = vadd.f32 %v4012, %v4281
  %v4288 = vadd.f32 %v4013, %v4283
  %s4289 = scalar_lea.vmem %s5, 8192
  %v4290 = vld [vmem:[%s4289] sm:$0xff]
  %v4291 = vld [vmem:[%s4289 + $0x8] sm:$0xff]
  %v4292 = vld [vmem:[%s4289 + $0x10] sm:$0xff]
  %v4293 = vld [vmem:[%s4289 + $0x18] sm:$0xff]
  %v4294 = vld [vmem:[%s4289 + $0x20] sm:$0xff]
  %v4295 = vld [vmem:[%s4289 + $0x28] sm:$0xff]
  %v4296 = vld [vmem:[%s4289 + $0x30] sm:$0xff]
  %v4297 = vld [vmem:[%s4289 + $0x38] sm:$0xff]
  %v4298 = vld [vmem:[%s4289 + $0x40] sm:$0xff]
  %v4299 = vld [vmem:[%s4289 + $0x48] sm:$0xff]
  %v4300 = vld [vmem:[%s4289 + $0x50] sm:$0xff]
  %v4301 = vld [vmem:[%s4289 + $0x58] sm:$0xff]
  %v4302 = vld [vmem:[%s4289 + $0x60] sm:$0xff]
  %v4303 = vld [vmem:[%s4289 + $0x68] sm:$0xff]
  %v4304 = vld [vmem:[%s4289 + $0x70] sm:$0xff]
  %v4305 = vld [vmem:[%s4289 + $0x78] sm:$0xff]
  %v4306 = vld [vmem:[%s4289 + $0x80] sm:$0xff]
  %v4307 = vld [vmem:[%s4289 + $0x88] sm:$0xff]
  %v4308 = vld [vmem:[%s4289 + $0x90] sm:$0xff]
  %v4309 = vld [vmem:[%s4289 + $0x98] sm:$0xff]
  %v4310 = vld [vmem:[%s4289 + $0xa0] sm:$0xff]
  %v4311 = vld [vmem:[%s4289 + $0xa8] sm:$0xff]
  %v4312 = vld [vmem:[%s4289 + $0xb0] sm:$0xff]
  %v4313 = vld [vmem:[%s4289 + $0xb8] sm:$0xff]
  %v4314 = vld [vmem:[%s4289 + $0xc0] sm:$0xff]
  %v4315 = vld [vmem:[%s4289 + $0xc8] sm:$0xff]
  %v4316 = vld [vmem:[%s4289 + $0xd0] sm:$0xff]
  %v4317 = vld [vmem:[%s4289 + $0xd8] sm:$0xff]
  %v4318 = vld [vmem:[%s4289 + $0xe0] sm:$0xff]
  %v4319 = vld [vmem:[%s4289 + $0xe8] sm:$0xff]
  %v4320 = vld [vmem:[%s4289 + $0xf0] sm:$0xff]
  %v4321 = vld [vmem:[%s4289 + $0xf8] sm:$0xff]
  %v4322 = vld [vmem:[%s4289 + $0x100] sm:$0xff]
  %v4323 = vld [vmem:[%s4289 + $0x108] sm:$0xff]
  %v4324 = vld [vmem:[%s4289 + $0x110] sm:$0xff]
  %v4325 = vld [vmem:[%s4289 + $0x118] sm:$0xff]
  %v4326 = vld [vmem:[%s4289 + $0x120] sm:$0xff]
  %v4327 = vld [vmem:[%s4289 + $0x128] sm:$0xff]
  %v4328 = vld [vmem:[%s4289 + $0x130] sm:$0xff]
  %v4329 = vld [vmem:[%s4289 + $0x138] sm:$0xff]
  %v4330 = vld [vmem:[%s4289 + $0x140] sm:$0xff]
  %v4331 = vld [vmem:[%s4289 + $0x148] sm:$0xff]
  %v4332 = vld [vmem:[%s4289 + $0x150] sm:$0xff]
  %v4333 = vld [vmem:[%s4289 + $0x158] sm:$0xff]
  %v4334 = vld [vmem:[%s4289 + $0x160] sm:$0xff]
  %v4335 = vld [vmem:[%s4289 + $0x168] sm:$0xff]
  %v4336 = vld [vmem:[%s4289 + $0x170] sm:$0xff]
  %v4337 = vld [vmem:[%s4289 + $0x178] sm:$0xff]
  %v4338 = vld [vmem:[%s4289 + $0x180] sm:$0xff]
  %v4339 = vld [vmem:[%s4289 + $0x188] sm:$0xff]
  %v4340 = vld [vmem:[%s4289 + $0x190] sm:$0xff]
  %v4341 = vld [vmem:[%s4289 + $0x198] sm:$0xff]
  %v4342 = vld [vmem:[%s4289 + $0x1a0] sm:$0xff]
  %v4343 = vld [vmem:[%s4289 + $0x1a8] sm:$0xff]
  %v4344 = vld [vmem:[%s4289 + $0x1b0] sm:$0xff]
  %v4345 = vld [vmem:[%s4289 + $0x1b8] sm:$0xff]
  %v4346 = vld [vmem:[%s4289 + $0x1c0] sm:$0xff]
  %v4347 = vld [vmem:[%s4289 + $0x1c8] sm:$0xff]
  %v4348 = vld [vmem:[%s4289 + $0x1d0] sm:$0xff]
  %v4349 = vld [vmem:[%s4289 + $0x1d8] sm:$0xff]
  %v4350 = vld [vmem:[%s4289 + $0x1e0] sm:$0xff]
  %v4351 = vld [vmem:[%s4289 + $0x1e8] sm:$0xff]
  %v4352 = vld [vmem:[%s4289 + $0x1f0] sm:$0xff]
  %v4353 = vld [vmem:[%s4289 + $0x1f8] sm:$0xff]
  %v4354 = vld [vmem:[%s4289 + $0x200] sm:$0xff]
  %v4355 = vld [vmem:[%s4289 + $0x208] sm:$0xff]
  %v4356 = vld [vmem:[%s4289 + $0x210] sm:$0xff]
  %v4357 = vld [vmem:[%s4289 + $0x218] sm:$0xff]
  %v4358 = vld [vmem:[%s4289 + $0x220] sm:$0xff]
  %v4359 = vld [vmem:[%s4289 + $0x228] sm:$0xff]
  %v4360 = vld [vmem:[%s4289 + $0x230] sm:$0xff]
  %v4361 = vld [vmem:[%s4289 + $0x238] sm:$0xff]
  %v4362 = vld [vmem:[%s4289 + $0x240] sm:$0xff]
  %v4363 = vld [vmem:[%s4289 + $0x248] sm:$0xff]
  %v4364 = vld [vmem:[%s4289 + $0x250] sm:$0xff]
  %v4365 = vld [vmem:[%s4289 + $0x258] sm:$0xff]
  %v4366 = vld [vmem:[%s4289 + $0x260] sm:$0xff]
  %v4367 = vld [vmem:[%s4289 + $0x268] sm:$0xff]
  %v4368 = vld [vmem:[%s4289 + $0x270] sm:$0xff]
  %v4369 = vld [vmem:[%s4289 + $0x278] sm:$0xff]
  %v4370 = vld [vmem:[%s4289 + $0x280] sm:$0xff]
  %v4371 = vld [vmem:[%s4289 + $0x288] sm:$0xff]
  %v4372 = vld [vmem:[%s4289 + $0x290] sm:$0xff]
  %v4373 = vld [vmem:[%s4289 + $0x298] sm:$0xff]
  %v4374 = vld [vmem:[%s4289 + $0x2a0] sm:$0xff]
  %v4375 = vld [vmem:[%s4289 + $0x2a8] sm:$0xff]
  %v4376 = vld [vmem:[%s4289 + $0x2b0] sm:$0xff]
  %v4377 = vld [vmem:[%s4289 + $0x2b8] sm:$0xff]
  %v4378 = vld [vmem:[%s4289 + $0x2c0] sm:$0xff]
  %v4379 = vld [vmem:[%s4289 + $0x2c8] sm:$0xff]
  %v4380 = vld [vmem:[%s4289 + $0x2d0] sm:$0xff]
  %v4381 = vld [vmem:[%s4289 + $0x2d8] sm:$0xff]
  %v4382 = vld [vmem:[%s4289 + $0x2e0] sm:$0xff]
  %v4383 = vld [vmem:[%s4289 + $0x2e8] sm:$0xff]
  %v4384 = vld [vmem:[%s4289 + $0x2f0] sm:$0xff]
  %v4385 = vld [vmem:[%s4289 + $0x2f8] sm:$0xff]
  %v4386 = vld [vmem:[%s4289 + $0x300] sm:$0xff]
  %v4387 = vld [vmem:[%s4289 + $0x308] sm:$0xff]
  %v4388 = vld [vmem:[%s4289 + $0x310] sm:$0xff]
  %v4389 = vld [vmem:[%s4289 + $0x318] sm:$0xff]
  %v4390 = vld [vmem:[%s4289 + $0x320] sm:$0xff]
  %v4391 = vld [vmem:[%s4289 + $0x328] sm:$0xff]
  %v4392 = vld [vmem:[%s4289 + $0x330] sm:$0xff]
  %v4393 = vld [vmem:[%s4289 + $0x338] sm:$0xff]
  %v4394 = vld [vmem:[%s4289 + $0x340] sm:$0xff]
  %v4395 = vld [vmem:[%s4289 + $0x348] sm:$0xff]
  %v4396 = vld [vmem:[%s4289 + $0x350] sm:$0xff]
  %v4397 = vld [vmem:[%s4289 + $0x358] sm:$0xff]
  %v4398 = vld [vmem:[%s4289 + $0x360] sm:$0xff]
  %v4399 = vld [vmem:[%s4289 + $0x368] sm:$0xff]
  %v4400 = vld [vmem:[%s4289 + $0x370] sm:$0xff]
  %v4401 = vld [vmem:[%s4289 + $0x378] sm:$0xff]
  %v4402 = vld [vmem:[%s4289 + $0x380] sm:$0xff]
  %v4403 = vld [vmem:[%s4289 + $0x388] sm:$0xff]
  %v4404 = vld [vmem:[%s4289 + $0x390] sm:$0xff]
  %v4405 = vld [vmem:[%s4289 + $0x398] sm:$0xff]
  %v4406 = vld [vmem:[%s4289 + $0x3a0] sm:$0xff]
  %v4407 = vld [vmem:[%s4289 + $0x3a8] sm:$0xff]
  %v4408 = vld [vmem:[%s4289 + $0x3b0] sm:$0xff]
  %v4409 = vld [vmem:[%s4289 + $0x3b8] sm:$0xff]
  %v4410 = vld [vmem:[%s4289 + $0x3c0] sm:$0xff]
  %v4411 = vld [vmem:[%s4289 + $0x3c8] sm:$0xff]
  %v4412 = vld [vmem:[%s4289 + $0x3d0] sm:$0xff]
  %v4413 = vld [vmem:[%s4289 + $0x3d8] sm:$0xff]
  %v4414 = vld [vmem:[%s4289 + $0x3e0] sm:$0xff]
  %v4415 = vld [vmem:[%s4289 + $0x3e8] sm:$0xff]
  %v4416 = vld [vmem:[%s4289 + $0x3f0] sm:$0xff]
  %v4417 = vld [vmem:[%s4289 + $0x3f8] sm:$0xff]
  %4418 = vmatprep.subr.mxu0 %v4291
  %4419 = vmatpush1.msra.mxu0 %v4290
  %4420 = vmatprep.subr.mxu0 %v4295
  %4421 = vmatpush1.msra.mxu0 %v4294
  %4422 = vmatprep.subr.mxu0 %v4299
  %4423 = vmatpush1.msra.mxu0 %v4298
  %4424 = vmatprep.subr.mxu0 %v4303
  %4425 = vmatpush1.msra.mxu0 %v4302
  %4426 = vmatprep.subr.mxu0 %v4307
  %4427 = vmatpush1.msra.mxu0 %v4306
  %4428 = vmatprep.subr.mxu0 %v4311
  %4429 = vmatpush1.msra.mxu0 %v4310
  %4430 = vmatprep.subr.mxu0 %v4315
  %4431 = vmatpush1.msra.mxu0 %v4314
  %4432 = vmatprep.subr.mxu0 %v4319
  %4433 = vmatpush1.msra.mxu0 %v4318
  %4434 = vmatprep.subr.mxu0 %v4323
  %4435 = vmatpush1.msra.mxu0 %v4322
  %4436 = vmatprep.subr.mxu0 %v4327
  %4437 = vmatpush1.msra.mxu0 %v4326
  %4438 = vmatprep.subr.mxu0 %v4331
  %4439 = vmatpush1.msra.mxu0 %v4330
  %4440 = vmatprep.subr.mxu0 %v4335
  %4441 = vmatpush1.msra.mxu0 %v4334
  %4442 = vmatprep.subr.mxu0 %v4339
  %4443 = vmatpush1.msra.mxu0 %v4338
  %4444 = vmatprep.subr.mxu0 %v4343
  %4445 = vmatpush1.msra.mxu0 %v4342
  %4446 = vmatprep.subr.mxu0 %v4347
  %4447 = vmatpush1.msra.mxu0 %v4346
  %4448 = vmatprep.subr.mxu0 %v4351
  %4449 = vmatpush1.msra.mxu0 %v4350
  %4450 = vmatprep.subr.mxu0 %v4355
  %4451 = vmatpush1.msra.mxu0 %v4354
  %4452 = vmatprep.subr.mxu0 %v4359
  %4453 = vmatpush1.msra.mxu0 %v4358
  %4454 = vmatprep.subr.mxu0 %v4363
  %4455 = vmatpush1.msra.mxu0 %v4362
  %4456 = vmatprep.subr.mxu0 %v4367
  %4457 = vmatpush1.msra.mxu0 %v4366
  %4458 = vmatprep.subr.mxu0 %v4371
  %4459 = vmatpush1.msra.mxu0 %v4370
  %4460 = vmatprep.subr.mxu0 %v4375
  %4461 = vmatpush1.msra.mxu0 %v4374
  %4462 = vmatprep.subr.mxu0 %v4379
  %4463 = vmatpush1.msra.mxu0 %v4378
  %4464 = vmatprep.subr.mxu0 %v4383
  %4465 = vmatpush1.msra.mxu0 %v4382
  %4466 = vmatprep.subr.mxu0 %v4387
  %4467 = vmatpush1.msra.mxu0 %v4386
  %4468 = vmatprep.subr.mxu0 %v4391
  %4469 = vmatpush1.msra.mxu0 %v4390
  %4470 = vmatprep.subr.mxu0 %v4395
  %4471 = vmatpush1.msra.mxu0 %v4394
  %4472 = vmatprep.subr.mxu0 %v4399
  %4473 = vmatpush1.msra.mxu0 %v4398
  %4474 = vmatprep.subr.mxu0 %v4403
  %4475 = vmatpush1.msra.mxu0 %v4402
  %4476 = vmatprep.subr.mxu0 %v4407
  %4477 = vmatpush1.msra.mxu0 %v4406
  %4478 = vmatprep.subr.mxu0 %v4411
  %4479 = vmatpush1.msra.mxu0 %v4410
  %4480 = vmatprep.subr.mxu0 %v4415
  %4481 = vmatpush1.msra.mxu0 %v4414
  %4482 = vmatprep.mubr.f32.mxu0 %v2095
  %4483 = vmatmul.mubr.f32.gmra.mrb[0].mxu0 %v2094
  %v4484 = vpop.f32.mrb[0].mxu0
  %v4485 = vadd.f32 0.0, %v4484
  %v4486 = vpop.f32.mrb[0].mxu0
  %v4487 = vadd.f32 0.0, %v4486
  %4488 = vdwg.mxu0
  %4489 = vmatprep.subr.mxu0 %v4293
  %4490 = vmatpush1.msra.mxu0 %v4292
  %4491 = vmatprep.subr.mxu0 %v4297
  %4492 = vmatpush1.msra.mxu0 %v4296
  %4493 = vmatprep.subr.mxu0 %v4301
  %4494 = vmatpush1.msra.mxu0 %v4300
  %4495 = vmatprep.subr.mxu0 %v4305
  %4496 = vmatpush1.msra.mxu0 %v4304
  %4497 = vmatprep.subr.mxu0 %v4309
  %4498 = vmatpush1.msra.mxu0 %v4308
  %4499 = vmatprep.subr.mxu0 %v4313
  %4500 = vmatpush1.msra.mxu0 %v4312
  %4501 = vmatprep.subr.mxu0 %v4317
  %4502 = vmatpush1.msra.mxu0 %v4316
  %4503 = vmatprep.subr.mxu0 %v4321
  %4504 = vmatpush1.msra.mxu0 %v4320
  %4505 = vmatprep.subr.mxu0 %v4325
  %4506 = vmatpush1.msra.mxu0 %v4324
  %4507 = vmatprep.subr.mxu0 %v4329
  %4508 = vmatpush1.msra.mxu0 %v4328
  %4509 = vmatprep.subr.mxu0 %v4333
  %4510 = vmatpush1.msra.mxu0 %v4332
  %4511 = vmatprep.subr.mxu0 %v4337
  %4512 = vmatpush1.msra.mxu0 %v4336
  %4513 = vmatprep.subr.mxu0 %v4341
  %4514 = vmatpush1.msra.mxu0 %v4340
  %4515 = vmatprep.subr.mxu0 %v4345
  %4516 = vmatpush1.msra.mxu0 %v4344
  %4517 = vmatprep.subr.mxu0 %v4349
  %4518 = vmatpush1.msra.mxu0 %v4348
  %4519 = vmatprep.subr.mxu0 %v4353
  %4520 = vmatpush1.msra.mxu0 %v4352
  %4521 = vmatprep.subr.mxu0 %v4357
  %4522 = vmatpush1.msra.mxu0 %v4356
  %4523 = vmatprep.subr.mxu0 %v4361
  %4524 = vmatpush1.msra.mxu0 %v4360
  %4525 = vmatprep.subr.mxu0 %v4365
  %4526 = vmatpush1.msra.mxu0 %v4364
  %4527 = vmatprep.subr.mxu0 %v4369
  %4528 = vmatpush1.msra.mxu0 %v4368
  %4529 = vmatprep.subr.mxu0 %v4373
  %4530 = vmatpush1.msra.mxu0 %v4372
  %4531 = vmatprep.subr.mxu0 %v4377
  %4532 = vmatpush1.msra.mxu0 %v4376
  %4533 = vmatprep.subr.mxu0 %v4381
  %4534 = vmatpush1.msra.mxu0 %v4380
  %4535 = vmatprep.subr.mxu0 %v4385
  %4536 = vmatpush1.msra.mxu0 %v4384
  %4537 = vmatprep.subr.mxu0 %v4389
  %4538 = vmatpush1.msra.mxu0 %v4388
  %4539 = vmatprep.subr.mxu0 %v4393
  %4540 = vmatpush1.msra.mxu0 %v4392
  %4541 = vmatprep.subr.mxu0 %v4397
  %4542 = vmatpush1.msra.mxu0 %v4396
  %4543 = vmatprep.subr.mxu0 %v4401
  %4544 = vmatpush1.msra.mxu0 %v4400
  %4545 = vmatprep.subr.mxu0 %v4405
  %4546 = vmatpush1.msra.mxu0 %v4404
  %4547 = vmatprep.subr.mxu0 %v4409
  %4548 = vmatpush1.msra.mxu0 %v4408
  %4549 = vmatprep.subr.mxu0 %v4413
  %4550 = vmatpush1.msra.mxu0 %v4412
  %4551 = vmatprep.subr.mxu0 %v4417
  %4552 = vmatpush1.msra.mxu0 %v4416
  %4553 = vmatprep.mubr.f32.mxu0 %v2095
  %4554 = vmatmul.mubr.f32.gmra.mrb[0].mxu0 %v2094
  %v4555 = vpop.f32.mrb[0].mxu0
  %v4556 = vadd.f32 0.0, %v4555
  %v4557 = vpop.f32.mrb[0].mxu0
  %v4558 = vadd.f32 0.0, %v4557
  %4559 = vdwg.mxu0
  %v4560 = vadd.f32 %v4285, %v4485
  %v4561 = vadd.f32 %v4286, %v4487
  %v4562 = vadd.f32 %v4287, %v4556
  %v4563 = vadd.f32 %v4288, %v4558
  %s4564 = scalar_lea.vmem %s5, 9216
  %v4565 = vld [vmem:[%s4564] sm:$0xff]
  %v4566 = vld [vmem:[%s4564 + $0x8] sm:$0xff]
  %v4567 = vld [vmem:[%s4564 + $0x10] sm:$0xff]
  %v4568 = vld [vmem:[%s4564 + $0x18] sm:$0xff]
  %v4569 = vld [vmem:[%s4564 + $0x20] sm:$0xff]
  %v4570 = vld [vmem:[%s4564 + $0x28] sm:$0xff]
  %v4571 = vld [vmem:[%s4564 + $0x30] sm:$0xff]
  %v4572 = vld [vmem:[%s4564 + $0x38] sm:$0xff]
  %v4573 = vld [vmem:[%s4564 + $0x40] sm:$0xff]
  %v4574 = vld [vmem:[%s4564 + $0x48] sm:$0xff]
  %v4575 = vld [vmem:[%s4564 + $0x50] sm:$0xff]
  %v4576 = vld [vmem:[%s4564 + $0x58] sm:$0xff]
  %v4577 = vld [vmem:[%s4564 + $0x60] sm:$0xff]
  %v4578 = vld [vmem:[%s4564 + $0x68] sm:$0xff]
  %v4579 = vld [vmem:[%s4564 + $0x70] sm:$0xff]
  %v4580 = vld [vmem:[%s4564 + $0x78] sm:$0xff]
  %v4581 = vld [vmem:[%s4564 + $0x80] sm:$0xff]
  %v4582 = vld [vmem:[%s4564 + $0x88] sm:$0xff]
  %v4583 = vld [vmem:[%s4564 + $0x90] sm:$0xff]
  %v4584 = vld [vmem:[%s4564 + $0x98] sm:$0xff]
  %v4585 = vld [vmem:[%s4564 + $0xa0] sm:$0xff]
  %v4586 = vld [vmem:[%s4564 + $0xa8] sm:$0xff]
  %v4587 = vld [vmem:[%s4564 + $0xb0] sm:$0xff]
  %v4588 = vld [vmem:[%s4564 + $0xb8] sm:$0xff]
  %v4589 = vld [vmem:[%s4564 + $0xc0] sm:$0xff]
  %v4590 = vld [vmem:[%s4564 + $0xc8] sm:$0xff]
  %v4591 = vld [vmem:[%s4564 + $0xd0] sm:$0xff]
  %v4592 = vld [vmem:[%s4564 + $0xd8] sm:$0xff]
  %v4593 = vld [vmem:[%s4564 + $0xe0] sm:$0xff]
  %v4594 = vld [vmem:[%s4564 + $0xe8] sm:$0xff]
  %v4595 = vld [vmem:[%s4564 + $0xf0] sm:$0xff]
  %v4596 = vld [vmem:[%s4564 + $0xf8] sm:$0xff]
  %v4597 = vld [vmem:[%s4564 + $0x100] sm:$0xff]
  %v4598 = vld [vmem:[%s4564 + $0x108] sm:$0xff]
  %v4599 = vld [vmem:[%s4564 + $0x110] sm:$0xff]
  %v4600 = vld [vmem:[%s4564 + $0x118] sm:$0xff]
  %v4601 = vld [vmem:[%s4564 + $0x120] sm:$0xff]
  %v4602 = vld [vmem:[%s4564 + $0x128] sm:$0xff]
  %v4603 = vld [vmem:[%s4564 + $0x130] sm:$0xff]
  %v4604 = vld [vmem:[%s4564 + $0x138] sm:$0xff]
  %v4605 = vld [vmem:[%s4564 + $0x140] sm:$0xff]
  %v4606 = vld [vmem:[%s4564 + $0x148] sm:$0xff]
  %v4607 = vld [vmem:[%s4564 + $0x150] sm:$0xff]
  %v4608 = vld [vmem:[%s4564 + $0x158] sm:$0xff]
  %v4609 = vld [vmem:[%s4564 + $0x160] sm:$0xff]
  %v4610 = vld [vmem:[%s4564 + $0x168] sm:$0xff]
  %v4611 = vld [vmem:[%s4564 + $0x170] sm:$0xff]
  %v4612 = vld [vmem:[%s4564 + $0x178] sm:$0xff]
  %v4613 = vld [vmem:[%s4564 + $0x180] sm:$0xff]
  %v4614 = vld [vmem:[%s4564 + $0x188] sm:$0xff]
  %v4615 = vld [vmem:[%s4564 + $0x190] sm:$0xff]
  %v4616 = vld [vmem:[%s4564 + $0x198] sm:$0xff]
  %v4617 = vld [vmem:[%s4564 + $0x1a0] sm:$0xff]
  %v4618 = vld [vmem:[%s4564 + $0x1a8] sm:$0xff]
  %v4619 = vld [vmem:[%s4564 + $0x1b0] sm:$0xff]
  %v4620 = vld [vmem:[%s4564 + $0x1b8] sm:$0xff]
  %v4621 = vld [vmem:[%s4564 + $0x1c0] sm:$0xff]
  %v4622 = vld [vmem:[%s4564 + $0x1c8] sm:$0xff]
  %v4623 = vld [vmem:[%s4564 + $0x1d0] sm:$0xff]
  %v4624 = vld [vmem:[%s4564 + $0x1d8] sm:$0xff]
  %v4625 = vld [vmem:[%s4564 + $0x1e0] sm:$0xff]
  %v4626 = vld [vmem:[%s4564 + $0x1e8] sm:$0xff]
  %v4627 = vld [vmem:[%s4564 + $0x1f0] sm:$0xff]
  %v4628 = vld [vmem:[%s4564 + $0x1f8] sm:$0xff]
  %v4629 = vld [vmem:[%s4564 + $0x200] sm:$0xff]
  %v4630 = vld [vmem:[%s4564 + $0x208] sm:$0xff]
  %v4631 = vld [vmem:[%s4564 + $0x210] sm:$0xff]
  %v4632 = vld [vmem:[%s4564 + $0x218] sm:$0xff]
  %v4633 = vld [vmem:[%s4564 + $0x220] sm:$0xff]
  %v4634 = vld [vmem:[%s4564 + $0x228] sm:$0xff]
  %v4635 = vld [vmem:[%s4564 + $0x230] sm:$0xff]
  %v4636 = vld [vmem:[%s4564 + $0x238] sm:$0xff]
  %v4637 = vld [vmem:[%s4564 + $0x240] sm:$0xff]
  %v4638 = vld [vmem:[%s4564 + $0x248] sm:$0xff]
  %v4639 = vld [vmem:[%s4564 + $0x250] sm:$0xff]
  %v4640 = vld [vmem:[%s4564 + $0x258] sm:$0xff]
  %v4641 = vld [vmem:[%s4564 + $0x260] sm:$0xff]
  %v4642 = vld [vmem:[%s4564 + $0x268] sm:$0xff]
  %v4643 = vld [vmem:[%s4564 + $0x270] sm:$0xff]
  %v4644 = vld [vmem:[%s4564 + $0x278] sm:$0xff]
  %v4645 = vld [vmem:[%s4564 + $0x280] sm:$0xff]
  %v4646 = vld [vmem:[%s4564 + $0x288] sm:$0xff]
  %v4647 = vld [vmem:[%s4564 + $0x290] sm:$0xff]
  %v4648 = vld [vmem:[%s4564 + $0x298] sm:$0xff]
  %v4649 = vld [vmem:[%s4564 + $0x2a0] sm:$0xff]
  %v4650 = vld [vmem:[%s4564 + $0x2a8] sm:$0xff]
  %v4651 = vld [vmem:[%s4564 + $0x2b0] sm:$0xff]
  %v4652 = vld [vmem:[%s4564 + $0x2b8] sm:$0xff]
  %v4653 = vld [vmem:[%s4564 + $0x2c0] sm:$0xff]
  %v4654 = vld [vmem:[%s4564 + $0x2c8] sm:$0xff]
  %v4655 = vld [vmem:[%s4564 + $0x2d0] sm:$0xff]
  %v4656 = vld [vmem:[%s4564 + $0x2d8] sm:$0xff]
  %v4657 = vld [vmem:[%s4564 + $0x2e0] sm:$0xff]
  %v4658 = vld [vmem:[%s4564 + $0x2e8] sm:$0xff]
  %v4659 = vld [vmem:[%s4564 + $0x2f0] sm:$0xff]
  %v4660 = vld [vmem:[%s4564 + $0x2f8] sm:$0xff]
  %v4661 = vld [vmem:[%s4564 + $0x300] sm:$0xff]
  %v4662 = vld [vmem:[%s4564 + $0x308] sm:$0xff]
  %v4663 = vld [vmem:[%s4564 + $0x310] sm:$0xff]
  %v4664 = vld [vmem:[%s4564 + $0x318] sm:$0xff]
  %v4665 = vld [vmem:[%s4564 + $0x320] sm:$0xff]
  %v4666 = vld [vmem:[%s4564 + $0x328] sm:$0xff]
  %v4667 = vld [vmem:[%s4564 + $0x330] sm:$0xff]
  %v4668 = vld [vmem:[%s4564 + $0x338] sm:$0xff]
  %v4669 = vld [vmem:[%s4564 + $0x340] sm:$0xff]
  %v4670 = vld [vmem:[%s4564 + $0x348] sm:$0xff]
  %v4671 = vld [vmem:[%s4564 + $0x350] sm:$0xff]
  %v4672 = vld [vmem:[%s4564 + $0x358] sm:$0xff]
  %v4673 = vld [vmem:[%s4564 + $0x360] sm:$0xff]
  %v4674 = vld [vmem:[%s4564 + $0x368] sm:$0xff]
  %v4675 = vld [vmem:[%s4564 + $0x370] sm:$0xff]
  %v4676 = vld [vmem:[%s4564 + $0x378] sm:$0xff]
  %v4677 = vld [vmem:[%s4564 + $0x380] sm:$0xff]
  %v4678 = vld [vmem:[%s4564 + $0x388] sm:$0xff]
  %v4679 = vld [vmem:[%s4564 + $0x390] sm:$0xff]
  %v4680 = vld [vmem:[%s4564 + $0x398] sm:$0xff]
  %v4681 = vld [vmem:[%s4564 + $0x3a0] sm:$0xff]
  %v4682 = vld [vmem:[%s4564 + $0x3a8] sm:$0xff]
  %v4683 = vld [vmem:[%s4564 + $0x3b0] sm:$0xff]
  %v4684 = vld [vmem:[%s4564 + $0x3b8] sm:$0xff]
  %v4685 = vld [vmem:[%s4564 + $0x3c0] sm:$0xff]
  %v4686 = vld [vmem:[%s4564 + $0x3c8] sm:$0xff]
  %v4687 = vld [vmem:[%s4564 + $0x3d0] sm:$0xff]
  %v4688 = vld [vmem:[%s4564 + $0x3d8] sm:$0xff]
  %v4689 = vld [vmem:[%s4564 + $0x3e0] sm:$0xff]
  %v4690 = vld [vmem:[%s4564 + $0x3e8] sm:$0xff]
  %v4691 = vld [vmem:[%s4564 + $0x3f0] sm:$0xff]
  %v4692 = vld [vmem:[%s4564 + $0x3f8] sm:$0xff]
  %4693 = vmatprep.subr.mxu0 %v4566
  %4694 = vmatpush1.msra.mxu0 %v4565
  %4695 = vmatprep.subr.mxu0 %v4570
  %4696 = vmatpush1.msra.mxu0 %v4569
  %4697 = vmatprep.subr.mxu0 %v4574
  %4698 = vmatpush1.msra.mxu0 %v4573
  %4699 = vmatprep.subr.mxu0 %v4578
  %4700 = vmatpush1.msra.mxu0 %v4577
  %4701 = vmatprep.subr.mxu0 %v4582
  %4702 = vmatpush1.msra.mxu0 %v4581
  %4703 = vmatprep.subr.mxu0 %v4586
  %4704 = vmatpush1.msra.mxu0 %v4585
  %4705 = vmatprep.subr.mxu0 %v4590
  %4706 = vmatpush1.msra.mxu0 %v4589
  %4707 = vmatprep.subr.mxu0 %v4594
  %4708 = vmatpush1.msra.mxu0 %v4593
  %4709 = vmatprep.subr.mxu0 %v4598
  %4710 = vmatpush1.msra.mxu0 %v4597
  %4711 = vmatprep.subr.mxu0 %v4602
  %4712 = vmatpush1.msra.mxu0 %v4601
  %4713 = vmatprep.subr.mxu0 %v4606
  %4714 = vmatpush1.msra.mxu0 %v4605
  %4715 = vmatprep.subr.mxu0 %v4610
  %4716 = vmatpush1.msra.mxu0 %v4609
  %4717 = vmatprep.subr.mxu0 %v4614
  %4718 = vmatpush1.msra.mxu0 %v4613
  %4719 = vmatprep.subr.mxu0 %v4618
  %4720 = vmatpush1.msra.mxu0 %v4617
  %4721 = vmatprep.subr.mxu0 %v4622
  %4722 = vmatpush1.msra.mxu0 %v4621
  %4723 = vmatprep.subr.mxu0 %v4626
  %4724 = vmatpush1.msra.mxu0 %v4625
  %4725 = vmatprep.subr.mxu0 %v4630
  %4726 = vmatpush1.msra.mxu0 %v4629
  %4727 = vmatprep.subr.mxu0 %v4634
  %4728 = vmatpush1.msra.mxu0 %v4633
  %4729 = vmatprep.subr.mxu0 %v4638
  %4730 = vmatpush1.msra.mxu0 %v4637
  %4731 = vmatprep.subr.mxu0 %v4642
  %4732 = vmatpush1.msra.mxu0 %v4641
  %4733 = vmatprep.subr.mxu0 %v4646
  %4734 = vmatpush1.msra.mxu0 %v4645
  %4735 = vmatprep.subr.mxu0 %v4650
  %4736 = vmatpush1.msra.mxu0 %v4649
  %4737 = vmatprep.subr.mxu0 %v4654
  %4738 = vmatpush1.msra.mxu0 %v4653
  %4739 = vmatprep.subr.mxu0 %v4658
  %4740 = vmatpush1.msra.mxu0 %v4657
  %4741 = vmatprep.subr.mxu0 %v4662
  %4742 = vmatpush1.msra.mxu0 %v4661
  %4743 = vmatprep.subr.mxu0 %v4666
  %4744 = vmatpush1.msra.mxu0 %v4665
  %4745 = vmatprep.subr.mxu0 %v4670
  %4746 = vmatpush1.msra.mxu0 %v4669
  %4747 = vmatprep.subr.mxu0 %v4674
  %4748 = vmatpush1.msra.mxu0 %v4673
  %4749 = vmatprep.subr.mxu0 %v4678
  %4750 = vmatpush1.msra.mxu0 %v4677
  %4751 = vmatprep.subr.mxu0 %v4682
  %4752 = vmatpush1.msra.mxu0 %v4681
  %4753 = vmatprep.subr.mxu0 %v4686
  %4754 = vmatpush1.msra.mxu0 %v4685
  %4755 = vmatprep.subr.mxu0 %v4690
  %4756 = vmatpush1.msra.mxu0 %v4689
  %4757 = vmatprep.mubr.f32.mxu0 %v2097
  %4758 = vmatmul.mubr.f32.gmra.mrb[0].mxu0 %v2096
  %v4759 = vpop.f32.mrb[0].mxu0
  %v4760 = vadd.f32 0.0, %v4759
  %v4761 = vpop.f32.mrb[0].mxu0
  %v4762 = vadd.f32 0.0, %v4761
  %4763 = vdwg.mxu0
  %4764 = vmatprep.subr.mxu0 %v4568
  %4765 = vmatpush1.msra.mxu0 %v4567
  %4766 = vmatprep.subr.mxu0 %v4572
  %4767 = vmatpush1.msra.mxu0 %v4571
  %4768 = vmatprep.subr.mxu0 %v4576
  %4769 = vmatpush1.msra.mxu0 %v4575
  %4770 = vmatprep.subr.mxu0 %v4580
  %4771 = vmatpush1.msra.mxu0 %v4579
  %4772 = vmatprep.subr.mxu0 %v4584
  %4773 = vmatpush1.msra.mxu0 %v4583
  %4774 = vmatprep.subr.mxu0 %v4588
  %4775 = vmatpush1.msra.mxu0 %v4587
  %4776 = vmatprep.subr.mxu0 %v4592
  %4777 = vmatpush1.msra.mxu0 %v4591
  %4778 = vmatprep.subr.mxu0 %v4596
  %4779 = vmatpush1.msra.mxu0 %v4595
  %4780 = vmatprep.subr.mxu0 %v4600
  %4781 = vmatpush1.msra.mxu0 %v4599
  %4782 = vmatprep.subr.mxu0 %v4604
  %4783 = vmatpush1.msra.mxu0 %v4603
  %4784 = vmatprep.subr.mxu0 %v4608
  %4785 = vmatpush1.msra.mxu0 %v4607
  %4786 = vmatprep.subr.mxu0 %v4612
  %4787 = vmatpush1.msra.mxu0 %v4611
  %4788 = vmatprep.subr.mxu0 %v4616
  %4789 = vmatpush1.msra.mxu0 %v4615
  %4790 = vmatprep.subr.mxu0 %v4620
  %4791 = vmatpush1.msra.mxu0 %v4619
  %4792 = vmatprep.subr.mxu0 %v4624
  %4793 = vmatpush1.msra.mxu0 %v4623
  %4794 = vmatprep.subr.mxu0 %v4628
  %4795 = vmatpush1.msra.mxu0 %v4627
  %4796 = vmatprep.subr.mxu0 %v4632
  %4797 = vmatpush1.msra.mxu0 %v4631
  %4798 = vmatprep.subr.mxu0 %v4636
  %4799 = vmatpush1.msra.mxu0 %v4635
  %4800 = vmatprep.subr.mxu0 %v4640
  %4801 = vmatpush1.msra.mxu0 %v4639
  %4802 = vmatprep.subr.mxu0 %v4644
  %4803 = vmatpush1.msra.mxu0 %v4643
  %4804 = vmatprep.subr.mxu0 %v4648
  %4805 = vmatpush1.msra.mxu0 %v4647
  %4806 = vmatprep.subr.mxu0 %v4652
  %4807 = vmatpush1.msra.mxu0 %v4651
  %4808 = vmatprep.subr.mxu0 %v4656
  %4809 = vmatpush1.msra.mxu0 %v4655
  %4810 = vmatprep.subr.mxu0 %v4660
  %4811 = vmatpush1.msra.mxu0 %v4659
  %4812 = vmatprep.subr.mxu0 %v4664
  %4813 = vmatpush1.msra.mxu0 %v4663
  %4814 = vmatprep.subr.mxu0 %v4668
  %4815 = vmatpush1.msra.mxu0 %v4667
  %4816 = vmatprep.subr.mxu0 %v4672
  %4817 = vmatpush1.msra.mxu0 %v4671
  %4818 = vmatprep.subr.mxu0 %v4676
  %4819 = vmatpush1.msra.mxu0 %v4675
  %4820 = vmatprep.subr.mxu0 %v4680
  %4821 = vmatpush1.msra.mxu0 %v4679
  %4822 = vmatprep.subr.mxu0 %v4684
  %4823 = vmatpush1.msra.mxu0 %v4683
  %4824 = vmatprep.subr.mxu0 %v4688
  %4825 = vmatpush1.msra.mxu0 %v4687
  %4826 = vmatprep.subr.mxu0 %v4692
  %4827 = vmatpush1.msra.mxu0 %v4691
  %4828 = vmatprep.mubr.f32.mxu0 %v2097
  %4829 = vmatmul.mubr.f32.gmra.mrb[0].mxu0 %v2096
  %v4830 = vpop.f32.mrb[0].mxu0
  %v4831 = vadd.f32 0.0, %v4830
  %v4832 = vpop.f32.mrb[0].mxu0
  %v4833 = vadd.f32 0.0, %v4832
  %4834 = vdwg.mxu0
  %v4835 = vadd.f32 %v4560, %v4760
  %v4836 = vadd.f32 %v4561, %v4762
  %v4837 = vadd.f32 %v4562, %v4831
  %v4838 = vadd.f32 %v4563, %v4833
  %v4839 = vld [vmem:[%s6] sm:$0xf]
  %v4841 = vlaneseq
  %v4842 = vshrl.u32 %v4841, 7
  %v4843 = vsub.s32 0, %v4842
  %v4844 = vrot.slane %v4839, %v4843
  %v4845 = vlaneseq
  %v4846 = vshrl.u32 %v4845, 7
  %v4847 = vsub.s32 1, %v4846
  %v4848 = vrot.slane %v4839, %v4847
  %v4849 = vlaneseq
  %v4850 = vshrl.u32 %v4849, 7
  %v4851 = vsub.s32 2, %v4850
  %v4852 = vrot.slane %v4839, %v4851
  %v4853 = vlaneseq
  %v4854 = vshrl.u32 %v4853, 7
  %v4855 = vsub.s32 3, %v4854
  %v4856 = vrot.slane %v4839, %v4855
  %v4861 = vadd.f32 %v4835, %v4844
  %v4862 = vadd.f32 %v4836, %v4848
  %v4863 = vadd.f32 %v4837, %v4852
  %v4864 = vadd.f32 %v4838, %v4856
  %v4865 = vmax.f32 %v4861, 0.0
  %v4866 = vmax.f32 %v4862, 0.0
  %v4867 = vmax.f32 %v4863, 0.0
  %v4868 = vmax.f32 %v4864, 0.0
  %v4869 = vld [vmem:[%s7] sm:$0xff]
  %v4870 = vld [vmem:[%s7 + $0x8] sm:$0xff]
  %v4871 = vld [vmem:[%s7 + $0x10] sm:$0xff]
  %v4872 = vld [vmem:[%s7 + $0x18] sm:$0xff]
  %v4873 = vld [vmem:[%s7 + $0x20] sm:$0xff]
  %v4874 = vld [vmem:[%s7 + $0x28] sm:$0xff]
  %v4875 = vld [vmem:[%s7 + $0x30] sm:$0xff]
  %v4876 = vld [vmem:[%s7 + $0x38] sm:$0xff]
  %v4877 = vld [vmem:[%s7 + $0x40] sm:$0xff]
  %v4878 = vld [vmem:[%s7 + $0x48] sm:$0xff]
  %v4879 = vld [vmem:[%s7 + $0x50] sm:$0xff]
  %v4880 = vld [vmem:[%s7 + $0x58] sm:$0xff]
  %v4881 = vld [vmem:[%s7 + $0x60] sm:$0xff]
  %v4882 = vld [vmem:[%s7 + $0x68] sm:$0xff]
  %v4883 = vld [vmem:[%s7 + $0x70] sm:$0xff]
  %v4884 = vld [vmem:[%s7 + $0x78] sm:$0xff]
  %v4885 = vld [vmem:[%s7 + $0x80] sm:$0xff]
  %v4886 = vld [vmem:[%s7 + $0x88] sm:$0xff]
  %v4887 = vld [vmem:[%s7 + $0x90] sm:$0xff]
  %v4888 = vld [vmem:[%s7 + $0x98] sm:$0xff]
  %v4889 = vld [vmem:[%s7 + $0xa0] sm:$0xff]
  %v4890 = vld [vmem:[%s7 + $0xa8] sm:$0xff]
  %v4891 = vld [vmem:[%s7 + $0xb0] sm:$0xff]
  %v4892 = vld [vmem:[%s7 + $0xb8] sm:$0xff]
  %v4893 = vld [vmem:[%s7 + $0xc0] sm:$0xff]
  %v4894 = vld [vmem:[%s7 + $0xc8] sm:$0xff]
  %v4895 = vld [vmem:[%s7 + $0xd0] sm:$0xff]
  %v4896 = vld [vmem:[%s7 + $0xd8] sm:$0xff]
  %v4897 = vld [vmem:[%s7 + $0xe0] sm:$0xff]
  %v4898 = vld [vmem:[%s7 + $0xe8] sm:$0xff]
  %v4899 = vld [vmem:[%s7 + $0xf0] sm:$0xff]
  %v4900 = vld [vmem:[%s7 + $0xf8] sm:$0xff]
  %v4901 = vld [vmem:[%s7 + $0x100] sm:$0xff]
  %v4902 = vld [vmem:[%s7 + $0x108] sm:$0xff]
  %v4903 = vld [vmem:[%s7 + $0x110] sm:$0xff]
  %v4904 = vld [vmem:[%s7 + $0x118] sm:$0xff]
  %v4905 = vld [vmem:[%s7 + $0x120] sm:$0xff]
  %v4906 = vld [vmem:[%s7 + $0x128] sm:$0xff]
  %v4907 = vld [vmem:[%s7 + $0x130] sm:$0xff]
  %v4908 = vld [vmem:[%s7 + $0x138] sm:$0xff]
  %v4909 = vld [vmem:[%s7 + $0x140] sm:$0xff]
  %v4910 = vld [vmem:[%s7 + $0x148] sm:$0xff]
  %v4911 = vld [vmem:[%s7 + $0x150] sm:$0xff]
  %v4912 = vld [vmem:[%s7 + $0x158] sm:$0xff]
  %v4913 = vld [vmem:[%s7 + $0x160] sm:$0xff]
  %v4914 = vld [vmem:[%s7 + $0x168] sm:$0xff]
  %v4915 = vld [vmem:[%s7 + $0x170] sm:$0xff]
  %v4916 = vld [vmem:[%s7 + $0x178] sm:$0xff]
  %v4917 = vld [vmem:[%s7 + $0x180] sm:$0xff]
  %v4918 = vld [vmem:[%s7 + $0x188] sm:$0xff]
  %v4919 = vld [vmem:[%s7 + $0x190] sm:$0xff]
  %v4920 = vld [vmem:[%s7 + $0x198] sm:$0xff]
  %v4921 = vld [vmem:[%s7 + $0x1a0] sm:$0xff]
  %v4922 = vld [vmem:[%s7 + $0x1a8] sm:$0xff]
  %v4923 = vld [vmem:[%s7 + $0x1b0] sm:$0xff]
  %v4924 = vld [vmem:[%s7 + $0x1b8] sm:$0xff]
  %v4925 = vld [vmem:[%s7 + $0x1c0] sm:$0xff]
  %v4926 = vld [vmem:[%s7 + $0x1c8] sm:$0xff]
  %v4927 = vld [vmem:[%s7 + $0x1d0] sm:$0xff]
  %v4928 = vld [vmem:[%s7 + $0x1d8] sm:$0xff]
  %v4929 = vld [vmem:[%s7 + $0x1e0] sm:$0xff]
  %v4930 = vld [vmem:[%s7 + $0x1e8] sm:$0xff]
  %v4931 = vld [vmem:[%s7 + $0x1f0] sm:$0xf]
  %v4932 = vld [vmem:[%s8] sm:$0x1]
  %v4934 = vlaneseq
  %v4935 = vshrl.u32 %v4934, 7
  %v4936 = vsub.s32 0, %v4935
  %v4937 = vrot.slane %v4932, %v4936
  %vm4939 = vcmask 949248
  %v4941 = vsel %vm4939, %v4868, 0
  %v4944 = vsel %vm150, %v4931, 0
  %4946 = vmatprep.subr.mxu0 0.0
  %4947 = vmatpush1.msra.mxu0 %v4869
  %4948 = vmatprep.subr.mxu0 0.0
  %4949 = vmatpush1.msra.mxu0 %v4870
  %4950 = vmatprep.subr.mxu0 0.0
  %4951 = vmatpush1.msra.mxu0 %v4871
  %4952 = vmatprep.subr.mxu0 0.0
  %4953 = vmatpush1.msra.mxu0 %v4872
  %4954 = vmatprep.subr.mxu0 0.0
  %4955 = vmatpush1.msra.mxu0 %v4873
  %4956 = vmatprep.subr.mxu0 0.0
  %4957 = vmatpush1.msra.mxu0 %v4874
  %4958 = vmatprep.subr.mxu0 0.0
  %4959 = vmatpush1.msra.mxu0 %v4875
  %4960 = vmatprep.subr.mxu0 0.0
  %4961 = vmatpush1.msra.mxu0 %v4876
  %4962 = vmatprep.subr.mxu0 0.0
  %4963 = vmatpush1.msra.mxu0 %v4877
  %4964 = vmatprep.subr.mxu0 0.0
  %4965 = vmatpush1.msra.mxu0 %v4878
  %4966 = vmatprep.subr.mxu0 0.0
  %4967 = vmatpush1.msra.mxu0 %v4879
  %4968 = vmatprep.subr.mxu0 0.0
  %4969 = vmatpush1.msra.mxu0 %v4880
  %4970 = vmatprep.subr.mxu0 0.0
  %4971 = vmatpush1.msra.mxu0 %v4881
  %4972 = vmatprep.subr.mxu0 0.0
  %4973 = vmatpush1.msra.mxu0 %v4882
  %4974 = vmatprep.subr.mxu0 0.0
  %4975 = vmatpush1.msra.mxu0 %v4883
  %4976 = vmatprep.subr.mxu0 0.0
  %4977 = vmatpush1.msra.mxu0 %v4884
  %4978 = vmatprep.subr.mxu0 0.0
  %4979 = vmatpush1.msra.mxu0 %v4885
  %4980 = vmatprep.subr.mxu0 0.0
  %4981 = vmatpush1.msra.mxu0 %v4886
  %4982 = vmatprep.subr.mxu0 0.0
  %4983 = vmatpush1.msra.mxu0 %v4887
  %4984 = vmatprep.subr.mxu0 0.0
  %4985 = vmatpush1.msra.mxu0 %v4888
  %4986 = vmatprep.subr.mxu0 0.0
  %4987 = vmatpush1.msra.mxu0 %v4889
  %4988 = vmatprep.subr.mxu0 0.0
  %4989 = vmatpush1.msra.mxu0 %v4890
  %4990 = vmatprep.subr.mxu0 0.0
  %4991 = vmatpush1.msra.mxu0 %v4891
  %4992 = vmatprep.subr.mxu0 0.0
  %4993 = vmatpush1.msra.mxu0 %v4892
  %4994 = vmatprep.subr.mxu0 0.0
  %4995 = vmatpush1.msra.mxu0 %v4893
  %4996 = vmatprep.subr.mxu0 0.0
  %4997 = vmatpush1.msra.mxu0 %v4894
  %4998 = vmatprep.subr.mxu0 0.0
  %4999 = vmatpush1.msra.mxu0 %v4895
  %5000 = vmatprep.subr.mxu0 0.0
  %5001 = vmatpush1.msra.mxu0 %v4896
  %5002 = vmatprep.subr.mxu0 0.0
  %5003 = vmatpush1.msra.mxu0 %v4897
  %5004 = vmatprep.subr.mxu0 0.0
  %5005 = vmatpush1.msra.mxu0 %v4898
  %5006 = vmatprep.subr.mxu0 0.0
  %5007 = vmatpush1.msra.mxu0 %v4899
  %5008 = vmatprep.subr.mxu0 0.0
  %5009 = vmatpush1.msra.mxu0 %v4900
  %5010 = vmatprep.mubr.f32.mxu0 %v4866
  %5011 = vmatmul.mubr.f32.gmra.mrb[0].mxu0 %v4865
  %v5012 = vpop.f32.mrb[0].mxu0
  %v5013 = vadd.f32 %v4937, %v5012
  %v5014 = vpop.f32.mrb[0].mxu0
  %5015 = vdwg.mxu0
  %5016 = vmatprep.subr.mxu0 0.0
  %5017 = vmatpush1.msra.mxu0 %v4901
  %5018 = vmatprep.subr.mxu0 0.0
  %5019 = vmatpush1.msra.mxu0 %v4902
  %5020 = vmatprep.subr.mxu0 0.0
  %5021 = vmatpush1.msra.mxu0 %v4903
  %5022 = vmatprep.subr.mxu0 0.0
  %5023 = vmatpush1.msra.mxu0 %v4904
  %5024 = vmatprep.subr.mxu0 0.0
  %5025 = vmatpush1.msra.mxu0 %v4905
  %5026 = vmatprep.subr.mxu0 0.0
  %5027 = vmatpush1.msra.mxu0 %v4906
  %5028 = vmatprep.subr.mxu0 0.0
  %5029 = vmatpush1.msra.mxu0 %v4907
  %5030 = vmatprep.subr.mxu0 0.0
  %5031 = vmatpush1.msra.mxu0 %v4908
  %5032 = vmatprep.subr.mxu0 0.0
  %5033 = vmatpush1.msra.mxu0 %v4909
  %5034 = vmatprep.subr.mxu0 0.0
  %5035 = vmatpush1.msra.mxu0 %v4910
  %5036 = vmatprep.subr.mxu0 0.0
  %5037 = vmatpush1.msra.mxu0 %v4911
  %5038 = vmatprep.subr.mxu0 0.0
  %5039 = vmatpush1.msra.mxu0 %v4912
  %5040 = vmatprep.subr.mxu0 0.0
  %5041 = vmatpush1.msra.mxu0 %v4913
  %5042 = vmatprep.subr.mxu0 0.0
  %5043 = vmatpush1.msra.mxu0 %v4914
  %5044 = vmatprep.subr.mxu0 0.0
  %5045 = vmatpush1.msra.mxu0 %v4915
  %5046 = vmatprep.subr.mxu0 0.0
  %5047 = vmatpush1.msra.mxu0 %v4916
  %5048 = vmatprep.subr.mxu0 0.0
  %5049 = vmatpush1.msra.mxu0 %v4917
  %5050 = vmatprep.subr.mxu0 0.0
  %5051 = vmatpush1.msra.mxu0 %v4918
  %5052 = vmatprep.subr.mxu0 0.0
  %5053 = vmatpush1.msra.mxu0 %v4919
  %5054 = vmatprep.subr.mxu0 0.0
  %5055 = vmatpush1.msra.mxu0 %v4920
  %5056 = vmatprep.subr.mxu0 0.0
  %5057 = vmatpush1.msra.mxu0 %v4921
  %5058 = vmatprep.subr.mxu0 0.0
  %5059 = vmatpush1.msra.mxu0 %v4922
  %5060 = vmatprep.subr.mxu0 0.0
  %5061 = vmatpush1.msra.mxu0 %v4923
  %5062 = vmatprep.subr.mxu0 0.0
  %5063 = vmatpush1.msra.mxu0 %v4924
  %5064 = vmatprep.subr.mxu0 0.0
  %5065 = vmatpush1.msra.mxu0 %v4925
  %5066 = vmatprep.subr.mxu0 0.0
  %5067 = vmatpush1.msra.mxu0 %v4926
  %5068 = vmatprep.subr.mxu0 0.0
  %5069 = vmatpush1.msra.mxu0 %v4927
  %5070 = vmatprep.subr.mxu0 0.0
  %5071 = vmatpush1.msra.mxu0 %v4928
  %5072 = vmatprep.subr.mxu0 0.0
  %5073 = vmatpush1.msra.mxu0 %v4929
  %5074 = vmatprep.subr.mxu0 0.0
  %5075 = vmatpush1.msra.mxu0 %v4930
  %5076 = vmatprep.subr.mxu0 0.0
  %5077 = vmatpush1.msra.mxu0 %v4944
  %5078 = vmatprep.subr.mxu0 0.0
  %5079 = vmatpush1.msra.mxu0 0.0
  %5080 = vmatprep.mubr.f32.mxu0 %v4941
  %5081 = vmatmul.mubr.f32.gmra.mrb[0].mxu0 %v4867
  %v5082 = vpop.f32.mrb[0].mxu0
  %v5083 = vadd.f32 %v5013, %v5082
  %v5084 = vpop.f32.mrb[0].mxu0
  %5085 = vdwg.mxu0
  %5086 = vmax.xlane.f32.xlu0 %v5083
  %v5087 = vpop.xlane.xlu0 %5086
  %v5088 = vsub.f32 %v5083, %v5087
  %v5089 = vmul.f32 %v5088, 1.442695
  %v5090 = vpow.pop %v5089
  %5091 = vadd.xlane.f32.xlu0 %v5090
  %v5092 = vpop.xlane.xlu0 %5091
  %v5093 = vlog2.pop %v5092
  %v5094 = vmul.f32 %v5093, 0.6931472
  %v5095 = vsub.f32 %v5088, %v5094
  %5096 = vst [vmem:[%s9] sm:$0xff] %v5095
  // Predicated region
  $region38: #{convnet_forward.1} parent=0 // pred_check
    _
  $region39: #{convnet_forward.1} parent=0 // pred_check_branch
    %5098 = sbr.rel (0) target = $region41
  $region40: #{convnet_forward.1} parent=0 // pred_region
    _
  $region41: #{convnet_forward.1} parent=0 // pred_fallthru
    _
  // Predicated region
  $region42: #{convnet_forward.1} parent=0 // pred_check
    _
  $region43: #{convnet_forward.1} parent=0 // pred_check_branch
    %5100 = sbr.rel (0) target = $region45
  $region44: #{convnet_forward.1} parent=0 // pred_region
    _
  $region45: #{convnet_forward.1} parent=0 // pred_fallthru
    _

</llo_original>
